<compile_context>
chip_gen: v7x
topology: tpu7x:2x2x1
jax: 0.10.0
libtpu: 0.0.40
codegen_flags: <defaults>
</compile_context>

<pallas_src>
import functools

import jax
import jax.numpy as jnp
from jax.experimental import pallas as pl
from jax.experimental.pallas import tpu as pltpu


# ----------------------------------------------------------------------------
# Helpers
# ----------------------------------------------------------------------------
def _tile(dim, cap, align):
    """Largest tile <= cap that divides dim and is `align`-aligned.
    Falling back to the full dim is always legal (full-extent block)."""
    if dim <= cap:
        return dim
    t = (cap // align) * align
    while t >= align:
        if dim % t == 0:
            return t
        t -= align
    return dim


def bn_fold(bn, eps=1e-5):
    s = bn["gamma"] * jax.lax.rsqrt(bn["var"] + eps)
    b = bn["beta"] - bn["mean"] * s
    return s, b


# ----------------------------------------------------------------------------
# Tiled fused matmul:  out = act(x @ w + bias)   (BN scale pre-folded into w)
# ----------------------------------------------------------------------------
def _mm_bias_single_kernel(x_ref, w_ref, b_ref, o_ref, *, relu):
    # Single K step: no accumulator scratch / pl.when round-trip needed.
    y = jnp.dot(x_ref[...], w_ref[...], preferred_element_type=jnp.float32)
    y = y + b_ref[...]
    if relu:
        y = jnp.maximum(y, 0.0)
    o_ref[...] = y.astype(o_ref.dtype)


def _mm_bias_acc_kernel(x_ref, w_ref, b_ref, o_ref, acc_ref, *, relu):
    @pl.when(pl.program_id(2) == 0)
    def _():
        acc_ref[...] = jnp.zeros_like(acc_ref)

    acc_ref[...] += jnp.dot(x_ref[...], w_ref[...],
                            preferred_element_type=jnp.float32)

    @pl.when(pl.program_id(2) == pl.num_programs(2) - 1)
    def _():
        y = acc_ref[...] + b_ref[...]
        if relu:
            y = jnp.maximum(y, 0.0)
        o_ref[...] = y.astype(o_ref.dtype)


def fused_mm(x, w, bias, *, relu=False, out_dtype=jnp.bfloat16,
             tm_cap=256, tn_cap=512, tk_cap=512):
    """x: (M, K) bf16, w: (K, N) bf16, bias: (1, N) f32 -> (M, N)."""
    M, K = x.shape
    N = w.shape[1]
    tm = _tile(M, tm_cap, 16)        # bf16 packs 16 rows per vreg sublane-wise
    tn = _tile(N, tn_cap, 128)
    tk = _tile(K, tk_cap, 128)
    gk = K // tk
    # Audit: double-buffered bf16 blocks + f32 accumulator must fit v7x VMEM.
    blk_bytes = 2 * 2 * (tm * tk + tk * tn + tn) + 2 * 2 * tm * tn + 4 * tm * tn
    assert blk_bytes < 48 * 1024 * 1024, ("fused_mm tile too large", tm, tn, tk)

    if gk == 1:
        return pl.pallas_call(
            functools.partial(_mm_bias_single_kernel, relu=relu),
            out_shape=jax.ShapeDtypeStruct((M, N), out_dtype),
            grid=(M // tm, N // tn),
            in_specs=[
                pl.BlockSpec((tm, tk), lambda i, j: (i, 0)),
                pl.BlockSpec((tk, tn), lambda i, j: (0, j)),
                pl.BlockSpec((1, tn), lambda i, j: (0, j)),
            ],
            out_specs=pl.BlockSpec((tm, tn), lambda i, j: (i, j)),
            compiler_params=pltpu.CompilerParams(
                dimension_semantics=("parallel", "parallel")),
        )(x, w, bias)

    return pl.pallas_call(
        functools.partial(_mm_bias_acc_kernel, relu=relu),
        out_shape=jax.ShapeDtypeStruct((M, N), out_dtype),
        grid=(M // tm, N // tn, gk),
        in_specs=[
            pl.BlockSpec((tm, tk), lambda i, j, k: (i, k)),
            pl.BlockSpec((tk, tn), lambda i, j, k: (k, j)),
            pl.BlockSpec((1, tn), lambda i, j, k: (0, j)),
        ],
        out_specs=pl.BlockSpec((tm, tn), lambda i, j, k: (i, j)),
        scratch_shapes=[pltpu.VMEM((tm, tn), jnp.float32)],
        compiler_params=pltpu.CompilerParams(
            dimension_semantics=("parallel", "parallel", "arbitrary")),
    )(x, w, bias)


# ----------------------------------------------------------------------------
# Fused FasterNet MLPBlock kernel (per-batch grid, everything stays in VMEM)
# ----------------------------------------------------------------------------
def _mlp_block_kernel(x_ref, w3p_ref, w3c_ref, w3n_ref, w1a_ref, w1b_ref,
                      b1_ref, w2_ref, o_ref, *, cp):
    x = x_ref[0]                                  # (L, C) bf16
    L = x.shape[0]
    x1 = x[:, :cp]                                # (L, cp)   channels conv'd
    x2 = x[:, cp:]                                # (L, C-cp) untouched channels

    # 3-tap 'same' halo via shifted sublane slices, kept in bf16 (no f32 churn).
    zrow = jnp.zeros((1, cp), x1.dtype)
    prev = jnp.concatenate([zrow, x1[:L - 1, :]], axis=0)   # x1[t-1]
    nxt = jnp.concatenate([x1[1:, :], zrow], axis=0)        # x1[t+1]
    # TODO(synk): switch to pltpu.roll + iota boundary mask once L/cp are
    # guaranteed tile-aligned (uses the free XLU slot instead of copies).

    # Partial_conv3 (split_cat) as three accumulating MXU matmuls -- no
    # lane-axis im2col concat, no (L, 3*cp) temporary.
    y1 = jnp.dot(x1, w3c_ref[...], preferred_element_type=jnp.float32)
    y1 = y1 + jnp.dot(prev, w3p_ref[...], preferred_element_type=jnp.float32)
    y1 = y1 + jnp.dot(nxt, w3n_ref[...], preferred_element_type=jnp.float32)

    # MLP: 1x1 conv + folded BN + ReLU with split weights -- the mixed tensor
    # [conv(x1) | x2] is never materialized.
    h = jnp.dot(y1.astype(jnp.bfloat16), w1a_ref[...],
                preferred_element_type=jnp.float32)
    h = h + jnp.dot(x2, w1b_ref[...], preferred_element_type=jnp.float32)
    h = jnp.maximum(h + b1_ref[...], 0.0).astype(jnp.bfloat16)

    out = jnp.dot(h, w2_ref[...], preferred_element_type=jnp.float32)  # (L, C)
    o_ref[0] = out.astype(o_ref.dtype) + x        # residual add in bf16


def mlp_block(x, p):
    B, L, C = x.shape
    cp = p["w3c"].shape[0]
    H = p["w2"].shape[0]

    # VMEM audit (v7x: 64 MiB physical, ~32 MiB default scoped).
    est = (4 * L * C * 2                                    # x in + out, 2x buf
           + 2 * 2 * (3 * cp * cp + cp * H + (C - cp) * H + H + H * C)  # weights
           + 4 * L * (3 * cp + H + 2 * C))                  # f32 temporaries
    assert est < 48 * 1024 * 1024, ("mlp_block block too large for VMEM", est)
    vmem_limit = int(min(max(2 * est, 32 * 1024 * 1024), 60 * 1024 * 1024))

    kernel = functools.partial(_mlp_block_kernel, cp=cp)
    return pl.pallas_call(
        kernel,
        out_shape=jax.ShapeDtypeStruct((B, L, C), jnp.bfloat16),
        grid=(B,),
        in_specs=[
            pl.BlockSpec((1, L, C), lambda b: (b, 0, 0)),
            pl.BlockSpec((cp, cp), lambda b: (0, 0)),
            pl.BlockSpec((cp, cp), lambda b: (0, 0)),
            pl.BlockSpec((cp, cp), lambda b: (0, 0)),
            pl.BlockSpec((cp, H), lambda b: (0, 0)),
            pl.BlockSpec((C - cp, H), lambda b: (0, 0)),
            pl.BlockSpec((1, H), lambda b: (0, 0)),
            pl.BlockSpec((H, C), lambda b: (0, 0)),
        ],
        out_specs=pl.BlockSpec((1, L, C), lambda b: (b, 0, 0)),
        compiler_params=pltpu.CompilerParams(
            dimension_semantics=("parallel",),
            vmem_limit_bytes=vmem_limit),
    )(x, p["w3p"], p["w3c"], p["w3n"], p["w1a"], p["w1b"], p["b1"], p["w2"])
    # TODO(synk): for very long sequences add an L-tiled grid axis with a
    # 1-row halo so per-step VMEM stays bounded and both v7x TCs are used.


# ----------------------------------------------------------------------------
# Fused head: AdaptiveAvgPool1d(1) + Conv1x1 + ReLU + Linear, pipelined over L
# ----------------------------------------------------------------------------
def _head_kernel(x_ref, wc_ref, wf_ref, bf_ref, o_ref, pool_ref, *, inv_l):
    @pl.when(pl.program_id(0) == 0)
    def _():
        pool_ref[...] = jnp.zeros_like(pool_ref)

    pool_ref[...] += jnp.sum(x_ref[...].astype(jnp.float32), axis=1)  # (B, C)

    @pl.when(pl.program_id(0) == pl.num_programs(0) - 1)
    def _():
        pooled = (pool_ref[...] * inv_l).astype(jnp.bfloat16)          # (B, C)
        feat = jnp.dot(pooled, wc_ref[...],
                       preferred_element_type=jnp.float32)             # (B, F)
        feat = jnp.maximum(feat, 0.0).astype(jnp.bfloat16)
        logits = jnp.dot(feat, wf_ref[...],
                         preferred_element_type=jnp.float32) + bf_ref[...]
        o_ref[...] = logits


def head(x, p, *, tl_cap=512):
    B, L, C = x.shape
    F = p["wc"].shape[1]
    ncls = p["wf"].shape[1]
    tl = _tile(L, tl_cap, 8)
    kernel = functools.partial(_head_kernel, inv_l=1.0 / float(L))
    return pl.pallas_call(
        kernel,
        out_shape=jax.ShapeDtypeStruct((B, ncls), jnp.float32),
        grid=(L // tl,),
        in_specs=[
            pl.BlockSpec((B, tl, C), lambda l: (0, l, 0)),
            pl.BlockSpec((C, F), lambda l: (0, 0)),
            pl.BlockSpec((F, ncls), lambda l: (0, 0)),
            pl.BlockSpec((1, ncls), lambda l: (0, 0)),
        ],
        out_specs=pl.BlockSpec((B, ncls), lambda l: (0, 0)),
        scratch_shapes=[pltpu.VMEM((B, C), jnp.float32)],
        compiler_params=pltpu.CompilerParams(
            dimension_semantics=("arbitrary",)),
    )(x, p["wc"], p["wf"], p["bf"])


# ----------------------------------------------------------------------------
# PatchEmbed / PatchMerging: strided conv as patch-unfold + fused matmul
# ----------------------------------------------------------------------------
def strided_conv_bn(x, p):
    """Conv1d(kernel=stride=k, bias=False) + folded BN.
    x: (B, L, Cin) channels-last bf16; p["w"]: (k*Cin, Cout) bf16 pre-folded."""
    B, L, Cin = x.shape
    KCin, Cout = p["w"].shape
    k = KCin // Cin
    Lo = L // k
    if Lo * k != L:
        x = x[:, :Lo * k, :]
    # TODO(synk): the patch-unfold reshape relays the activation once through
    # HBM; fold it into the matmul kernel's BlockSpec for very large inputs.
    xp = x.reshape(B * Lo, k * Cin)
    y = fused_mm(xp, p["w"], p["b"])
    return y.reshape(B, Lo, Cout)


# ----------------------------------------------------------------------------
# Parameter construction (deterministic, synthetic, torch-layout) + folding
# ----------------------------------------------------------------------------
def _conv_weight(key, cout, cin, k):
    return jax.random.normal(key, (cout, cin, k), jnp.float32) / jnp.sqrt(cin * k)


def _bn_params(key, c):
    k1, k2, k3, k4 = jax.random.split(key, 4)
    return dict(
        gamma=1.0 + 0.1 * jax.random.normal(k1, (c,), jnp.float32),
        beta=0.1 * jax.random.normal(k2, (c,), jnp.float32),
        mean=0.1 * jax.random.normal(k3, (c,), jnp.float32),
        var=1.0 + 0.1 * jax.random.uniform(k4, (c,), jnp.float32),
    )


def init_fasternet(key, *, input_channels, num_classes, embed_dim, depths,
                   mlp_ratio, n_div, patch_size, patch_size2, feature_dim):
    keys = iter(jax.random.split(key, 512))
    params = dict(patch_embed=dict(
        w=_conv_weight(next(keys), embed_dim, input_channels, patch_size),
        bn=_bn_params(next(keys), embed_dim)))
    stages = []
    num_stages = len(depths)
    for i in range(num_stages):
        dim = embed_dim * 2 ** i
        hidden = int(dim * mlp_ratio)
        cp = dim // n_div
        blocks = []
        for _ in range(depths[i]):
            blocks.append(dict(
                pconv=_conv_weight(next(keys), cp, cp, 3),      # torch (co,ci,3)
                w1=_conv_weight(next(keys), hidden, dim, 1),
                bn=_bn_params(next(keys), hidden),
                w2=_conv_weight(next(keys), dim, hidden, 1)))
        stage = dict(blocks=blocks)
        if i < num_stages - 1:
            stage["merge"] = dict(
                w=_conv_weight(next(keys), 2 * dim, dim, patch_size2),
                bn=_bn_params(next(keys), 2 * dim))
        stages.append(stage)
    params["stages"] = stages
    num_features = embed_dim * 2 ** (num_stages - 1)
    params["conv"] = _conv_weight(next(keys), feature_dim, num_features, 1)
    params["fc_w"] = jax.random.normal(next(keys), (num_classes, feature_dim),
                                       jnp.float32) / jnp.sqrt(feature_dim)
    params["fc_b"] = 0.01 * jax.random.normal(next(keys), (num_classes,),
                                              jnp.float32)
    return params


def prepare_fasternet(raw):
    """One-time weight folding (BN fold, transposes, splits, bf16 casts).
    Hoisted out of the forward path so the jitted forward only sees folded
    bf16 weights (no per-call tiny-op swarm / HBM weight rewrites)."""
    def fold_conv_bn(w, bn):
        cout, cin, k = w.shape
        s, b = bn_fold(bn)
        wr = (jnp.transpose(w, (2, 1, 0)).reshape(k * cin, cout)
              * s[None, :]).astype(jnp.bfloat16)
        return dict(w=wr, b=b.reshape(1, cout).astype(jnp.float32))

    folded = dict(patch_embed=fold_conv_bn(raw["patch_embed"]["w"],
                                           raw["patch_embed"]["bn"]))
    stages = []
    for st in raw["stages"]:
        blocks = []
        for blk in st["blocks"]:
            wp = blk["pconv"]                                   # (cp, cp, 3)
            cp = wp.shape[0]
            s1, b1 = bn_fold(blk["bn"])
            w1f = blk["w1"][:, :, 0].T * s1[None, :]            # (C, H) folded
            blocks.append(dict(
                w3p=wp[:, :, 0].T.astype(jnp.bfloat16),         # tap x[t-1]
                w3c=wp[:, :, 1].T.astype(jnp.bfloat16),         # tap x[t]
                w3n=wp[:, :, 2].T.astype(jnp.bfloat16),         # tap x[t+1]
                w1a=w1f[:cp, :].astype(jnp.bfloat16),           # conv'd channels
                w1b=w1f[cp:, :].astype(jnp.bfloat16),           # untouched chans
                b1=b1.reshape(1, -1).astype(jnp.float32),
                w2=blk["w2"][:, :, 0].T.astype(jnp.bfloat16)))  # (H, C)
        fs = dict(blocks=blocks)
        if "merge" in st:
            fs["merge"] = fold_conv_bn(st["merge"]["w"], st["merge"]["bn"])
        stages.append(fs)
    folded["stages"] = stages
    folded["head"] = dict(
        wc=raw["conv"][:, :, 0].T.astype(jnp.bfloat16),         # (C, F)
        wf=raw["fc_w"].T.astype(jnp.bfloat16),                  # (F, ncls)
        bf=raw["fc_b"].reshape(1, -1).astype(jnp.float32))
    return folded


# ----------------------------------------------------------------------------
# Full forward (all statics derived from weight shapes; folded params only)
# ----------------------------------------------------------------------------
def fasternet_forward(folded, x_ncl):
    # x_ncl: (B, C, L) as PyTorch Conv1d expects; go channels-last bf16.
    x = jnp.transpose(x_ncl, (0, 2, 1)).astype(jnp.bfloat16)      # (B, L, C)
    x = strided_conv_bn(x, folded["patch_embed"])                 # PatchEmbed
    for stage in folded["stages"]:
        for blk in stage["blocks"]:                               # BasicStage
            x = mlp_block(x, blk)
        if "merge" in stage:                                      # PatchMerging
            x = strided_conv_bn(x, stage["merge"])
    # Fused AdaptiveAvgPool1d(1) + Conv1x1 + ReLU + Linear.
    return head(x, folded["head"])
# TODO(synk): DropPath (stochastic depth) is training-only; identity here.


if __name__ == "__main__":
    cfg = dict(
        input_channels=4,
        num_classes=10,
        embed_dim=32,
        depths=(1, 1, 1, 1),
        mlp_ratio=2.0,
        n_div=4,
        patch_size=4,
        patch_size2=2,
        feature_dim=128,
    )
    key = jax.random.PRNGKey(0)
    k_params, k_x = jax.random.split(key)
    raw_params = init_fasternet(k_params, **cfg)
    folded_params = prepare_fasternet(raw_params)   # one-time folding (hoisted)

    # (B, C, L) like the PyTorch module's Conv1d input.
    x = jax.random.normal(k_x, (2, cfg["input_channels"], 64), jnp.float32)

    fwd = jax.jit(fasternet_forward)
    out = jax.block_until_ready(fwd(folded_params, x))
    assert out.shape == (2, cfg["num_classes"]), out.shape
    assert bool(jnp.all(jnp.isfinite(out)))
    print("KERNEL_OK")
</pallas_src>

<mosaic_0001>
module attributes {stable_mosaic.version = 11 : i64} {
  func.func @_mm_bias_single_kernel(%arg0: i32, %arg1: i32, %arg2: memref<32x16xbf16, #tpu.memory_space<vmem>>, %arg3: memref<16x32xbf16, #tpu.memory_space<vmem>>, %arg4: memref<1x32xf32, #tpu.memory_space<vmem>>, %arg5: memref<32x32xbf16, #tpu.memory_space<vmem>>) attributes {dimension_semantics = [#tpu.dimension_semantics<parallel>, #tpu.dimension_semantics<parallel>], iteration_bounds = array<i64: 1, 1>, scalar_prefetch = 0 : i64, scratch_operands = 0 : i64, tpu.core_type = #tpu.core_type<tc>, window_params = [{transform_indices = @transform_0, window_bounds = array<i64: 32, 16>}, {transform_indices = @transform_1, window_bounds = array<i64: 16, 32>}, {transform_indices = @transform_2, window_bounds = array<i64: 1, 32>}, {transform_indices = @transform_3, window_bounds = array<i64: 32, 32>}]} {
    %c0 = arith.constant 0 : index
    %c0_0 = arith.constant 0 : index
    %0 = vector.load %arg2[%c0, %c0_0] : memref<32x16xbf16, #tpu.memory_space<vmem>>, vector<32x16xbf16>
    %c0_1 = arith.constant 0 : index
    %c0_2 = arith.constant 0 : index
    %1 = vector.load %arg3[%c0_1, %c0_2] : memref<16x32xbf16, #tpu.memory_space<vmem>>, vector<16x32xbf16>
    %cst = arith.constant dense<0.000000e+00> : vector<32x32xf32>
    %2 = tpu.matmul %0, %1, %cst {dimension_numbers = #tpu.dot_dimension_numbers<[1], [0], [0], [1], [0, 0, 1, 1], [], []>} : vector<32x16xbf16>, vector<16x32xbf16>, vector<32x32xf32> -> vector<32x32xf32>
    %c0_3 = arith.constant 0 : index
    %c0_4 = arith.constant 0 : index
    %3 = vector.load %arg4[%c0_3, %c0_4] : memref<1x32xf32, #tpu.memory_space<vmem>>, vector<1x32xf32>
    %4 = vector.broadcast %3 : vector<1x32xf32> to vector<32x32xf32>
    %5 = arith.addf %2, %4 : vector<32x32xf32>
    %6 = arith.truncf %5 : vector<32x32xf32> to vector<32x32xbf16>
    %c0_5 = arith.constant 0 : index
    %c0_6 = arith.constant 0 : index
    %7 = vector.load %arg5[%c0_5, %c0_6] : memref<32x32xbf16, #tpu.memory_space<vmem>>, vector<32x32xbf16>
    tpu.vector_store %arg5[%c0_5, %c0_6], %6 {strides = array<i32>} : memref<32x32xbf16, #tpu.memory_space<vmem>>, vector<32x32xbf16>,
    return
  }
  func.func @transform_0(%arg0: i32, %arg1: i32) -> (i32, i32) {
    %c0_i32 = arith.constant 0 : i32
    %c0_i32_0 = arith.constant 0 : i32
    return %arg0, %c0_i32 : i32, i32
  }
  func.func @transform_1(%arg0: i32, %arg1: i32) -> (i32, i32) {
    %c0_i32 = arith.constant 0 : i32
    %c0_i32_0 = arith.constant 0 : i32
    return %c0_i32, %arg1 : i32, i32
  }
  func.func @transform_2(%arg0: i32, %arg1: i32) -> (i32, i32) {
    %c0_i32 = arith.constant 0 : i32
    %c0_i32_0 = arith.constant 0 : i32
    return %c0_i32, %arg1 : i32, i32
  }
  func.func @transform_3(%arg0: i32, %arg1: i32) -> (i32, i32) {
    %c0_i32 = arith.constant 0 : i32
    return %arg0, %arg1 : i32, i32
  }
}

module attributes {stable_mosaic.version = 11 : i64} {
  func.func @_mlp_block_kernel(%arg0: i32, %arg1: memref<1x8x64xbf16, #tpu.memory_space<vmem>>, %arg2: memref<16x16xbf16, #tpu.memory_space<vmem>>, %arg3: memref<16x16xbf16, #tpu.memory_space<vmem>>, %arg4: memref<16x16xbf16, #tpu.memory_space<vmem>>, %arg5: memref<16x128xbf16, #tpu.memory_space<vmem>>, %arg6: memref<48x128xbf16, #tpu.memory_space<vmem>>, %arg7: memref<1x128xf32, #tpu.memory_space<vmem>>, %arg8: memref<128x64xbf16, #tpu.memory_space<vmem>>, %arg9: memref<1x8x64xbf16, #tpu.memory_space<vmem>>) attributes {dimension_semantics = [#tpu.dimension_semantics<parallel>], iteration_bounds = array<i64: 2>, scalar_prefetch = 0 : i64, scratch_operands = 0 : i64, tpu.core_type = #tpu.core_type<tc>, window_params = [{transform_indices = @transform_0, window_bounds = array<i64: 1, 8, 64>}, {pipeline_mode = #tpu.pipeline_mode<synchronous>, transform_indices = @transform_1, window_bounds = array<i64: 16, 16>}, {pipeline_mode = #tpu.pipeline_mode<synchronous>, transform_indices = @transform_2, window_bounds = array<i64: 16, 16>}, {pipeline_mode = #tpu.pipeline_mode<synchronous>, transform_indices = @transform_3, window_bounds = array<i64: 16, 16>}, {pipeline_mode = #tpu.pipeline_mode<synchronous>, transform_indices = @transform_4, window_bounds = array<i64: 16, 128>}, {pipeline_mode = #tpu.pipeline_mode<synchronous>, transform_indices = @transform_5, window_bounds = array<i64: 48, 128>}, {pipeline_mode = #tpu.pipeline_mode<synchronous>, transform_indices = @transform_6, window_bounds = array<i64: 1, 128>}, {pipeline_mode = #tpu.pipeline_mode<synchronous>, transform_indices = @transform_7, window_bounds = array<i64: 128, 64>}, {transform_indices = @transform_8, window_bounds = array<i64: 1, 8, 64>}]} {
    %c0 = arith.constant 0 : index
    %c0_0 = arith.constant 0 : index
    %c0_1 = arith.constant 0 : index
    %0 = vector.load %arg1[%c0, %c0_0, %c0_1] : memref<1x8x64xbf16, #tpu.memory_space<vmem>>, vector<1x8x64xbf16>
    %1 = vector.shape_cast %0 : vector<1x8x64xbf16> to vector<8x64xbf16>
    %2 = vector.extract_strided_slice %1 {offsets = [0, 0], sizes = [8, 16], strides = [1, 1]} : vector<8x64xbf16> to vector<8x16xbf16>
    %3 = vector.extract_strided_slice %1 {offsets = [0, 16], sizes = [8, 48], strides = [1, 1]} : vector<8x64xbf16> to vector<8x48xbf16>
    %cst = arith.constant 0.000000e+00 : bf16
    %4 = vector.broadcast %cst : bf16 to vector<1x16xbf16>
    %5 = vector.extract_strided_slice %2 {offsets = [0, 0], sizes = [7, 16], strides = [1, 1]} : vector<8x16xbf16> to vector<7x16xbf16>
    %6 = tpu.concatenate %4, %5 in 0 : vector<1x16xbf16>, vector<7x16xbf16> -> vector<8x16xbf16>
    %7 = vector.extract_strided_slice %2 {offsets = [1, 0], sizes = [7, 16], strides = [1, 1]} : vector<8x16xbf16> to vector<7x16xbf16>
    %8 = tpu.concatenate %7, %4 in 0 : vector<7x16xbf16>, vector<1x16xbf16> -> vector<8x16xbf16>
    %c0_2 = arith.constant 0 : index
    %c0_3 = arith.constant 0 : index
    %9 = vector.load %arg3[%c0_2, %c0_3] : memref<16x16xbf16, #tpu.memory_space<vmem>>, vector<16x16xbf16>
    %cst_4 = arith.constant dense<0.000000e+00> : vector<8x16xf32>
    %10 = tpu.matmul %2, %9, %cst_4 {dimension_numbers = #tpu.dot_dimension_numbers<[1], [0], [0], [1], [0, 0, 1, 1], [], []>} : vector<8x16xbf16>, vector<16x16xbf16>, vector<8x16xf32> -> vector<8x16xf32>
    %c0_5 = arith.constant 0 : index
    %c0_6 = arith.constant 0 : index
    %11 = vector.load %arg2[%c0_5, %c0_6] : memref<16x16xbf16, #tpu.memory_space<vmem>>, vector<16x16xbf16>
    %cst_7 = arith.constant dense<0.000000e+00> : vector<8x16xf32>
    %12 = tpu.matmul %6, %11, %cst_7 {dimension_numbers = #tpu.dot_dimension_numbers<[1], [0], [0], [1], [0, 0, 1, 1], [], []>} : vector<8x16xbf16>, vector<16x16xbf16>, vector<8x16xf32> -> vector<8x16xf32>
    %13 = arith.addf %10, %12 : vector<8x16xf32>
    %c0_8 = arith.constant 0 : index
    %c0_9 = arith.constant 0 : index
    %14 = vector.load %arg4[%c0_8, %c0_9] : memref<16x16xbf16, #tpu.memory_space<vmem>>, vector<16x16xbf16>
    %cst_10 = arith.constant dense<0.000000e+00> : vector<8x16xf32>
    %15 = tpu.matmul %8, %14, %cst_10 {dimension_numbers = #tpu.dot_dimension_numbers<[1], [0], [0], [1], [0, 0, 1, 1], [], []>} : vector<8x16xbf16>, vector<16x16xbf16>, vector<8x16xf32> -> vector<8x16xf32>
    %16 = arith.addf %13, %15 : vector<8x16xf32>
    %17 = arith.truncf %16 : vector<8x16xf32> to vector<8x16xbf16>
    %c0_11 = arith.constant 0 : index
    %c0_12 = arith.constant 0 : index
    %18 = vector.load %arg5[%c0_11, %c0_12] : memref<16x128xbf16, #tpu.memory_space<vmem>>, vector<16x128xbf16>
    %cst_13 = arith.constant dense<0.000000e+00> : vector<8x128xf32>
    %19 = tpu.matmul %17, %18, %cst_13 {dimension_numbers = #tpu.dot_dimension_numbers<[1], [0], [0], [1], [0, 0, 1, 1], [], []>} : vector<8x16xbf16>, vector<16x128xbf16>, vector<8x128xf32> -> vector<8x128xf32>
    %c0_14 = arith.constant 0 : index
    %c0_15 = arith.constant 0 : index
    %20 = vector.load %arg6[%c0_14, %c0_15] : memref<48x128xbf16, #tpu.memory_space<vmem>>, vector<48x128xbf16>
    %cst_16 = arith.constant dense<0.000000e+00> : vector<8x128xf32>
    %21 = tpu.matmul %3, %20, %cst_16 {dimension_numbers = #tpu.dot_dimension_numbers<[1], [0], [0], [1], [0, 0, 1, 1], [], []>} : vector<8x48xbf16>, vector<48x128xbf16>, vector<8x128xf32> -> vector<8x128xf32>
    %22 = arith.addf %19, %21 : vector<8x128xf32>
    %c0_17 = arith.constant 0 : index
    %c0_18 = arith.constant 0 : index
    %23 = vector.load %arg7[%c0_17, %c0_18] : memref<1x128xf32, #tpu.memory_space<vmem>>, vector<1x128xf32>
    %24 = vector.broadcast %23 : vector<1x128xf32> to vector<8x128xf32>
    %25 = arith.addf %22, %24 : vector<8x128xf32>
    %cst_19 = arith.constant 0.000000e+00 : f32
    %26 = vector.broadcast %cst_19 : f32 to vector<8x128xf32>
    %27 = arith.maximumf %25, %26 : vector<8x128xf32>
    %28 = arith.truncf %27 : vector<8x128xf32> to vector<8x128xbf16>
    %c0_20 = arith.constant 0 : index
    %c0_21 = arith.constant 0 : index
    %29 = vector.load %arg8[%c0_20, %c0_21] : memref<128x64xbf16, #tpu.memory_space<vmem>>, vector<128x64xbf16>
    %cst_22 = arith.constant dense<0.000000e+00> : vector<8x64xf32>
    %30 = tpu.matmul %28, %29, %cst_22 {dimension_numbers = #tpu.dot_dimension_numbers<[1], [0], [0], [1], [0, 0, 1, 1], [], []>} : vector<8x128xbf16>, vector<128x64xbf16>, vector<8x64xf32> -> vector<8x64xf32>
    %31 = arith.truncf %30 : vector<8x64xf32> to vector<8x64xbf16>
    %32 = arith.addf %31, %1 : vector<8x64xbf16>
    %c0_23 = arith.constant 0 : index
    %c0_24 = arith.constant 0 : index
    %c0_25 = arith.constant 0 : index
    %33 = vector.load %arg9[%c0_23, %c0_24, %c0_25] : memref<1x8x64xbf16, #tpu.memory_space<vmem>>, vector<1x8x64xbf16>
    %34 = vector.shape_cast %33 : vector<1x8x64xbf16> to vector<8x64xbf16>
    %35 = vector.shape_cast %32 : vector<8x64xbf16> to vector<1x8x64xbf16>
    tpu.vector_store %arg9[%c0_23, %c0_24, %c0_25], %35 {strides = array<i32>} : memref<1x8x64xbf16, #tpu.memory_space<vmem>>, vector<1x8x64xbf16>,
    return
  }
  func.func @transform_0(%arg0: i32) -> (i32, i32, i32) {
    %c0_i32 = arith.constant 0 : i32
    %c0_i32_0 = arith.constant 0 : i32
    %c0_i32_1 = arith.constant 0 : i32
    return %arg0, %c0_i32, %c0_i32_0 : i32, i32, i32
  }
  func.func @transform_1(%arg0: i32) -> (i32, i32) {
    %c0_i32 = arith.constant 0 : i32
    %c0_i32_0 = arith.constant 0 : i32
    %c0_i32_1 = arith.constant 0 : i32
    return %c0_i32, %c0_i32_0 : i32, i32
  }
  func.func @transform_2(%arg0: i32) -> (i32, i32) {
    %c0_i32 = arith.constant 0 : i32
    %c0_i32_0 = arith.constant 0 : i32
    %c0_i32_1 = arith.constant 0 : i32
    return %c0_i32, %c0_i32_0 : i32, i32
  }
  func.func @transform_3(%arg0: i32) -> (i32, i32) {
    %c0_i32 = arith.constant 0 : i32
    %c0_i32_0 = arith.constant 0 : i32
    %c0_i32_1 = arith.constant 0 : i32
    return %c0_i32, %c0_i32_0 : i32, i32
  }
  func.func @transform_4(%arg0: i32) -> (i32, i32) {
    %c0_i32 = arith.constant 0 : i32
    %c0_i32_0 = arith.constant 0 : i32
    %c0_i32_1 = arith.constant 0 : i32
    return %c0_i32, %c0_i32_0 : i32, i32
  }
  func.func @transform_5(%arg0: i32) -> (i32, i32) {
    %c0_i32 = arith.constant 0 : i32
    %c0_i32_0 = arith.constant 0 : i32
    %c0_i32_1 = arith.constant 0 : i32
    return %c0_i32, %c0_i32_0 : i32, i32
  }
  func.func @transform_6(%arg0: i32) -> (i32, i32) {
    %c0_i32 = arith.constant 0 : i32
    %c0_i32_0 = arith.constant 0 : i32
    %c0_i32_1 = arith.constant 0 : i32
    return %c0_i32, %c0_i32_0 : i32, i32
  }
  func.func @transform_7(%arg0: i32) -> (i32, i32) {
    %c0_i32 = arith.constant 0 : i32
    %c0_i32_0 = arith.constant 0 : i32
    %c0_i32_1 = arith.constant 0 : i32
    return %c0_i32, %c0_i32_0 : i32, i32
  }
  func.func @transform_8(%arg0: i32) -> (i32, i32, i32) {
    %c0_i32 = arith.constant 0 : i32
    %c0_i32_0 = arith.constant 0 : i32
    %c0_i32_1 = arith.constant 0 : i32
    return %arg0, %c0_i32, %c0_i32_0 : i32, i32, i32
  }
}

module attributes {stable_mosaic.version = 11 : i64} {
  func.func @_mm_bias_single_kernel(%arg0: i32, %arg1: i32, %arg2: memref<16x64xbf16, #tpu.memory_space<vmem>>, %arg3: memref<64x64xbf16, #tpu.memory_space<vmem>>, %arg4: memref<1x64xf32, #tpu.memory_space<vmem>>, %arg5: memref<16x64xbf16, #tpu.memory_space<vmem>>) attributes {dimension_semantics = [#tpu.dimension_semantics<parallel>, #tpu.dimension_semantics<parallel>], iteration_bounds = array<i64: 1, 1>, scalar_prefetch = 0 : i64, scratch_operands = 0 : i64, tpu.core_type = #tpu.core_type<tc>, window_params = [{transform_indices = @transform_0, window_bounds = array<i64: 16, 64>}, {transform_indices = @transform_1, window_bounds = array<i64: 64, 64>}, {transform_indices = @transform_2, window_bounds = array<i64: 1, 64>}, {transform_indices = @transform_3, window_bounds = array<i64: 16, 64>}]} {
    %c0 = arith.constant 0 : index
    %c0_0 = arith.constant 0 : index
    %0 = vector.load %arg2[%c0, %c0_0] : memref<16x64xbf16, #tpu.memory_space<vmem>>, vector<16x64xbf16>
    %c0_1 = arith.constant 0 : index
    %c0_2 = arith.constant 0 : index
    %1 = vector.load %arg3[%c0_1, %c0_2] : memref<64x64xbf16, #tpu.memory_space<vmem>>, vector<64x64xbf16>
    %cst = arith.constant dense<0.000000e+00> : vector<16x64xf32>
    %2 = tpu.matmul %0, %1, %cst {dimension_numbers = #tpu.dot_dimension_numbers<[1], [0], [0], [1], [0, 0, 1, 1], [], []>} : vector<16x64xbf16>, vector<64x64xbf16>, vector<16x64xf32> -> vector<16x64xf32>
    %c0_3 = arith.constant 0 : index
    %c0_4 = arith.constant 0 : index
    %3 = vector.load %arg4[%c0_3, %c0_4] : memref<1x64xf32, #tpu.memory_space<vmem>>, vector<1x64xf32>
    %4 = vector.broadcast %3 : vector<1x64xf32> to vector<16x64xf32>
    %5 = arith.addf %2, %4 : vector<16x64xf32>
    %6 = arith.truncf %5 : vector<16x64xf32> to vector<16x64xbf16>
    %c0_5 = arith.constant 0 : index
    %c0_6 = arith.constant 0 : index
    %7 = vector.load %arg5[%c0_5, %c0_6] : memref<16x64xbf16, #tpu.memory_space<vmem>>, vector<16x64xbf16>
    tpu.vector_store %arg5[%c0_5, %c0_6], %6 {strides = array<i32>} : memref<16x64xbf16, #tpu.memory_space<vmem>>, vector<16x64xbf16>,
    return
  }
  func.func @transform_0(%arg0: i32, %arg1: i32) -> (i32, i32) {
    %c0_i32 = arith.constant 0 : i32
    %c0_i32_0 = arith.constant 0 : i32
    return %arg0, %c0_i32 : i32, i32
  }
  func.func @transform_1(%arg0: i32, %arg1: i32) -> (i32, i32) {
    %c0_i32 = arith.constant 0 : i32
    %c0_i32_0 = arith.constant 0 : i32
    return %c0_i32, %arg1 : i32, i32
  }
  func.func @transform_2(%arg0: i32, %arg1: i32) -> (i32, i32) {
    %c0_i32 = arith.constant 0 : i32
    %c0_i32_0 = arith.constant 0 : i32
    return %c0_i32, %arg1 : i32, i32
  }
  func.func @transform_3(%arg0: i32, %arg1: i32) -> (i32, i32) {
    %c0_i32 = arith.constant 0 : i32
    return %arg0, %arg1 : i32, i32
  }
}

module attributes {stable_mosaic.version = 11 : i64} {
  func.func @_mlp_block_kernel(%arg0: i32, %arg1: memref<1x16x32xbf16, #tpu.memory_space<vmem>>, %arg2: memref<8x8xbf16, #tpu.memory_space<vmem>>, %arg3: memref<8x8xbf16, #tpu.memory_space<vmem>>, %arg4: memref<8x8xbf16, #tpu.memory_space<vmem>>, %arg5: memref<8x64xbf16, #tpu.memory_space<vmem>>, %arg6: memref<24x64xbf16, #tpu.memory_space<vmem>>, %arg7: memref<1x64xf32, #tpu.memory_space<vmem>>, %arg8: memref<64x32xbf16, #tpu.memory_space<vmem>>, %arg9: memref<1x16x32xbf16, #tpu.memory_space<vmem>>) attributes {dimension_semantics = [#tpu.dimension_semantics<parallel>], iteration_bounds = array<i64: 2>, scalar_prefetch = 0 : i64, scratch_operands = 0 : i64, tpu.core_type = #tpu.core_type<tc>, window_params = [{transform_indices = @transform_0, window_bounds = array<i64: 1, 16, 32>}, {pipeline_mode = #tpu.pipeline_mode<synchronous>, transform_indices = @transform_1, window_bounds = array<i64: 8, 8>}, {pipeline_mode = #tpu.pipeline_mode<synchronous>, transform_indices = @transform_2, window_bounds = array<i64: 8, 8>}, {pipeline_mode = #tpu.pipeline_mode<synchronous>, transform_indices = @transform_3, window_bounds = array<i64: 8, 8>}, {pipeline_mode = #tpu.pipeline_mode<synchronous>, transform_indices = @transform_4, window_bounds = array<i64: 8, 64>}, {pipeline_mode = #tpu.pipeline_mode<synchronous>, transform_indices = @transform_5, window_bounds = array<i64: 24, 64>}, {pipeline_mode = #tpu.pipeline_mode<synchronous>, transform_indices = @transform_6, window_bounds = array<i64: 1, 64>}, {pipeline_mode = #tpu.pipeline_mode<synchronous>, transform_indices = @transform_7, window_bounds = array<i64: 64, 32>}, {transform_indices = @transform_8, window_bounds = array<i64: 1, 16, 32>}]} {
    %c0 = arith.constant 0 : index
    %c0_0 = arith.constant 0 : index
    %c0_1 = arith.constant 0 : index
    %0 = vector.load %arg1[%c0, %c0_0, %c0_1] : memref<1x16x32xbf16, #tpu.memory_space<vmem>>, vector<1x16x32xbf16>
    %1 = vector.shape_cast %0 : vector<1x16x32xbf16> to vector<16x32xbf16>
    %2 = vector.extract_strided_slice %1 {offsets = [0, 0], sizes = [16, 8], strides = [1, 1]} : vector<16x32xbf16> to vector<16x8xbf16>
    %3 = vector.extract_strided_slice %1 {offsets = [0, 8], sizes = [16, 24], strides = [1, 1]} : vector<16x32xbf16> to vector<16x24xbf16>
    %cst = arith.constant 0.000000e+00 : bf16
    %4 = vector.broadcast %cst : bf16 to vector<1x8xbf16>
    %5 = vector.extract_strided_slice %2 {offsets = [0, 0], sizes = [15, 8], strides = [1, 1]} : vector<16x8xbf16> to vector<15x8xbf16>
    %6 = tpu.concatenate %4, %5 in 0 : vector<1x8xbf16>, vector<15x8xbf16> -> vector<16x8xbf16>
    %7 = vector.extract_strided_slice %2 {offsets = [1, 0], sizes = [15, 8], strides = [1, 1]} : vector<16x8xbf16> to vector<15x8xbf16>
    %8 = tpu.concatenate %7, %4 in 0 : vector<15x8xbf16>, vector<1x8xbf16> -> vector<16x8xbf16>
    %c0_2 = arith.constant 0 : index
    %c0_3 = arith.constant 0 : index
    %9 = vector.load %arg3[%c0_2, %c0_3] : memref<8x8xbf16, #tpu.memory_space<vmem>>, vector<8x8xbf16>
    %cst_4 = arith.constant dense<0.000000e+00> : vector<16x8xf32>
    %10 = tpu.matmul %2, %9, %cst_4 {dimension_numbers = #tpu.dot_dimension_numbers<[1], [0], [0], [1], [0, 0, 1, 1], [], []>} : vector<16x8xbf16>, vector<8x8xbf16>, vector<16x8xf32> -> vector<16x8xf32>
    %c0_5 = arith.constant 0 : index
    %c0_6 = arith.constant 0 : index
    %11 = vector.load %arg2[%c0_5, %c0_6] : memref<8x8xbf16, #tpu.memory_space<vmem>>, vector<8x8xbf16>
    %cst_7 = arith.constant dense<0.000000e+00> : vector<16x8xf32>
    %12 = tpu.matmul %6, %11, %cst_7 {dimension_numbers = #tpu.dot_dimension_numbers<[1], [0], [0], [1], [0, 0, 1, 1], [], []>} : vector<16x8xbf16>, vector<8x8xbf16>, vector<16x8xf32> -> vector<16x8xf32>
    %13 = arith.addf %10, %12 : vector<16x8xf32>
    %c0_8 = arith.constant 0 : index
    %c0_9 = arith.constant 0 : index
    %14 = vector.load %arg4[%c0_8, %c0_9] : memref<8x8xbf16, #tpu.memory_space<vmem>>, vector<8x8xbf16>
    %cst_10 = arith.constant dense<0.000000e+00> : vector<16x8xf32>
    %15 = tpu.matmul %8, %14, %cst_10 {dimension_numbers = #tpu.dot_dimension_numbers<[1], [0], [0], [1], [0, 0, 1, 1], [], []>} : vector<16x8xbf16>, vector<8x8xbf16>, vector<16x8xf32> -> vector<16x8xf32>
    %16 = arith.addf %13, %15 : vector<16x8xf32>
    %17 = arith.truncf %16 : vector<16x8xf32> to vector<16x8xbf16>
    %c0_11 = arith.constant 0 : index
    %c0_12 = arith.constant 0 : index
    %18 = vector.load %arg5[%c0_11, %c0_12] : memref<8x64xbf16, #tpu.memory_space<vmem>>, vector<8x64xbf16>
    %cst_13 = arith.constant dense<0.000000e+00> : vector<16x64xf32>
    %19 = tpu.matmul %17, %18, %cst_13 {dimension_numbers = #tpu.dot_dimension_numbers<[1], [0], [0], [1], [0, 0, 1, 1], [], []>} : vector<16x8xbf16>, vector<8x64xbf16>, vector<16x64xf32> -> vector<16x64xf32>
    %c0_14 = arith.constant 0 : index
    %c0_15 = arith.constant 0 : index
    %20 = vector.load %arg6[%c0_14, %c0_15] : memref<24x64xbf16, #tpu.memory_space<vmem>>, vector<24x64xbf16>
    %cst_16 = arith.constant dense<0.000000e+00> : vector<16x64xf32>
    %21 = tpu.matmul %3, %20, %cst_16 {dimension_numbers = #tpu.dot_dimension_numbers<[1], [0], [0], [1], [0, 0, 1, 1], [], []>} : vector<16x24xbf16>, vector<24x64xbf16>, vector<16x64xf32> -> vector<16x64xf32>
    %22 = arith.addf %19, %21 : vector<16x64xf32>
    %c0_17 = arith.constant 0 : index
    %c0_18 = arith.constant 0 : index
    %23 = vector.load %arg7[%c0_17, %c0_18] : memref<1x64xf32, #tpu.memory_space<vmem>>, vector<1x64xf32>
    %24 = vector.broadcast %23 : vector<1x64xf32> to vector<16x64xf32>
    %25 = arith.addf %22, %24 : vector<16x64xf32>
    %cst_19 = arith.constant 0.000000e+00 : f32
    %26 = vector.broadcast %cst_19 : f32 to vector<16x64xf32>
    %27 = arith.maximumf %25, %26 : vector<16x64xf32>
    %28 = arith.truncf %27 : vector<16x64xf32> to vector<16x64xbf16>
    %c0_20 = arith.constant 0 : index
    %c0_21 = arith.constant 0 : index
    %29 = vector.load %arg8[%c0_20, %c0_21] : memref<64x32xbf16, #tpu.memory_space<vmem>>, vector<64x32xbf16>
    %cst_22 = arith.constant dense<0.000000e+00> : vector<16x32xf32>
    %30 = tpu.matmul %28, %29, %cst_22 {dimension_numbers = #tpu.dot_dimension_numbers<[1], [0], [0], [1], [0, 0, 1, 1], [], []>} : vector<16x64xbf16>, vector<64x32xbf16>, vector<16x32xf32> -> vector<16x32xf32>
    %31 = arith.truncf %30 : vector<16x32xf32> to vector<16x32xbf16>
    %32 = arith.addf %31, %1 : vector<16x32xbf16>
    %c0_23 = arith.constant 0 : index
    %c0_24 = arith.constant 0 : index
    %c0_25 = arith.constant 0 : index
    %33 = vector.load %arg9[%c0_23, %c0_24, %c0_25] : memref<1x16x32xbf16, #tpu.memory_space<vmem>>, vector<1x16x32xbf16>
    %34 = vector.shape_cast %33 : vector<1x16x32xbf16> to vector<16x32xbf16>
    %35 = vector.shape_cast %32 : vector<16x32xbf16> to vector<1x16x32xbf16>
    tpu.vector_store %arg9[%c0_23, %c0_24, %c0_25], %35 {strides = array<i32>} : memref<1x16x32xbf16, #tpu.memory_space<vmem>>, vector<1x16x32xbf16>,
    return
  }
  func.func @transform_0(%arg0: i32) -> (i32, i32, i32) {
    %c0_i32 = arith.constant 0 : i32
    %c0_i32_0 = arith.constant 0 : i32
    %c0_i32_1 = arith.constant 0 : i32
    return %arg0, %c0_i32, %c0_i32_0 : i32, i32, i32
  }
  func.func @transform_1(%arg0: i32) -> (i32, i32) {
    %c0_i32 = arith.constant 0 : i32
    %c0_i32_0 = arith.constant 0 : i32
    %c0_i32_1 = arith.constant 0 : i32
    return %c0_i32, %c0_i32_0 : i32, i32
  }
  func.func @transform_2(%arg0: i32) -> (i32, i32) {
    %c0_i32 = arith.constant 0 : i32
    %c0_i32_0 = arith.constant 0 : i32
    %c0_i32_1 = arith.constant 0 : i32
    return %c0_i32, %c0_i32_0 : i32, i32
  }
  func.func @transform_3(%arg0: i32) -> (i32, i32) {
    %c0_i32 = arith.constant 0 : i32
    %c0_i32_0 = arith.constant 0 : i32
    %c0_i32_1 = arith.constant 0 : i32
    return %c0_i32, %c0_i32_0 : i32, i32
  }
  func.func @transform_4(%arg0: i32) -> (i32, i32) {
    %c0_i32 = arith.constant 0 : i32
    %c0_i32_0 = arith.constant 0 : i32
    %c0_i32_1 = arith.constant 0 : i32
    return %c0_i32, %c0_i32_0 : i32, i32
  }
  func.func @transform_5(%arg0: i32) -> (i32, i32) {
    %c0_i32 = arith.constant 0 : i32
    %c0_i32_0 = arith.constant 0 : i32
    %c0_i32_1 = arith.constant 0 : i32
    return %c0_i32, %c0_i32_0 : i32, i32
  }
  func.func @transform_6(%arg0: i32) -> (i32, i32) {
    %c0_i32 = arith.constant 0 : i32
    %c0_i32_0 = arith.constant 0 : i32
    %c0_i32_1 = arith.constant 0 : i32
    return %c0_i32, %c0_i32_0 : i32, i32
  }
  func.func @transform_7(%arg0: i32) -> (i32, i32) {
    %c0_i32 = arith.constant 0 : i32
    %c0_i32_0 = arith.constant 0 : i32
    %c0_i32_1 = arith.constant 0 : i32
    return %c0_i32, %c0_i32_0 : i32, i32
  }
  func.func @transform_8(%arg0: i32) -> (i32, i32, i32) {
    %c0_i32 = arith.constant 0 : i32
    %c0_i32_0 = arith.constant 0 : i32
    %c0_i32_1 = arith.constant 0 : i32
    return %arg0, %c0_i32, %c0_i32_0 : i32, i32, i32
  }
}

module attributes {stable_mosaic.version = 11 : i64} {
  func.func @_mm_bias_single_kernel(%arg0: i32, %arg1: i32, %arg2: memref<8x128xbf16, #tpu.memory_space<vmem>>, %arg3: memref<128x128xbf16, #tpu.memory_space<vmem>>, %arg4: memref<1x128xf32, #tpu.memory_space<vmem>>, %arg5: memref<8x128xbf16, #tpu.memory_space<vmem>>) attributes {dimension_semantics = [#tpu.dimension_semantics<parallel>, #tpu.dimension_semantics<parallel>], iteration_bounds = array<i64: 1, 1>, scalar_prefetch = 0 : i64, scratch_operands = 0 : i64, tpu.core_type = #tpu.core_type<tc>, window_params = [{transform_indices = @transform_0, window_bounds = array<i64: 8, 128>}, {transform_indices = @transform_1, window_bounds = array<i64: 128, 128>}, {transform_indices = @transform_2, window_bounds = array<i64: 1, 128>}, {transform_indices = @transform_3, window_bounds = array<i64: 8, 128>}]} {
    %c0 = arith.constant 0 : index
    %c0_0 = arith.constant 0 : index
    %0 = vector.load %arg2[%c0, %c0_0] : memref<8x128xbf16, #tpu.memory_space<vmem>>, vector<8x128xbf16>
    %c0_1 = arith.constant 0 : index
    %c0_2 = arith.constant 0 : index
    %1 = vector.load %arg3[%c0_1, %c0_2] : memref<128x128xbf16, #tpu.memory_space<vmem>>, vector<128x128xbf16>
    %cst = arith.constant dense<0.000000e+00> : vector<8x128xf32>
    %2 = tpu.matmul %0, %1, %cst {dimension_numbers = #tpu.dot_dimension_numbers<[1], [0], [0], [1], [0, 0, 1, 1], [], []>} : vector<8x128xbf16>, vector<128x128xbf16>, vector<8x128xf32> -> vector<8x128xf32>
    %c0_3 = arith.constant 0 : index
    %c0_4 = arith.constant 0 : index
    %3 = vector.load %arg4[%c0_3, %c0_4] : memref<1x128xf32, #tpu.memory_space<vmem>>, vector<1x128xf32>
    %4 = vector.broadcast %3 : vector<1x128xf32> to vector<8x128xf32>
    %5 = arith.addf %2, %4 : vector<8x128xf32>
    %6 = arith.truncf %5 : vector<8x128xf32> to vector<8x128xbf16>
    %c0_5 = arith.constant 0 : index
    %c0_6 = arith.constant 0 : index
    %7 = vector.load %arg5[%c0_5, %c0_6] : memref<8x128xbf16, #tpu.memory_space<vmem>>, vector<8x128xbf16>
    tpu.vector_store %arg5[%c0_5, %c0_6], %6 {strides = array<i32>} : memref<8x128xbf16, #tpu.memory_space<vmem>>, vector<8x128xbf16>,
    return
  }
  func.func @transform_0(%arg0: i32, %arg1: i32) -> (i32, i32) {
    %c0_i32 = arith.constant 0 : i32
    %c0_i32_0 = arith.constant 0 : i32
    return %arg0, %c0_i32 : i32, i32
  }
  func.func @transform_1(%arg0: i32, %arg1: i32) -> (i32, i32) {
    %c0_i32 = arith.constant 0 : i32
    %c0_i32_0 = arith.constant 0 : i32
    return %c0_i32, %arg1 : i32, i32
  }
  func.func @transform_2(%arg0: i32, %arg1: i32) -> (i32, i32) {
    %c0_i32 = arith.constant 0 : i32
    %c0_i32_0 = arith.constant 0 : i32
    return %c0_i32, %arg1 : i32, i32
  }
  func.func @transform_3(%arg0: i32, %arg1: i32) -> (i32, i32) {
    %c0_i32 = arith.constant 0 : i32
    return %arg0, %arg1 : i32, i32
  }
}

module attributes {stable_mosaic.version = 11 : i64} {
  func.func @_mlp_block_kernel(%arg0: i32, %arg1: memref<1x4x128xbf16, #tpu.memory_space<vmem>>, %arg2: memref<32x32xbf16, #tpu.memory_space<vmem>>, %arg3: memref<32x32xbf16, #tpu.memory_space<vmem>>, %arg4: memref<32x32xbf16, #tpu.memory_space<vmem>>, %arg5: memref<32x256xbf16, #tpu.memory_space<vmem>>, %arg6: memref<96x256xbf16, #tpu.memory_space<vmem>>, %arg7: memref<1x256xf32, #tpu.memory_space<vmem>>, %arg8: memref<256x128xbf16, #tpu.memory_space<vmem>>, %arg9: memref<1x4x128xbf16, #tpu.memory_space<vmem>>) attributes {dimension_semantics = [#tpu.dimension_semantics<parallel>], iteration_bounds = array<i64: 2>, scalar_prefetch = 0 : i64, scratch_operands = 0 : i64, tpu.core_type = #tpu.core_type<tc>, window_params = [{transform_indices = @transform_0, window_bounds = array<i64: 1, 4, 128>}, {pipeline_mode = #tpu.pipeline_mode<synchronous>, transform_indices = @transform_1, window_bounds = array<i64: 32, 32>}, {pipeline_mode = #tpu.pipeline_mode<synchronous>, transform_indices = @transform_2, window_bounds = array<i64: 32, 32>}, {pipeline_mode = #tpu.pipeline_mode<synchronous>, transform_indices = @transform_3, window_bounds = array<i64: 32, 32>}, {pipeline_mode = #tpu.pipeline_mode<synchronous>, transform_indices = @transform_4, window_bounds = array<i64: 32, 256>}, {pipeline_mode = #tpu.pipeline_mode<synchronous>, transform_indices = @transform_5, window_bounds = array<i64: 96, 256>}, {pipeline_mode = #tpu.pipeline_mode<synchronous>, transform_indices = @transform_6, window_bounds = array<i64: 1, 256>}, {pipeline_mode = #tpu.pipeline_mode<synchronous>, transform_indices = @transform_7, window_bounds = array<i64: 256, 128>}, {transform_indices = @transform_8, window_bounds = array<i64: 1, 4, 128>}]} {
    %c0 = arith.constant 0 : index
    %c0_0 = arith.constant 0 : index
    %c0_1 = arith.constant 0 : index
    %0 = vector.load %arg1[%c0, %c0_0, %c0_1] : memref<1x4x128xbf16, #tpu.memory_space<vmem>>, vector<1x4x128xbf16>
    %1 = vector.shape_cast %0 : vector<1x4x128xbf16> to vector<4x128xbf16>
    %2 = vector.extract_strided_slice %1 {offsets = [0, 0], sizes = [4, 32], strides = [1, 1]} : vector<4x128xbf16> to vector<4x32xbf16>
    %3 = vector.extract_strided_slice %1 {offsets = [0, 32], sizes = [4, 96], strides = [1, 1]} : vector<4x128xbf16> to vector<4x96xbf16>
    %cst = arith.constant 0.000000e+00 : bf16
    %4 = vector.broadcast %cst : bf16 to vector<1x32xbf16>
    %5 = vector.extract_strided_slice %2 {offsets = [0, 0], sizes = [3, 32], strides = [1, 1]} : vector<4x32xbf16> to vector<3x32xbf16>
    %6 = tpu.concatenate %4, %5 in 0 : vector<1x32xbf16>, vector<3x32xbf16> -> vector<4x32xbf16>
    %7 = vector.extract_strided_slice %2 {offsets = [1, 0], sizes = [3, 32], strides = [1, 1]} : vector<4x32xbf16> to vector<3x32xbf16>
    %8 = tpu.concatenate %7, %4 in 0 : vector<3x32xbf16>, vector<1x32xbf16> -> vector<4x32xbf16>
    %c0_2 = arith.constant 0 : index
    %c0_3 = arith.constant 0 : index
    %9 = vector.load %arg3[%c0_2, %c0_3] : memref<32x32xbf16, #tpu.memory_space<vmem>>, vector<32x32xbf16>
    %cst_4 = arith.constant dense<0.000000e+00> : vector<4x32xf32>
    %10 = tpu.matmul %2, %9, %cst_4 {dimension_numbers = #tpu.dot_dimension_numbers<[1], [0], [0], [1], [0, 0, 1, 1], [], []>} : vector<4x32xbf16>, vector<32x32xbf16>, vector<4x32xf32> -> vector<4x32xf32>
    %c0_5 = arith.constant 0 : index
    %c0_6 = arith.constant 0 : index
    %11 = vector.load %arg2[%c0_5, %c0_6] : memref<32x32xbf16, #tpu.memory_space<vmem>>, vector<32x32xbf16>
    %cst_7 = arith.constant dense<0.000000e+00> : vector<4x32xf32>
    %12 = tpu.matmul %6, %11, %cst_7 {dimension_numbers = #tpu.dot_dimension_numbers<[1], [0], [0], [1], [0, 0, 1, 1], [], []>} : vector<4x32xbf16>, vector<32x32xbf16>, vector<4x32xf32> -> vector<4x32xf32>
    %13 = arith.addf %10, %12 : vector<4x32xf32>
    %c0_8 = arith.constant 0 : index
    %c0_9 = arith.constant 0 : index
    %14 = vector.load %arg4[%c0_8, %c0_9] : memref<32x32xbf16, #tpu.memory_space<vmem>>, vector<32x32xbf16>
    %cst_10 = arith.constant dense<0.000000e+00> : vector<4x32xf32>
    %15 = tpu.matmul %8, %14, %cst_10 {dimension_numbers = #tpu.dot_dimension_numbers<[1], [0], [0], [1], [0, 0, 1, 1], [], []>} : vector<4x32xbf16>, vector<32x32xbf16>, vector<4x32xf32> -> vector<4x32xf32>
    %16 = arith.addf %13, %15 : vector<4x32xf32>
    %17 = arith.truncf %16 : vector<4x32xf32> to vector<4x32xbf16>
    %c0_11 = arith.constant 0 : index
    %c0_12 = arith.constant 0 : index
    %18 = vector.load %arg5[%c0_11, %c0_12] : memref<32x256xbf16, #tpu.memory_space<vmem>>, vector<32x256xbf16>
    %cst_13 = arith.constant dense<0.000000e+00> : vector<4x256xf32>
    %19 = tpu.matmul %17, %18, %cst_13 {dimension_numbers = #tpu.dot_dimension_numbers<[1], [0], [0], [1], [0, 0, 1, 1], [], []>} : vector<4x32xbf16>, vector<32x256xbf16>, vector<4x256xf32> -> vector<4x256xf32>
    %c0_14 = arith.constant 0 : index
    %c0_15 = arith.constant 0 : index
    %20 = vector.load %arg6[%c0_14, %c0_15] : memref<96x256xbf16, #tpu.memory_space<vmem>>, vector<96x256xbf16>
    %cst_16 = arith.constant dense<0.000000e+00> : vector<4x256xf32>
    %21 = tpu.matmul %3, %20, %cst_16 {dimension_numbers = #tpu.dot_dimension_numbers<[1], [0], [0], [1], [0, 0, 1, 1], [], []>} : vector<4x96xbf16>, vector<96x256xbf16>, vector<4x256xf32> -> vector<4x256xf32>
    %22 = arith.addf %19, %21 : vector<4x256xf32>
    %c0_17 = arith.constant 0 : index
    %c0_18 = arith.constant 0 : index
    %23 = vector.load %arg7[%c0_17, %c0_18] : memref<1x256xf32, #tpu.memory_space<vmem>>, vector<1x256xf32>
    %24 = vector.broadcast %23 : vector<1x256xf32> to vector<4x256xf32>
    %25 = arith.addf %22, %24 : vector<4x256xf32>
    %cst_19 = arith.constant 0.000000e+00 : f32
    %26 = vector.broadcast %cst_19 : f32 to vector<4x256xf32>
    %27 = arith.maximumf %25, %26 : vector<4x256xf32>
    %28 = arith.truncf %27 : vector<4x256xf32> to vector<4x256xbf16>
    %c0_20 = arith.constant 0 : index
    %c0_21 = arith.constant 0 : index
    %29 = vector.load %arg8[%c0_20, %c0_21] : memref<256x128xbf16, #tpu.memory_space<vmem>>, vector<256x128xbf16>
    %cst_22 = arith.constant dense<0.000000e+00> : vector<4x128xf32>
    %30 = tpu.matmul %28, %29, %cst_22 {dimension_numbers = #tpu.dot_dimension_numbers<[1], [0], [0], [1], [0, 0, 1, 1], [], []>} : vector<4x256xbf16>, vector<256x128xbf16>, vector<4x128xf32> -> vector<4x128xf32>
    %31 = arith.truncf %30 : vector<4x128xf32> to vector<4x128xbf16>
    %32 = arith.addf %31, %1 : vector<4x128xbf16>
    %c0_23 = arith.constant 0 : index
    %c0_24 = arith.constant 0 : index
    %c0_25 = arith.constant 0 : index
    %33 = vector.load %arg9[%c0_23, %c0_24, %c0_25] : memref<1x4x128xbf16, #tpu.memory_space<vmem>>, vector<1x4x128xbf16>
    %34 = vector.shape_cast %33 : vector<1x4x128xbf16> to vector<4x128xbf16>
    %35 = vector.shape_cast %32 : vector<4x128xbf16> to vector<1x4x128xbf16>
    tpu.vector_store %arg9[%c0_23, %c0_24, %c0_25], %35 {strides = array<i32>} : memref<1x4x128xbf16, #tpu.memory_space<vmem>>, vector<1x4x128xbf16>,
    return
  }
  func.func @transform_0(%arg0: i32) -> (i32, i32, i32) {
    %c0_i32 = arith.constant 0 : i32
    %c0_i32_0 = arith.constant 0 : i32
    %c0_i32_1 = arith.constant 0 : i32
    return %arg0, %c0_i32, %c0_i32_0 : i32, i32, i32
  }
  func.func @transform_1(%arg0: i32) -> (i32, i32) {
    %c0_i32 = arith.constant 0 : i32
    %c0_i32_0 = arith.constant 0 : i32
    %c0_i32_1 = arith.constant 0 : i32
    return %c0_i32, %c0_i32_0 : i32, i32
  }
  func.func @transform_2(%arg0: i32) -> (i32, i32) {
    %c0_i32 = arith.constant 0 : i32
    %c0_i32_0 = arith.constant 0 : i32
    %c0_i32_1 = arith.constant 0 : i32
    return %c0_i32, %c0_i32_0 : i32, i32
  }
  func.func @transform_3(%arg0: i32) -> (i32, i32) {
    %c0_i32 = arith.constant 0 : i32
    %c0_i32_0 = arith.constant 0 : i32
    %c0_i32_1 = arith.constant 0 : i32
    return %c0_i32, %c0_i32_0 : i32, i32
  }
  func.func @transform_4(%arg0: i32) -> (i32, i32) {
    %c0_i32 = arith.constant 0 : i32
    %c0_i32_0 = arith.constant 0 : i32
    %c0_i32_1 = arith.constant 0 : i32
    return %c0_i32, %c0_i32_0 : i32, i32
  }
  func.func @transform_5(%arg0: i32) -> (i32, i32) {
    %c0_i32 = arith.constant 0 : i32
    %c0_i32_0 = arith.constant 0 : i32
    %c0_i32_1 = arith.constant 0 : i32
    return %c0_i32, %c0_i32_0 : i32, i32
  }
  func.func @transform_6(%arg0: i32) -> (i32, i32) {
    %c0_i32 = arith.constant 0 : i32
    %c0_i32_0 = arith.constant 0 : i32
    %c0_i32_1 = arith.constant 0 : i32
    return %c0_i32, %c0_i32_0 : i32, i32
  }
  func.func @transform_7(%arg0: i32) -> (i32, i32) {
    %c0_i32 = arith.constant 0 : i32
    %c0_i32_0 = arith.constant 0 : i32
    %c0_i32_1 = arith.constant 0 : i32
    return %c0_i32, %c0_i32_0 : i32, i32
  }
  func.func @transform_8(%arg0: i32) -> (i32, i32, i32) {
    %c0_i32 = arith.constant 0 : i32
    %c0_i32_0 = arith.constant 0 : i32
    %c0_i32_1 = arith.constant 0 : i32
    return %arg0, %c0_i32, %c0_i32_0 : i32, i32, i32
  }
}

module attributes {stable_mosaic.version = 11 : i64} {
  func.func @_mm_bias_single_kernel(%arg0: i32, %arg1: i32, %arg2: memref<4x256xbf16, #tpu.memory_space<vmem>>, %arg3: memref<256x256xbf16, #tpu.memory_space<vmem>>, %arg4: memref<1x256xf32, #tpu.memory_space<vmem>>, %arg5: memref<4x256xbf16, #tpu.memory_space<vmem>>) attributes {dimension_semantics = [#tpu.dimension_semantics<parallel>, #tpu.dimension_semantics<parallel>], iteration_bounds = array<i64: 1, 1>, scalar_prefetch = 0 : i64, scratch_operands = 0 : i64, tpu.core_type = #tpu.core_type<tc>, window_params = [{transform_indices = @transform_0, window_bounds = array<i64: 4, 256>}, {transform_indices = @transform_1, window_bounds = array<i64: 256, 256>}, {transform_indices = @transform_2, window_bounds = array<i64: 1, 256>}, {transform_indices = @transform_3, window_bounds = array<i64: 4, 256>}]} {
    %c0 = arith.constant 0 : index
    %c0_0 = arith.constant 0 : index
    %0 = vector.load %arg2[%c0, %c0_0] : memref<4x256xbf16, #tpu.memory_space<vmem>>, vector<4x256xbf16>
    %c0_1 = arith.constant 0 : index
    %c0_2 = arith.constant 0 : index
    %1 = vector.load %arg3[%c0_1, %c0_2] : memref<256x256xbf16, #tpu.memory_space<vmem>>, vector<256x256xbf16>
    %cst = arith.constant dense<0.000000e+00> : vector<4x256xf32>
    %2 = tpu.matmul %0, %1, %cst {dimension_numbers = #tpu.dot_dimension_numbers<[1], [0], [0], [1], [0, 0, 1, 1], [], []>} : vector<4x256xbf16>, vector<256x256xbf16>, vector<4x256xf32> -> vector<4x256xf32>
    %c0_3 = arith.constant 0 : index
    %c0_4 = arith.constant 0 : index
    %3 = vector.load %arg4[%c0_3, %c0_4] : memref<1x256xf32, #tpu.memory_space<vmem>>, vector<1x256xf32>
    %4 = vector.broadcast %3 : vector<1x256xf32> to vector<4x256xf32>
    %5 = arith.addf %2, %4 : vector<4x256xf32>
    %6 = arith.truncf %5 : vector<4x256xf32> to vector<4x256xbf16>
    %c0_5 = arith.constant 0 : index
    %c0_6 = arith.constant 0 : index
    %7 = vector.load %arg5[%c0_5, %c0_6] : memref<4x256xbf16, #tpu.memory_space<vmem>>, vector<4x256xbf16>
    tpu.vector_store %arg5[%c0_5, %c0_6], %6 {strides = array<i32>} : memref<4x256xbf16, #tpu.memory_space<vmem>>, vector<4x256xbf16>,
    return
  }
  func.func @transform_0(%arg0: i32, %arg1: i32) -> (i32, i32) {
    %c0_i32 = arith.constant 0 : i32
    %c0_i32_0 = arith.constant 0 : i32
    return %arg0, %c0_i32 : i32, i32
  }
  func.func @transform_1(%arg0: i32, %arg1: i32) -> (i32, i32) {
    %c0_i32 = arith.constant 0 : i32
    %c0_i32_0 = arith.constant 0 : i32
    return %c0_i32, %arg1 : i32, i32
  }
  func.func @transform_2(%arg0: i32, %arg1: i32) -> (i32, i32) {
    %c0_i32 = arith.constant 0 : i32
    %c0_i32_0 = arith.constant 0 : i32
    return %c0_i32, %arg1 : i32, i32
  }
  func.func @transform_3(%arg0: i32, %arg1: i32) -> (i32, i32) {
    %c0_i32 = arith.constant 0 : i32
    return %arg0, %arg1 : i32, i32
  }
}

module attributes {stable_mosaic.version = 11 : i64} {
  func.func @_mlp_block_kernel(%arg0: i32, %arg1: memref<1x2x256xbf16, #tpu.memory_space<vmem>>, %arg2: memref<64x64xbf16, #tpu.memory_space<vmem>>, %arg3: memref<64x64xbf16, #tpu.memory_space<vmem>>, %arg4: memref<64x64xbf16, #tpu.memory_space<vmem>>, %arg5: memref<64x512xbf16, #tpu.memory_space<vmem>>, %arg6: memref<192x512xbf16, #tpu.memory_space<vmem>>, %arg7: memref<1x512xf32, #tpu.memory_space<vmem>>, %arg8: memref<512x256xbf16, #tpu.memory_space<vmem>>, %arg9: memref<1x2x256xbf16, #tpu.memory_space<vmem>>) attributes {dimension_semantics = [#tpu.dimension_semantics<parallel>], iteration_bounds = array<i64: 2>, scalar_prefetch = 0 : i64, scratch_operands = 0 : i64, tpu.core_type = #tpu.core_type<tc>, window_params = [{transform_indices = @transform_0, window_bounds = array<i64: 1, 2, 256>}, {pipeline_mode = #tpu.pipeline_mode<synchronous>, transform_indices = @transform_1, window_bounds = array<i64: 64, 64>}, {pipeline_mode = #tpu.pipeline_mode<synchronous>, transform_indices = @transform_2, window_bounds = array<i64: 64, 64>}, {pipeline_mode = #tpu.pipeline_mode<synchronous>, transform_indices = @transform_3, window_bounds = array<i64: 64, 64>}, {pipeline_mode = #tpu.pipeline_mode<synchronous>, transform_indices = @transform_4, window_bounds = array<i64: 64, 512>}, {pipeline_mode = #tpu.pipeline_mode<synchronous>, transform_indices = @transform_5, window_bounds = array<i64: 192, 512>}, {pipeline_mode = #tpu.pipeline_mode<synchronous>, transform_indices = @transform_6, window_bounds = array<i64: 1, 512>}, {pipeline_mode = #tpu.pipeline_mode<synchronous>, transform_indices = @transform_7, window_bounds = array<i64: 512, 256>}, {transform_indices = @transform_8, window_bounds = array<i64: 1, 2, 256>}]} {
    %c0 = arith.constant 0 : index
    %c0_0 = arith.constant 0 : index
    %c0_1 = arith.constant 0 : index
    %0 = vector.load %arg1[%c0, %c0_0, %c0_1] : memref<1x2x256xbf16, #tpu.memory_space<vmem>>, vector<1x2x256xbf16>
    %1 = vector.shape_cast %0 : vector<1x2x256xbf16> to vector<2x256xbf16>
    %2 = vector.extract_strided_slice %1 {offsets = [0, 0], sizes = [2, 64], strides = [1, 1]} : vector<2x256xbf16> to vector<2x64xbf16>
    %3 = vector.extract_strided_slice %1 {offsets = [0, 64], sizes = [2, 192], strides = [1, 1]} : vector<2x256xbf16> to vector<2x192xbf16>
    %cst = arith.constant 0.000000e+00 : bf16
    %4 = vector.broadcast %cst : bf16 to vector<1x64xbf16>
    %5 = vector.extract_strided_slice %2 {offsets = [0, 0], sizes = [1, 64], strides = [1, 1]} : vector<2x64xbf16> to vector<1x64xbf16>
    %6 = tpu.concatenate %4, %5 in 0 : vector<1x64xbf16>, vector<1x64xbf16> -> vector<2x64xbf16>
    %7 = vector.extract_strided_slice %2 {offsets = [1, 0], sizes = [1, 64], strides = [1, 1]} : vector<2x64xbf16> to vector<1x64xbf16>
    %8 = tpu.concatenate %7, %4 in 0 : vector<1x64xbf16>, vector<1x64xbf16> -> vector<2x64xbf16>
    %c0_2 = arith.constant 0 : index
    %c0_3 = arith.constant 0 : index
    %9 = vector.load %arg3[%c0_2, %c0_3] : memref<64x64xbf16, #tpu.memory_space<vmem>>, vector<64x64xbf16>
    %cst_4 = arith.constant dense<0.000000e+00> : vector<2x64xf32>
    %10 = tpu.matmul %2, %9, %cst_4 {dimension_numbers = #tpu.dot_dimension_numbers<[1], [0], [0], [1], [0, 0, 1, 1], [], []>} : vector<2x64xbf16>, vector<64x64xbf16>, vector<2x64xf32> -> vector<2x64xf32>
    %c0_5 = arith.constant 0 : index
    %c0_6 = arith.constant 0 : index
    %11 = vector.load %arg2[%c0_5, %c0_6] : memref<64x64xbf16, #tpu.memory_space<vmem>>, vector<64x64xbf16>
    %cst_7 = arith.constant dense<0.000000e+00> : vector<2x64xf32>
    %12 = tpu.matmul %6, %11, %cst_7 {dimension_numbers = #tpu.dot_dimension_numbers<[1], [0], [0], [1], [0, 0, 1, 1], [], []>} : vector<2x64xbf16>, vector<64x64xbf16>, vector<2x64xf32> -> vector<2x64xf32>
    %13 = arith.addf %10, %12 : vector<2x64xf32>
    %c0_8 = arith.constant 0 : index
    %c0_9 = arith.constant 0 : index
    %14 = vector.load %arg4[%c0_8, %c0_9] : memref<64x64xbf16, #tpu.memory_space<vmem>>, vector<64x64xbf16>
    %cst_10 = arith.constant dense<0.000000e+00> : vector<2x64xf32>
    %15 = tpu.matmul %8, %14, %cst_10 {dimension_numbers = #tpu.dot_dimension_numbers<[1], [0], [0], [1], [0, 0, 1, 1], [], []>} : vector<2x64xbf16>, vector<64x64xbf16>, vector<2x64xf32> -> vector<2x64xf32>
    %16 = arith.addf %13, %15 : vector<2x64xf32>
    %17 = arith.truncf %16 : vector<2x64xf32> to vector<2x64xbf16>
    %c0_11 = arith.constant 0 : index
    %c0_12 = arith.constant 0 : index
    %18 = vector.load %arg5[%c0_11, %c0_12] : memref<64x512xbf16, #tpu.memory_space<vmem>>, vector<64x512xbf16>
    %cst_13 = arith.constant dense<0.000000e+00> : vector<2x512xf32>
    %19 = tpu.matmul %17, %18, %cst_13 {dimension_numbers = #tpu.dot_dimension_numbers<[1], [0], [0], [1], [0, 0, 1, 1], [], []>} : vector<2x64xbf16>, vector<64x512xbf16>, vector<2x512xf32> -> vector<2x512xf32>
    %c0_14 = arith.constant 0 : index
    %c0_15 = arith.constant 0 : index
    %20 = vector.load %arg6[%c0_14, %c0_15] : memref<192x512xbf16, #tpu.memory_space<vmem>>, vector<192x512xbf16>
    %cst_16 = arith.constant dense<0.000000e+00> : vector<2x512xf32>
    %21 = tpu.matmul %3, %20, %cst_16 {dimension_numbers = #tpu.dot_dimension_numbers<[1], [0], [0], [1], [0, 0, 1, 1], [], []>} : vector<2x192xbf16>, vector<192x512xbf16>, vector<2x512xf32> -> vector<2x512xf32>
    %22 = arith.addf %19, %21 : vector<2x512xf32>
    %c0_17 = arith.constant 0 : index
    %c0_18 = arith.constant 0 : index
    %23 = vector.load %arg7[%c0_17, %c0_18] : memref<1x512xf32, #tpu.memory_space<vmem>>, vector<1x512xf32>
    %24 = vector.broadcast %23 : vector<1x512xf32> to vector<2x512xf32>
    %25 = arith.addf %22, %24 : vector<2x512xf32>
    %cst_19 = arith.constant 0.000000e+00 : f32
    %26 = vector.broadcast %cst_19 : f32 to vector<2x512xf32>
    %27 = arith.maximumf %25, %26 : vector<2x512xf32>
    %28 = arith.truncf %27 : vector<2x512xf32> to vector<2x512xbf16>
    %c0_20 = arith.constant 0 : index
    %c0_21 = arith.constant 0 : index
    %29 = vector.load %arg8[%c0_20, %c0_21] : memref<512x256xbf16, #tpu.memory_space<vmem>>, vector<512x256xbf16>
    %cst_22 = arith.constant dense<0.000000e+00> : vector<2x256xf32>
    %30 = tpu.matmul %28, %29, %cst_22 {dimension_numbers = #tpu.dot_dimension_numbers<[1], [0], [0], [1], [0, 0, 1, 1], [], []>} : vector<2x512xbf16>, vector<512x256xbf16>, vector<2x256xf32> -> vector<2x256xf32>
    %31 = arith.truncf %30 : vector<2x256xf32> to vector<2x256xbf16>
    %32 = arith.addf %31, %1 : vector<2x256xbf16>
    %c0_23 = arith.constant 0 : index
    %c0_24 = arith.constant 0 : index
    %c0_25 = arith.constant 0 : index
    %33 = vector.load %arg9[%c0_23, %c0_24, %c0_25] : memref<1x2x256xbf16, #tpu.memory_space<vmem>>, vector<1x2x256xbf16>
    %34 = vector.shape_cast %33 : vector<1x2x256xbf16> to vector<2x256xbf16>
    %35 = vector.shape_cast %32 : vector<2x256xbf16> to vector<1x2x256xbf16>
    tpu.vector_store %arg9[%c0_23, %c0_24, %c0_25], %35 {strides = array<i32>} : memref<1x2x256xbf16, #tpu.memory_space<vmem>>, vector<1x2x256xbf16>,
    return
  }
  func.func @transform_0(%arg0: i32) -> (i32, i32, i32) {
    %c0_i32 = arith.constant 0 : i32
    %c0_i32_0 = arith.constant 0 : i32
    %c0_i32_1 = arith.constant 0 : i32
    return %arg0, %c0_i32, %c0_i32_0 : i32, i32, i32
  }
  func.func @transform_1(%arg0: i32) -> (i32, i32) {
    %c0_i32 = arith.constant 0 : i32
    %c0_i32_0 = arith.constant 0 : i32
    %c0_i32_1 = arith.constant 0 : i32
    return %c0_i32, %c0_i32_0 : i32, i32
  }
  func.func @transform_2(%arg0: i32) -> (i32, i32) {
    %c0_i32 = arith.constant 0 : i32
    %c0_i32_0 = arith.constant 0 : i32
    %c0_i32_1 = arith.constant 0 : i32
    return %c0_i32, %c0_i32_0 : i32, i32
  }
  func.func @transform_3(%arg0: i32) -> (i32, i32) {
    %c0_i32 = arith.constant 0 : i32
    %c0_i32_0 = arith.constant 0 : i32
    %c0_i32_1 = arith.constant 0 : i32
    return %c0_i32, %c0_i32_0 : i32, i32
  }
  func.func @transform_4(%arg0: i32) -> (i32, i32) {
    %c0_i32 = arith.constant 0 : i32
    %c0_i32_0 = arith.constant 0 : i32
    %c0_i32_1 = arith.constant 0 : i32
    return %c0_i32, %c0_i32_0 : i32, i32
  }
  func.func @transform_5(%arg0: i32) -> (i32, i32) {
    %c0_i32 = arith.constant 0 : i32
    %c0_i32_0 = arith.constant 0 : i32
    %c0_i32_1 = arith.constant 0 : i32
    return %c0_i32, %c0_i32_0 : i32, i32
  }
  func.func @transform_6(%arg0: i32) -> (i32, i32) {
    %c0_i32 = arith.constant 0 : i32
    %c0_i32_0 = arith.constant 0 : i32
    %c0_i32_1 = arith.constant 0 : i32
    return %c0_i32, %c0_i32_0 : i32, i32
  }
  func.func @transform_7(%arg0: i32) -> (i32, i32) {
    %c0_i32 = arith.constant 0 : i32
    %c0_i32_0 = arith.constant 0 : i32
    %c0_i32_1 = arith.constant 0 : i32
    return %c0_i32, %c0_i32_0 : i32, i32
  }
  func.func @transform_8(%arg0: i32) -> (i32, i32, i32) {
    %c0_i32 = arith.constant 0 : i32
    %c0_i32_0 = arith.constant 0 : i32
    %c0_i32_1 = arith.constant 0 : i32
    return %arg0, %c0_i32, %c0_i32_0 : i32, i32, i32
  }
}

module attributes {stable_mosaic.version = 11 : i64} {
  func.func @_head_kernel(%arg0: i32, %arg1: memref<2x2x256xbf16, #tpu.memory_space<vmem>>, %arg2: memref<256x128xbf16, #tpu.memory_space<vmem>>, %arg3: memref<128x10xbf16, #tpu.memory_space<vmem>>, %arg4: memref<1x10xf32, #tpu.memory_space<vmem>>, %arg5: memref<2x10xf32, #tpu.memory_space<vmem>>, %arg6: memref<2x256xf32, #tpu.memory_space<vmem>>) attributes {dimension_semantics = [#tpu.dimension_semantics<arbitrary>], iteration_bounds = array<i64: 1>, scalar_prefetch = 0 : i64, scratch_operands = 1 : i64, tpu.core_type = #tpu.core_type<tc>, window_params = [{transform_indices = @transform_0, window_bounds = array<i64: 2, 2, 256>}, {pipeline_mode = #tpu.pipeline_mode<synchronous>, transform_indices = @transform_1, window_bounds = array<i64: 256, 128>}, {pipeline_mode = #tpu.pipeline_mode<synchronous>, transform_indices = @transform_2, window_bounds = array<i64: 128, 10>}, {pipeline_mode = #tpu.pipeline_mode<synchronous>, transform_indices = @transform_3, window_bounds = array<i64: 1, 10>}, {pipeline_mode = #tpu.pipeline_mode<synchronous>, transform_indices = @transform_4, window_bounds = array<i64: 2, 10>}]} {
    %c0_i32 = arith.constant 0 : i32
    %0 = arith.cmpi eq, %arg0, %c0_i32 : i32
    %1 = arith.extui %0 : i1 to i32
    %c0_i32_0 = arith.constant 0 : i32
    %2 = arith.cmpi ne, %1, %c0_i32_0 : i32
    scf.if %2 {
      %cst_9 = arith.constant 0.000000e+00 : f32
      %12 = vector.broadcast %cst_9 : f32 to vector<2x256xf32>
      %c0_10 = arith.constant 0 : index
      %c0_11 = arith.constant 0 : index
      %13 = vector.load %arg6[%c0_10, %c0_11] : memref<2x256xf32, #tpu.memory_space<vmem>>, vector<2x256xf32>
      tpu.vector_store %arg6[%c0_10, %c0_11], %12 {strides = array<i32>} : memref<2x256xf32, #tpu.memory_space<vmem>>, vector<2x256xf32>,
    } else {
    }
    %c0 = arith.constant 0 : index
    %c0_1 = arith.constant 0 : index
    %3 = vector.load %arg6[%c0, %c0_1] : memref<2x256xf32, #tpu.memory_space<vmem>>, vector<2x256xf32>
    %c0_2 = arith.constant 0 : index
    %c0_3 = arith.constant 0 : index
    %c0_4 = arith.constant 0 : index
    %4 = vector.load %arg1[%c0_2, %c0_3, %c0_4] : memref<2x2x256xbf16, #tpu.memory_space<vmem>>, vector<2x2x256xbf16>
    %5 = arith.extf %4 : vector<2x2x256xbf16> to vector<2x2x256xf32>
    %cst = arith.constant dense<0.000000e+00> : vector<2x256xf32>
    %6 = vector.multi_reduction <add>, %5, %cst [1] : vector<2x2x256xf32> to vector<2x256xf32>
    %7 = arith.addf %3, %6 : vector<2x256xf32>
    %c0_5 = arith.constant 0 : index
    %c0_6 = arith.constant 0 : index
    %8 = vector.load %arg6[%c0_5, %c0_6] : memref<2x256xf32, #tpu.memory_space<vmem>>, vector<2x256xf32>
    tpu.vector_store %arg6[%c0_5, %c0_6], %7 {strides = array<i32>} : memref<2x256xf32, #tpu.memory_space<vmem>>, vector<2x256xf32>,
    %c0_i32_7 = arith.constant 0 : i32
    %9 = arith.cmpi eq, %arg0, %c0_i32_7 : i32
    %10 = arith.extui %9 : i1 to i32
    %c0_i32_8 = arith.constant 0 : i32
    %11 = arith.cmpi ne, %10, %c0_i32_8 : i32
    scf.if %11 {
      %c0_9 = arith.constant 0 : index
      %c0_10 = arith.constant 0 : index
      %12 = vector.load %arg6[%c0_9, %c0_10] : memref<2x256xf32, #tpu.memory_space<vmem>>, vector<2x256xf32>
      %cst_11 = arith.constant 5.000000e-01 : f32
      %13 = vector.broadcast %cst_11 : f32 to vector<2x256xf32>
      %14 = arith.mulf %12, %13 : vector<2x256xf32>
      %15 = arith.truncf %14 : vector<2x256xf32> to vector<2x256xbf16>
      %c0_12 = arith.constant 0 : index
      %c0_13 = arith.constant 0 : index
      %16 = vector.load %arg2[%c0_12, %c0_13] : memref<256x128xbf16, #tpu.memory_space<vmem>>, vector<256x128xbf16>
      %cst_14 = arith.constant dense<0.000000e+00> : vector<2x128xf32>
      %17 = tpu.matmul %15, %16, %cst_14 {dimension_numbers = #tpu.dot_dimension_numbers<[1], [0], [0], [1], [0, 0, 1, 1], [], []>} : vector<2x256xbf16>, vector<256x128xbf16>, vector<2x128xf32> -> vector<2x128xf32>
      %cst_15 = arith.constant 0.000000e+00 : f32
      %18 = vector.broadcast %cst_15 : f32 to vector<2x128xf32>
      %19 = arith.maximumf %17, %18 : vector<2x128xf32>
      %20 = arith.truncf %19 : vector<2x128xf32> to vector<2x128xbf16>
      %c0_16 = arith.constant 0 : index
      %c0_17 = arith.constant 0 : index
      %21 = vector.load %arg3[%c0_16, %c0_17] : memref<128x10xbf16, #tpu.memory_space<vmem>>, vector<128x10xbf16>
      %cst_18 = arith.constant dense<0.000000e+00> : vector<2x10xf32>
      %22 = tpu.matmul %20, %21, %cst_18 {dimension_numbers = #tpu.dot_dimension_numbers<[1], [0], [0], [1], [0, 0, 1, 1], [], []>} : vector<2x128xbf16>, vector<128x10xbf16>, vector<2x10xf32> -> vector<2x10xf32>
      %c0_19 = arith.constant 0 : index
      %c0_20 = arith.constant 0 : index
      %23 = vector.load %arg4[%c0_19, %c0_20] : memref<1x10xf32, #tpu.memory_space<vmem>>, vector<1x10xf32>
      %24 = vector.broadcast %23 : vector<1x10xf32> to vector<2x10xf32>
      %25 = arith.addf %22, %24 : vector<2x10xf32>
      %c0_21 = arith.constant 0 : index
      %c0_22 = arith.constant 0 : index
      %26 = vector.load %arg5[%c0_21, %c0_22] : memref<2x10xf32, #tpu.memory_space<vmem>>, vector<2x10xf32>
      tpu.vector_store %arg5[%c0_21, %c0_22], %25 {strides = array<i32>} : memref<2x10xf32, #tpu.memory_space<vmem>>, vector<2x10xf32>,
    } else {
    }
    return
  }
  func.func @transform_0(%arg0: i32) -> (i32, i32, i32) {
    %c0_i32 = arith.constant 0 : i32
    %c0_i32_0 = arith.constant 0 : i32
    %c0_i32_1 = arith.constant 0 : i32
    return %c0_i32, %arg0, %c0_i32_0 : i32, i32, i32
  }
  func.func @transform_1(%arg0: i32) -> (i32, i32) {
    %c0_i32 = arith.constant 0 : i32
    %c0_i32_0 = arith.constant 0 : i32
    %c0_i32_1 = arith.constant 0 : i32
    return %c0_i32, %c0_i32_0 : i32, i32
  }
  func.func @transform_2(%arg0: i32) -> (i32, i32) {
    %c0_i32 = arith.constant 0 : i32
    %c0_i32_0 = arith.constant 0 : i32
    %c0_i32_1 = arith.constant 0 : i32
    return %c0_i32, %c0_i32_0 : i32, i32
  }
  func.func @transform_3(%arg0: i32) -> (i32, i32) {
    %c0_i32 = arith.constant 0 : i32
    %c0_i32_0 = arith.constant 0 : i32
    %c0_i32_1 = arith.constant 0 : i32
    return %c0_i32, %c0_i32_0 : i32, i32
  }
  func.func @transform_4(%arg0: i32) -> (i32, i32) {
    %c0_i32 = arith.constant 0 : i32
    %c0_i32_0 = arith.constant 0 : i32
    %c0_i32_1 = arith.constant 0 : i32
    return %c0_i32, %c0_i32_0 : i32, i32
  }
}

</mosaic_0001>

<llo_original>
// kernel: fasternet_forward.12
$region0: #{fasternet_forward.12}
  #allocation0 [shape = 'u32[]', space=smem, size = 0x4, offset = 0x4, fixed_abs, tag = 'smem constant byte address 0x4 - core index']
  #allocation1 [shape = 'u32[144,128]{1,0:T(1,128)}', space=vmem, size = 0x12000, scoped, tag = 'internal scratch']
  %s0 = inlined_call_operand.vmem [shape: bf16[2,8,64], index: 0, kind: input, shape index: {}]
  %s1 = inlined_call_operand.hbm [shape: bf16[16,16], index: 1, kind: input, shape index: {}]
  %s2 = inlined_call_operand.hbm [shape: bf16[16,16], index: 2, kind: input, shape index: {}]
  %s3 = inlined_call_operand.hbm [shape: bf16[16,16], index: 3, kind: input, shape index: {}]
  %s4 = inlined_call_operand.hbm [shape: bf16[16,128], index: 4, kind: input, shape index: {}]
  %s5 = inlined_call_operand.hbm [shape: bf16[48,128], index: 5, kind: input, shape index: {}]
  %s6 = inlined_call_operand.hbm [shape: f32[1,128], index: 6, kind: input, shape index: {}]
  %s7 = inlined_call_operand.vmem [shape: bf16[128,64], index: 7, kind: input, shape index: {}]
  %s8 = inlined_call_operand.vmem [shape: bf16[2,8,64], index: 8, kind: output, shape index: {}]
  %s9 = sld [smem:[#allocation0]]
  $region89: #{fasternet_forward.12} parent=0
    _
  %s11 = ssub.s32 1, %s9
  %s12 = scalar_select 0, %s11, %s9
  $region1: #{fasternet_forward.12} parent=0
    #allocation2 [shape = 'u8[4096]{0}', space=vmem, size = 0x1000, scoped, tag = 'input window, operand 1, single buffered']
    #allocation3 [shape = 's32[2]{0}', space=sflag, size = 0x8, scoped, tag = 'scoped memory for fasternet_forward.12']
    #allocation4 [shape = 'u8[4096]{0}', space=vmem, size = 0x1000, scoped, tag = 'input window, operand 2, single buffered']
    #allocation5 [shape = 's32[1]{0}', space=sflag, size = 0x4, scoped, tag = 'scoped memory for fasternet_forward.12']
    #allocation6 [shape = 'u8[4096]{0}', space=vmem, size = 0x1000, scoped, tag = 'input window, operand 3, single buffered']
    #allocation7 [shape = 'u8[4096]{0}', space=vmem, size = 0x1000, scoped, tag = 'input window, operand 4, single buffered']
    #allocation8 [shape = 's32[1]{0}', space=sflag, size = 0x4, scoped, tag = 'scoped memory for fasternet_forward.12']
    #allocation9 [shape = 'u8[12288]{0}', space=vmem, size = 0x3000, scoped, tag = 'input window, operand 5, single buffered']
    #allocation10 [shape = 'u8[512]{0}', space=vmem, size = 0x400, scoped, tag = 'input window, operand 6, single buffered']
    #allocation11 [shape = 's32[1]{0}', space=sflag, size = 0x4, scoped, tag = 'scoped memory for fasternet_forward.12']
    %13 = vsyncpa [#allocation3], 0
    %14 = vsyncpa [#allocation5], 0
    %15 = vsyncpa [#allocation8], 0
    %16 = vsyncpa [#allocation11], 0
    loop: start=0, step=1, limit=4
    $region2: #{fasternet_forward.12} parent=1 // loop_pre_header
      _
    $region3: #{fasternet_forward.12} parent=1 // loop_header
      %s18 = sphi 0, %s22
      %p19 = scmp.ge.s32.totalorder %s18, 4
      %s28 = sphi 0, %s30
      %s31 = sphi 0, %s28
      %s32 = sphi 0, %s31
      %s48 = sphi 0, %s32
      %s52 = sphi 0, %s52
      %s54 = sphi 0, %s52
      %s55 = sphi 0, %s54
      %s69 = sphi 0, %s55
      %s73 = sphi 0, %s73
      %s75 = sphi 0, %s73
      %s76 = sphi 0, %s75
      %s90 = sphi 0, %s76
      %s94 = sphi 0, %s94
      %s96 = sphi 0, %s94
      %s97 = sphi 0, %s96
      %s111 = sphi 0, %s97
      %s115 = sphi 0, %s115
      %s117 = sphi 0, %s115
      %s118 = sphi 0, %s117
      %s132 = sphi 0, %s118
      %s136 = sphi 0, %s136
      %s138 = sphi 0, %s136
      %s139 = sphi 0, %s138
      %s153 = sphi 0, %s139
      %s157 = sphi 0, %s157
      %s159 = sphi 0, %s157
      %s160 = sphi 0, %s159
      %s174 = sphi 0, %s160
      %s178 = sphi 0, %s178
      %s180 = sphi 0, %s178
      %s181 = sphi 0, %s180
      %s195 = sphi 0, %s181
      %s201 = sphi 0, %s203
      %s204 = sphi 0, %s201
      %s205 = sphi 0, %s204
      %s221 = sphi 0, %s205
    $region4: #{fasternet_forward.12} parent=1 // loop_header_branch
      %21 = sbr.rel (%p19) target = $region8
    $region5: #{fasternet_forward.12} parent=1 // loop_body
      %s23 = ssub.s32 %s18, 1
      %s24 = ssub.s32 %s18, 2
      %s25 = sadd.s32 %s18, 1
      %s26 = ssub.s32 %s18, %s25
      %p27 = scmp.eq.s32.totalorder %s26, 0
      %s29 = sadd.s32 %s28, 1
      %s30 = scalar_select %p27, %s28, %s29
      %p33 = pneg %p27
      %p34 = scmp.eq.s32.totalorder %s18, 1
      %p35 = por %p33, %p34
      %p36 = scmp.ne.s32.totalorder %s28, %s31
      %p37 = scmp.eq.s32.totalorder %s18, 0
      %p38 = por %p36, %p37
      %p39 = scmp.ne.s32.totalorder %s28, %s31
      %p40 = scmp.eq.s32.totalorder %s23, 1
      %p41 = por %p39, %p40
      %p42 = scmp.ne.s32.totalorder %s31, %s32
      %p43 = scmp.eq.s32.totalorder %s23, 0
      %p44 = por %p42, %p43
      %p45 = scmp.ne.s32.totalorder %s31, %s32
      %p46 = scmp.eq.s32.totalorder %s24, 1
      %p47 = por %p45, %p46
      %p49 = scmp.ne.s32.totalorder %s32, %s48
      %p50 = scmp.eq.s32.totalorder %s24, 0
      %p51 = por %p49, %p50
      %s53 = sadd.s32 %s52, 1
      %p56 = scmp.eq.s32.totalorder %s18, 1
      %p57 = scmp.ne.s32.totalorder %s52, %s54
      %p58 = scmp.eq.s32.totalorder %s18, 0
      %p59 = por %p57, %p58
      %p60 = scmp.ne.s32.totalorder %s52, %s54
      %p61 = scmp.eq.s32.totalorder %s23, 1
      %p62 = por %p60, %p61
      %p63 = scmp.ne.s32.totalorder %s54, %s55
      %p64 = scmp.eq.s32.totalorder %s23, 0
      %p65 = por %p63, %p64
      %p66 = scmp.ne.s32.totalorder %s54, %s55
      %p67 = scmp.eq.s32.totalorder %s24, 1
      %p68 = por %p66, %p67
      %p70 = scmp.ne.s32.totalorder %s55, %s69
      %p71 = scmp.eq.s32.totalorder %s24, 0
      %p72 = por %p70, %p71
      %s74 = sadd.s32 %s73, 1
      %p77 = scmp.eq.s32.totalorder %s18, 1
      %p78 = scmp.ne.s32.totalorder %s73, %s75
      %p79 = scmp.eq.s32.totalorder %s18, 0
      %p80 = por %p78, %p79
      %p81 = scmp.ne.s32.totalorder %s73, %s75
      %p82 = scmp.eq.s32.totalorder %s23, 1
      %p83 = por %p81, %p82
      %p84 = scmp.ne.s32.totalorder %s75, %s76
      %p85 = scmp.eq.s32.totalorder %s23, 0
      %p86 = por %p84, %p85
      %p87 = scmp.ne.s32.totalorder %s75, %s76
      %p88 = scmp.eq.s32.totalorder %s24, 1
      %p89 = por %p87, %p88
      %p91 = scmp.ne.s32.totalorder %s76, %s90
      %p92 = scmp.eq.s32.totalorder %s24, 0
      %p93 = por %p91, %p92
      %s95 = sadd.s32 %s94, 1
      %p98 = scmp.eq.s32.totalorder %s18, 1
      %p99 = scmp.ne.s32.totalorder %s94, %s96
      %p100 = scmp.eq.s32.totalorder %s18, 0
      %p101 = por %p99, %p100
      %p102 = scmp.ne.s32.totalorder %s94, %s96
      %p103 = scmp.eq.s32.totalorder %s23, 1
      %p104 = por %p102, %p103
      %p105 = scmp.ne.s32.totalorder %s96, %s97
      %p106 = scmp.eq.s32.totalorder %s23, 0
      %p107 = por %p105, %p106
      %p108 = scmp.ne.s32.totalorder %s96, %s97
      %p109 = scmp.eq.s32.totalorder %s24, 1
      %p110 = por %p108, %p109
      %p112 = scmp.ne.s32.totalorder %s97, %s111
      %p113 = scmp.eq.s32.totalorder %s24, 0
      %p114 = por %p112, %p113
      %s116 = sadd.s32 %s115, 1
      %p119 = scmp.eq.s32.totalorder %s18, 1
      %p120 = scmp.ne.s32.totalorder %s115, %s117
      %p121 = scmp.eq.s32.totalorder %s18, 0
      %p122 = por %p120, %p121
      %p123 = scmp.ne.s32.totalorder %s115, %s117
      %p124 = scmp.eq.s32.totalorder %s23, 1
      %p125 = por %p123, %p124
      %p126 = scmp.ne.s32.totalorder %s117, %s118
      %p127 = scmp.eq.s32.totalorder %s23, 0
      %p128 = por %p126, %p127
      %p129 = scmp.ne.s32.totalorder %s117, %s118
      %p130 = scmp.eq.s32.totalorder %s24, 1
      %p131 = por %p129, %p130
      %p133 = scmp.ne.s32.totalorder %s118, %s132
      %p134 = scmp.eq.s32.totalorder %s24, 0
      %p135 = por %p133, %p134
      %s137 = sadd.s32 %s136, 1
      %p140 = scmp.eq.s32.totalorder %s18, 1
      %p141 = scmp.ne.s32.totalorder %s136, %s138
      %p142 = scmp.eq.s32.totalorder %s18, 0
      %p143 = por %p141, %p142
      %p144 = scmp.ne.s32.totalorder %s136, %s138
      %p145 = scmp.eq.s32.totalorder %s23, 1
      %p146 = por %p144, %p145
      %p147 = scmp.ne.s32.totalorder %s138, %s139
      %p148 = scmp.eq.s32.totalorder %s23, 0
      %p149 = por %p147, %p148
      %p150 = scmp.ne.s32.totalorder %s138, %s139
      %p151 = scmp.eq.s32.totalorder %s24, 1
      %p152 = por %p150, %p151
      %p154 = scmp.ne.s32.totalorder %s139, %s153
      %p155 = scmp.eq.s32.totalorder %s24, 0
      %p156 = por %p154, %p155
      %s158 = sadd.s32 %s157, 1
      %p161 = scmp.eq.s32.totalorder %s18, 1
      %p162 = scmp.ne.s32.totalorder %s157, %s159
      %p163 = scmp.eq.s32.totalorder %s18, 0
      %p164 = por %p162, %p163
      %p165 = scmp.ne.s32.totalorder %s157, %s159
      %p166 = scmp.eq.s32.totalorder %s23, 1
      %p167 = por %p165, %p166
      %p168 = scmp.ne.s32.totalorder %s159, %s160
      %p169 = scmp.eq.s32.totalorder %s23, 0
      %p170 = por %p168, %p169
      %p171 = scmp.ne.s32.totalorder %s159, %s160
      %p172 = scmp.eq.s32.totalorder %s24, 1
      %p173 = por %p171, %p172
      %p175 = scmp.ne.s32.totalorder %s160, %s174
      %p176 = scmp.eq.s32.totalorder %s24, 0
      %p177 = por %p175, %p176
      %s179 = sadd.s32 %s178, 1
      %p182 = scmp.eq.s32.totalorder %s18, 1
      %p183 = scmp.ne.s32.totalorder %s178, %s180
      %p184 = scmp.eq.s32.totalorder %s18, 0
      %p185 = por %p183, %p184
      %p186 = scmp.ne.s32.totalorder %s178, %s180
      %p187 = scmp.eq.s32.totalorder %s23, 1
      %p188 = por %p186, %p187
      %p189 = scmp.ne.s32.totalorder %s180, %s181
      %p190 = scmp.eq.s32.totalorder %s23, 0
      %p191 = por %p189, %p190
      %p192 = scmp.ne.s32.totalorder %s180, %s181
      %p193 = scmp.eq.s32.totalorder %s24, 1
      %p194 = por %p192, %p193
      %p196 = scmp.ne.s32.totalorder %s181, %s195
      %p197 = scmp.eq.s32.totalorder %s24, 0
      %p198 = por %p196, %p197
      %s199 = ssub.s32 %s18, %s25
      %p200 = scmp.eq.s32.totalorder %s199, 0
      %s202 = sadd.s32 %s201, 1
      %s203 = scalar_select %p200, %s201, %s202
      %p206 = pneg %p200
      %p207 = scmp.eq.s32.totalorder %s18, 1
      %p208 = por %p206, %p207
      %p209 = scmp.ne.s32.totalorder %s201, %s204
      %p210 = scmp.eq.s32.totalorder %s18, 0
      %p211 = por %p209, %p210
      %p212 = scmp.ne.s32.totalorder %s201, %s204
      %p213 = scmp.eq.s32.totalorder %s23, 1
      %p214 = por %p212, %p213
      %p215 = scmp.ne.s32.totalorder %s204, %s205
      %p216 = scmp.eq.s32.totalorder %s23, 0
      %p217 = por %p215, %p216
      %p218 = scmp.ne.s32.totalorder %s204, %s205
      %p219 = scmp.eq.s32.totalorder %s24, 1
      %p220 = por %p218, %p219
      %p222 = scmp.ne.s32.totalorder %s205, %s221
      %p223 = scmp.eq.s32.totalorder %s24, 0
      %p224 = por %p222, %p223
      %p225 = scmp.le.s32.totalorder 1, %s18
      %p226 = scmp.lt.s32.totalorder %s18, 3
      %p227 = pnand %p225, %p226
      %p228 = pneg %p227
      // Predicated region
      $region9: #{fasternet_forward.12} parent=5 // pred_check
        _
      $region10: #{fasternet_forward.12} parent=5 // pred_check_branch
        %230 = sbr.rel (%p227) target = $region12
      $region11: #{fasternet_forward.12} parent=5 // pred_region
        %s231 = ssub.s32 %s18, 1
        // Predicated region
        $region13: #{fasternet_forward.12} parent=11 // pred_check
          %p232 = pneg %p65
        $region14: #{fasternet_forward.12} parent=11 // pred_check_branch
          %234 = sbr.rel (%p232) target = $region16
        $region15: #{fasternet_forward.12} parent=11 // pred_region
          %s236 = ssub.s32 128, 128
          %237 = vsyncadd [#allocation3], %s236
          %s238 = sshll.u32 [#allocation2], 4
          %s239 = int_to_ptr.vmem [resolvable:$true] %s238
          %244 = dma.hbm_to_vmem [thread:$0]  %s1, 128, %s239, [#allocation3], 64, 64, 4
        $region16: #{fasternet_forward.12} parent=11 // pred_fallthru
          _
        // Predicated region
        $region17: #{fasternet_forward.12} parent=11 // pred_check
          %p245 = pneg %p86
        $region18: #{fasternet_forward.12} parent=11 // pred_check_branch
          %247 = sbr.rel (%p245) target = $region20
        $region19: #{fasternet_forward.12} parent=11 // pred_region
          %s249 = ssub.s32 128, 128
          %250 = vsyncadd [#allocation5], %s249
          %s251 = sshll.u32 [#allocation4], 4
          %s252 = int_to_ptr.vmem [resolvable:$true] %s251
          %257 = dma.hbm_to_vmem [thread:$0]  %s2, 128, %s252, [#allocation5], 64, 64, 4
        $region20: #{fasternet_forward.12} parent=11 // pred_fallthru
          _
        // Predicated region
        $region21: #{fasternet_forward.12} parent=11 // pred_check
          %p258 = pneg %p107
        $region22: #{fasternet_forward.12} parent=11 // pred_check_branch
          %260 = sbr.rel (%p258) target = $region24
        $region23: #{fasternet_forward.12} parent=11 // pred_region
          %s262 = ssub.s32 128, 128
          %263 = vsyncadd [#allocation5], %s262
          %s264 = sshll.u32 [#allocation6], 4
          %s265 = int_to_ptr.vmem [resolvable:$true] %s264
          %270 = dma.hbm_to_vmem [thread:$0]  %s3, 128, %s265, [#allocation5], 64, 64, 4
        $region24: #{fasternet_forward.12} parent=11 // pred_fallthru
          _
        // Predicated region
        $region25: #{fasternet_forward.12} parent=11 // pred_check
          %p271 = pneg %p128
        $region26: #{fasternet_forward.12} parent=11 // pred_check_branch
          %273 = sbr.rel (%p271) target = $region28
        $region27: #{fasternet_forward.12} parent=11 // pred_region
          %s275 = ssub.s32 128, 128
          %276 = vsyncadd [#allocation8], %s275
          %s277 = sshll.u32 [#allocation7], 4
          %s278 = int_to_ptr.vmem [resolvable:$true] %s277
          %283 = dma.hbm_to_vmem [thread:$0]  %s4, 128, %s278, [#allocation8], 64, 64, 4
        $region28: #{fasternet_forward.12} parent=11 // pred_fallthru
          _
        // Predicated region
        $region29: #{fasternet_forward.12} parent=11 // pred_check
          %p284 = pneg %p149
        $region30: #{fasternet_forward.12} parent=11 // pred_check_branch
          %286 = sbr.rel (%p284) target = $region32
        $region31: #{fasternet_forward.12} parent=11 // pred_region
          %s288 = ssub.s32 384, 384
          %289 = vsyncadd [#allocation8], %s288
          %s290 = sshll.u32 [#allocation9], 4
          %s291 = int_to_ptr.vmem [resolvable:$true] %s290
          %296 = dma.hbm_to_vmem [thread:$0]  %s5, 384, %s291, [#allocation8], 64, 64, 4
        $region32: #{fasternet_forward.12} parent=11 // pred_fallthru
          _
        // Predicated region
        $region33: #{fasternet_forward.12} parent=11 // pred_check
          %p297 = pneg %p170
        $region34: #{fasternet_forward.12} parent=11 // pred_check_branch
          %299 = sbr.rel (%p297) target = $region36
        $region35: #{fasternet_forward.12} parent=11 // pred_region
          %s301 = ssub.s32 16, 16
          %302 = vsyncadd [#allocation11], %s301
          %s304 = sshll.u32 [#allocation10], 4
          %s305 = int_to_ptr.vmem [resolvable:$true] %s304
          %307 = dma.hbm_to_vmem [thread:$0]  %s6, 16, %s305, [#allocation11]
        $region36: #{fasternet_forward.12} parent=11 // pred_fallthru
          _
        // Predicated region
        $region37: #{fasternet_forward.12} parent=11 // pred_check
          %p308 = pneg %p191
        $region38: #{fasternet_forward.12} parent=11 // pred_check_branch
          %310 = sbr.rel (%p308) target = $region40
        $region39: #{fasternet_forward.12} parent=11 // pred_region
          _
        $region40: #{fasternet_forward.12} parent=11 // pred_fallthru
          _
      $region12: #{fasternet_forward.12} parent=5 // pred_fallthru
        _
      %p311 = scmp.lt.s32.totalorder %s18, 2
      // Predicated region
      $region41: #{fasternet_forward.12} parent=5 // pred_check
        %p312 = pneg %p311
      $region42: #{fasternet_forward.12} parent=5 // pred_check_branch
        %314 = sbr.rel (%p312) target = $region44
      $region43: #{fasternet_forward.12} parent=5 // pred_region
        // Predicated region
        $region45: #{fasternet_forward.12} parent=43 // pred_check
          %p315 = pneg %p38
        $region46: #{fasternet_forward.12} parent=43 // pred_check_branch
          %317 = sbr.rel (%p315) target = $region48
        $region47: #{fasternet_forward.12} parent=43 // pred_region
          %p318 = scmp.lt.s32.totalorder %s18, 1
          %s319 = scalar_select %p318, %s18, 1
          %s320 = smul.addr %s319, 4
          %s321 = scalar_lea.vmem %s0, %s320
        $region48: #{fasternet_forward.12} parent=43 // pred_fallthru
          _
      $region44: #{fasternet_forward.12} parent=5 // pred_fallthru
        _
      %p322 = scmp.le.s32.totalorder 1, %s18
      %p323 = scmp.lt.s32.totalorder %s18, 3
      %p324 = pnand %p322, %p323
      %p325 = pneg %p324
      // Predicated region
      $region49: #{fasternet_forward.12} parent=5 // pred_check
        _
      $region50: #{fasternet_forward.12} parent=5 // pred_check_branch
        %327 = sbr.rel (%p324) target = $region52
      $region51: #{fasternet_forward.12} parent=5 // pred_region
        %s328 = ssub.s32 %s18, 1
        // Predicated region
        $region53: #{fasternet_forward.12} parent=51 // pred_check
          %p329 = pneg %p65
        $region54: #{fasternet_forward.12} parent=51 // pred_check_branch
          %331 = sbr.rel (%p329) target = $region56
        $region55: #{fasternet_forward.12} parent=51 // pred_region
          %332 = dma.done [#allocation3], 128
        $region56: #{fasternet_forward.12} parent=51 // pred_fallthru
          _
        // Predicated region
        $region57: #{fasternet_forward.12} parent=51 // pred_check
          %p333 = pneg %p86
        $region58: #{fasternet_forward.12} parent=51 // pred_check_branch
          %335 = sbr.rel (%p333) target = $region60
        $region59: #{fasternet_forward.12} parent=51 // pred_region
          %336 = dma.done [#allocation5], 128
        $region60: #{fasternet_forward.12} parent=51 // pred_fallthru
          _
        // Predicated region
        $region61: #{fasternet_forward.12} parent=51 // pred_check
          %p337 = pneg %p107
        $region62: #{fasternet_forward.12} parent=51 // pred_check_branch
          %339 = sbr.rel (%p337) target = $region64
        $region63: #{fasternet_forward.12} parent=51 // pred_region
          %340 = dma.done [#allocation5], 128
        $region64: #{fasternet_forward.12} parent=51 // pred_fallthru
          _
        // Predicated region
        $region65: #{fasternet_forward.12} parent=51 // pred_check
          %p341 = pneg %p128
        $region66: #{fasternet_forward.12} parent=51 // pred_check_branch
          %343 = sbr.rel (%p341) target = $region68
        $region67: #{fasternet_forward.12} parent=51 // pred_region
          %344 = dma.done [#allocation8], 128
        $region68: #{fasternet_forward.12} parent=51 // pred_fallthru
          _
        // Predicated region
        $region69: #{fasternet_forward.12} parent=51 // pred_check
          %p345 = pneg %p149
        $region70: #{fasternet_forward.12} parent=51 // pred_check_branch
          %347 = sbr.rel (%p345) target = $region72
        $region71: #{fasternet_forward.12} parent=51 // pred_region
          %348 = dma.done [#allocation8], 384
        $region72: #{fasternet_forward.12} parent=51 // pred_fallthru
          _
        // Predicated region
        $region73: #{fasternet_forward.12} parent=51 // pred_check
          %p349 = pneg %p170
        $region74: #{fasternet_forward.12} parent=51 // pred_check_branch
          %351 = sbr.rel (%p349) target = $region76
        $region75: #{fasternet_forward.12} parent=51 // pred_region
          %352 = dma.done [#allocation11], 16
        $region76: #{fasternet_forward.12} parent=51 // pred_fallthru
          _
        %p353 = scmp.lt.s32.totalorder %s23, 1
        %s354 = scalar_select %p353, %s23, 1
        %s355 = smul.addr %s354, 4
        %s356 = scalar_lea.vmem %s0, %s355
        %p357 = pneg %p44
        %p358 = pneg %p41
        %p359 = pneg %p65
        %p360 = pneg %p62
        %p361 = pneg %p86
        %p362 = pneg %p83
        %p363 = pneg %p107
        %p364 = pneg %p104
        %p365 = pneg %p128
        %p366 = pneg %p125
        %p367 = pneg %p149
        %p368 = pneg %p146
        %p369 = pneg %p170
        %p370 = pneg %p167
        %p371 = pneg %p191
        %p372 = pneg %p188
        %p373 = pneg %p217
        %p374 = pneg %p214
        %p375 = scmp.lt.s32.totalorder %s23, 1
        %s376 = scalar_select %p375, %s23, 1
        %s377 = smul.addr %s376, 4
        %s378 = scalar_lea.vmem %s8, %s377
        %p379 = scmp.lt.s32.totalorder %s23, 1
        %s380 = scalar_select %p379, %s23, 1
        %s381 = smul.addr %s380, 4
        %s382 = scalar_lea.vmem %s0, %s381
        %p383 = scmp.lt.s32.totalorder %s23, 1
        %s384 = scalar_select %p383, %s23, 1
        %s385 = smul.addr %s384, 4
        %s386 = scalar_lea.vmem %s8, %s385
        %v388 = vld [vmem:[%s382] sm:$0xf]
        %v390 = vunpack.c.l.b16 %v388
        %v391 = vpack.c.b16 %v390, %v390
        %v393 = vshrl.u32 %v391, 16
        %v395 = vrot.slane %v393, 7
        %v396 = vshll.u32 %v391, 16
        %v398 = vor.u32 %v395, %v396
        %vm400 = vcmask 1040384
        %vm401 = vsmask.f32 256
        %vm402 = vmand %vm400, %vm401
        %v403 = vsel %vm402, 0, %v398
        %v404 = vrot.slane %v396, 1
        %v405 = vor.u32 %v393, %v404
        %vm407 = vcmask 1043456
        %vm408 = vsmask.f32 3328
        %vm409 = vmand %vm407, %vm408
        %v410 = vsel %vm409, %v405, 0
        %v411 = vld [vmem:[#allocation4] sm:$0xf]
        %v412 = vld [vmem:[#allocation4 + $0x4] sm:$0xf]
        %v413 = vld [vmem:[#allocation2] sm:$0xf]
        %v414 = vld [vmem:[#allocation2 + $0x4] sm:$0xf]
        %v417 = vunpack.c.l.b16 %v413
        %v418 = vunpack.c.l.b16 %v414
        %v419 = vpack.c.b16 %v418, %v417
        %vm421 = vcmask 130048
        %v423 = vsel %vm421, %v403, 0
        %425 = vmatprep.subr.bf16.mxu0 0
        %426 = vmatpush1.bf16.msra.mxu0 %v419
        %427 = vmatprep.subr.bf16.mxu0 0
        %428 = vmatpush1.bf16.msra.mxu0 0
        %429 = vmatprep.subr.bf16.mxu0 0
        %430 = vmatpush1.bf16.msra.mxu0 0
        %431 = vmatprep.subr.bf16.mxu0 0
        %432 = vmatpush1.bf16.msra.mxu0 0
        %433 = vmatprep.subr.bf16.mxu0 0
        %434 = vmatpush1.bf16.msra.mxu0 0
        %435 = vmatprep.subr.bf16.mxu0 0
        %436 = vmatpush1.bf16.msra.mxu0 0
        %437 = vmatprep.subr.bf16.mxu0 0
        %438 = vmatpush1.bf16.msra.mxu0 0
        %439 = vmatprep.subr.bf16.mxu0 0
        %440 = vmatpush1.bf16.msra.mxu0 0
        %441 = vmatprep.subr.bf16.mxu0 0
        %442 = vmatpush1.bf16.msra.mxu0 0
        %443 = vmatprep.subr.bf16.mxu0 0
        %444 = vmatpush1.bf16.msra.mxu0 0
        %445 = vmatprep.subr.bf16.mxu0 0
        %446 = vmatpush1.bf16.msra.mxu0 0
        %447 = vmatprep.subr.bf16.mxu0 0
        %448 = vmatpush1.bf16.msra.mxu0 0
        %449 = vmatprep.subr.bf16.mxu0 0
        %450 = vmatpush1.bf16.msra.mxu0 0
        %451 = vmatprep.subr.bf16.mxu0 0
        %452 = vmatpush1.bf16.msra.mxu0 0
        %453 = vmatprep.subr.bf16.mxu0 0
        %454 = vmatpush1.bf16.msra.mxu0 0
        %455 = vmatprep.subr.bf16.mxu0 0
        %456 = vmatpush1.bf16.msra.mxu0 0
        %457 = vmatprep.mubr.bf16.mxu0 0
        %458 = vmatmul.mubr.bf16.gmra.mrb[0].mxu0 %v423
        %v459 = vpop.f32.mrb[0].mxu0
        %v460 = vadd.f32 0.0, %v459
        %v461 = vpop.f32.mrb[0].mxu0
        %v462 = vpop.f32.mrb[0].mxu0
        %v463 = vpop.f32.mrb[0].mxu0
        %464 = vdwg.mxu0
        %v467 = vunpack.c.l.b16 %v411
        %v468 = vunpack.c.l.b16 %v412
        %v469 = vpack.c.b16 %v468, %v467
        %v472 = vsel %vm421, %v388, 0
        %474 = vmatprep.subr.bf16.mxu0 0
        %475 = vmatpush1.bf16.msra.mxu0 %v469
        %476 = vmatprep.subr.bf16.mxu0 0
        %477 = vmatpush1.bf16.msra.mxu0 0
        %478 = vmatprep.subr.bf16.mxu0 0
        %479 = vmatpush1.bf16.msra.mxu0 0
        %480 = vmatprep.subr.bf16.mxu0 0
        %481 = vmatpush1.bf16.msra.mxu0 0
        %482 = vmatprep.subr.bf16.mxu0 0
        %483 = vmatpush1.bf16.msra.mxu0 0
        %484 = vmatprep.subr.bf16.mxu0 0
        %485 = vmatpush1.bf16.msra.mxu0 0
        %486 = vmatprep.subr.bf16.mxu0 0
        %487 = vmatpush1.bf16.msra.mxu0 0
        %488 = vmatprep.subr.bf16.mxu0 0
        %489 = vmatpush1.bf16.msra.mxu0 0
        %490 = vmatprep.subr.bf16.mxu0 0
        %491 = vmatpush1.bf16.msra.mxu0 0
        %492 = vmatprep.subr.bf16.mxu0 0
        %493 = vmatpush1.bf16.msra.mxu0 0
        %494 = vmatprep.subr.bf16.mxu0 0
        %495 = vmatpush1.bf16.msra.mxu0 0
        %496 = vmatprep.subr.bf16.mxu0 0
        %497 = vmatpush1.bf16.msra.mxu0 0
        %498 = vmatprep.subr.bf16.mxu0 0
        %499 = vmatpush1.bf16.msra.mxu0 0
        %500 = vmatprep.subr.bf16.mxu0 0
        %501 = vmatpush1.bf16.msra.mxu0 0
        %502 = vmatprep.subr.bf16.mxu0 0
        %503 = vmatpush1.bf16.msra.mxu0 0
        %504 = vmatprep.subr.bf16.mxu0 0
        %505 = vmatpush1.bf16.msra.mxu0 0
        %506 = vmatprep.mubr.bf16.mxu0 0
        %507 = vmatmul.mubr.bf16.gmra.mrb[0].mxu0 %v472
        %v508 = vpop.f32.mrb[0].mxu0
        %v509 = vadd.f32 %v460, %v508
        %v510 = vpop.f32.mrb[0].mxu0
        %v511 = vpop.f32.mrb[0].mxu0
        %v512 = vpop.f32.mrb[0].mxu0
        %513 = vdwg.mxu0
        %v514 = vld [vmem:[#allocation6] sm:$0xf]
        %v515 = vld [vmem:[#allocation6 + $0x4] sm:$0xf]
        %v518 = vunpack.c.l.b16 %v514
        %v519 = vunpack.c.l.b16 %v515
        %v520 = vpack.c.b16 %v519, %v518
        %v523 = vsel %vm421, %v410, 0
        %525 = vmatprep.subr.bf16.mxu0 0
        %526 = vmatpush1.bf16.msra.mxu0 %v520
        %527 = vmatprep.subr.bf16.mxu0 0
        %528 = vmatpush1.bf16.msra.mxu0 0
        %529 = vmatprep.subr.bf16.mxu0 0
        %530 = vmatpush1.bf16.msra.mxu0 0
        %531 = vmatprep.subr.bf16.mxu0 0
        %532 = vmatpush1.bf16.msra.mxu0 0
        %533 = vmatprep.subr.bf16.mxu0 0
        %534 = vmatpush1.bf16.msra.mxu0 0
        %535 = vmatprep.subr.bf16.mxu0 0
        %536 = vmatpush1.bf16.msra.mxu0 0
        %537 = vmatprep.subr.bf16.mxu0 0
        %538 = vmatpush1.bf16.msra.mxu0 0
        %539 = vmatprep.subr.bf16.mxu0 0
        %540 = vmatpush1.bf16.msra.mxu0 0
        %541 = vmatprep.subr.bf16.mxu0 0
        %542 = vmatpush1.bf16.msra.mxu0 0
        %543 = vmatprep.subr.bf16.mxu0 0
        %544 = vmatpush1.bf16.msra.mxu0 0
        %545 = vmatprep.subr.bf16.mxu0 0
        %546 = vmatpush1.bf16.msra.mxu0 0
        %547 = vmatprep.subr.bf16.mxu0 0
        %548 = vmatpush1.bf16.msra.mxu0 0
        %549 = vmatprep.subr.bf16.mxu0 0
        %550 = vmatpush1.bf16.msra.mxu0 0
        %551 = vmatprep.subr.bf16.mxu0 0
        %552 = vmatpush1.bf16.msra.mxu0 0
        %553 = vmatprep.subr.bf16.mxu0 0
        %554 = vmatpush1.bf16.msra.mxu0 0
        %555 = vmatprep.subr.bf16.mxu0 0
        %556 = vmatpush1.bf16.msra.mxu0 0
        %557 = vmatprep.mubr.bf16.mxu0 0
        %558 = vmatmul.mubr.bf16.gmra.mrb[0].mxu0 %v523
        %v559 = vpop.f32.mrb[0].mxu0
        %v560 = vadd.f32 0.0, %v559
        %v561 = vpop.f32.mrb[0].mxu0
        %v562 = vpop.f32.mrb[0].mxu0
        %v563 = vpop.f32.mrb[0].mxu0
        %564 = vdwg.mxu0
        %v565 = vadd.f32 %v509, %v560
        %v566 = vpack.c.bf16 %v565, %v565
        %v567 = vld [vmem:[#allocation7] sm:$0xf]
        %v568 = vld [vmem:[#allocation7 + $0x4] sm:$0xf]
        %v569 = vld [vmem:[#allocation9] sm:$0xf]
        %v570 = vld [vmem:[#allocation9 + $0x4] sm:$0xf]
        %v571 = vld [vmem:[#allocation9 + $0x8] sm:$0xf]
        %v572 = vld [vmem:[#allocation9 + $0xc] sm:$0xf]
        %v573 = vld [vmem:[#allocation9 + $0x10] sm:$0xf]
        %v574 = vld [vmem:[#allocation9 + $0x14] sm:$0xf]
        %575 = vrot.lane.b32.xlu0 %v391, 112
        %v576 = vpop.permute.xlu0 %575
        %v583 = vunpack.c.l.b16 %v569
        %v584 = vunpack.c.l.b16 %v570
        %v585 = vunpack.c.l.b16 %v571
        %v586 = vunpack.c.l.b16 %v572
        %v587 = vunpack.c.l.b16 %v573
        %v588 = vunpack.c.l.b16 %v574
        %v589 = vpack.c.b16 %v584, %v583
        %v590 = vpack.c.b16 %v586, %v585
        %v591 = vpack.c.b16 %v588, %v587
        %vm595 = vcmask 392192
        %v597 = vsel %vm595, %v576, 0
        %599 = vmatprep.subr.bf16.mxu0 0
        %600 = vmatpush1.bf16.msra.mxu0 %v589
        %601 = vmatprep.subr.bf16.mxu0 0
        %602 = vmatpush1.bf16.msra.mxu0 %v590
        %603 = vmatprep.subr.bf16.mxu0 0
        %604 = vmatpush1.bf16.msra.mxu0 %v591
        %605 = vmatprep.subr.bf16.mxu0 0
        %606 = vmatpush1.bf16.msra.mxu0 0
        %607 = vmatprep.subr.bf16.mxu0 0
        %608 = vmatpush1.bf16.msra.mxu0 0
        %609 = vmatprep.subr.bf16.mxu0 0
        %610 = vmatpush1.bf16.msra.mxu0 0
        %611 = vmatprep.subr.bf16.mxu0 0
        %612 = vmatpush1.bf16.msra.mxu0 0
        %613 = vmatprep.subr.bf16.mxu0 0
        %614 = vmatpush1.bf16.msra.mxu0 0
        %615 = vmatprep.subr.bf16.mxu0 0
        %616 = vmatpush1.bf16.msra.mxu0 0
        %617 = vmatprep.subr.bf16.mxu0 0
        %618 = vmatpush1.bf16.msra.mxu0 0
        %619 = vmatprep.subr.bf16.mxu0 0
        %620 = vmatpush1.bf16.msra.mxu0 0
        %621 = vmatprep.subr.bf16.mxu0 0
        %622 = vmatpush1.bf16.msra.mxu0 0
        %623 = vmatprep.subr.bf16.mxu0 0
        %624 = vmatpush1.bf16.msra.mxu0 0
        %625 = vmatprep.subr.bf16.mxu0 0
        %626 = vmatpush1.bf16.msra.mxu0 0
        %627 = vmatprep.subr.bf16.mxu0 0
        %628 = vmatpush1.bf16.msra.mxu0 0
        %629 = vmatprep.subr.bf16.mxu0 0
        %630 = vmatpush1.bf16.msra.mxu0 0
        %631 = vmatprep.mubr.bf16.mxu0 0
        %632 = vmatmul.mubr.bf16.gmra.mrb[0].mxu0 %v597
        %v633 = vpop.f32.mrb[0].mxu0
        %v634 = vadd.f32 0.0, %v633
        %v635 = vpop.f32.mrb[0].mxu0
        %v636 = vpop.f32.mrb[0].mxu0
        %v637 = vpop.f32.mrb[0].mxu0
        %638 = vdwg.mxu0
        %v641 = vunpack.c.l.b16 %v567
        %v642 = vunpack.c.l.b16 %v568
        %v643 = vpack.c.b16 %v642, %v641
        %v646 = vsel %vm421, %v566, 0
        %648 = vmatprep.subr.bf16.mxu0 0
        %649 = vmatpush1.bf16.msra.mxu0 %v643
        %650 = vmatprep.subr.bf16.mxu0 0
        %651 = vmatpush1.bf16.msra.mxu0 0
        %652 = vmatprep.subr.bf16.mxu0 0
        %653 = vmatpush1.bf16.msra.mxu0 0
        %654 = vmatprep.subr.bf16.mxu0 0
        %655 = vmatpush1.bf16.msra.mxu0 0
        %656 = vmatprep.subr.bf16.mxu0 0
        %657 = vmatpush1.bf16.msra.mxu0 0
        %658 = vmatprep.subr.bf16.mxu0 0
        %659 = vmatpush1.bf16.msra.mxu0 0
        %660 = vmatprep.subr.bf16.mxu0 0
        %661 = vmatpush1.bf16.msra.mxu0 0
        %662 = vmatprep.subr.bf16.mxu0 0
        %663 = vmatpush1.bf16.msra.mxu0 0
        %664 = vmatprep.subr.bf16.mxu0 0
        %665 = vmatpush1.bf16.msra.mxu0 0
        %666 = vmatprep.subr.bf16.mxu0 0
        %667 = vmatpush1.bf16.msra.mxu0 0
        %668 = vmatprep.subr.bf16.mxu0 0
        %669 = vmatpush1.bf16.msra.mxu0 0
        %670 = vmatprep.subr.bf16.mxu0 0
        %671 = vmatpush1.bf16.msra.mxu0 0
        %672 = vmatprep.subr.bf16.mxu0 0
        %673 = vmatpush1.bf16.msra.mxu0 0
        %674 = vmatprep.subr.bf16.mxu0 0
        %675 = vmatpush1.bf16.msra.mxu0 0
        %676 = vmatprep.subr.bf16.mxu0 0
        %677 = vmatpush1.bf16.msra.mxu0 0
        %678 = vmatprep.subr.bf16.mxu0 0
        %679 = vmatpush1.bf16.msra.mxu0 0
        %680 = vmatprep.mubr.bf16.mxu0 0
        %681 = vmatmul.mubr.bf16.gmra.mrb[0].mxu0 %v646
        %v682 = vpop.f32.mrb[0].mxu0
        %v683 = vadd.f32 %v634, %v682
        %v684 = vpop.f32.mrb[0].mxu0
        %v685 = vpop.f32.mrb[0].mxu0
        %v686 = vpop.f32.mrb[0].mxu0
        %687 = vdwg.mxu0
        %v688 = vld [vmem:[#allocation10] sm:$0x1]
        %v690 = vlaneseq
        %v691 = vshrl.u32 %v690, 7
        %v692 = vsub.s32 0, %v691
        %v693 = vrot.slane %v688, %v692
        %v695 = vadd.f32 %v683, %v693
        %v696 = vmax.f32 %v695, 0.0
        %v697 = vpack.c.bf16 %v696, %v696
        %v698 = vld [vmem:[%s7] sm:$0xf]
        %v699 = vld [vmem:[%s7 + $0x4] sm:$0xf]
        %v700 = vld [vmem:[%s7 + $0x8] sm:$0xf]
        %v701 = vld [vmem:[%s7 + $0xc] sm:$0xf]
        %v702 = vld [vmem:[%s7 + $0x10] sm:$0xf]
        %v703 = vld [vmem:[%s7 + $0x14] sm:$0xf]
        %v704 = vld [vmem:[%s7 + $0x18] sm:$0xf]
        %v705 = vld [vmem:[%s7 + $0x1c] sm:$0xf]
        %v706 = vld [vmem:[%s7 + $0x20] sm:$0xf]
        %v707 = vld [vmem:[%s7 + $0x24] sm:$0xf]
        %v708 = vld [vmem:[%s7 + $0x28] sm:$0xf]
        %v709 = vld [vmem:[%s7 + $0x2c] sm:$0xf]
        %v710 = vld [vmem:[%s7 + $0x30] sm:$0xf]
        %v711 = vld [vmem:[%s7 + $0x34] sm:$0xf]
        %v712 = vld [vmem:[%s7 + $0x38] sm:$0xf]
        %v713 = vld [vmem:[%s7 + $0x3c] sm:$0xf]
        %v730 = vunpack.c.l.b16 %v698
        %v731 = vunpack.c.l.b16 %v699
        %v732 = vunpack.c.l.b16 %v700
        %v733 = vunpack.c.l.b16 %v701
        %v734 = vunpack.c.l.b16 %v702
        %v735 = vunpack.c.l.b16 %v703
        %v736 = vunpack.c.l.b16 %v704
        %v737 = vunpack.c.l.b16 %v705
        %v738 = vunpack.c.l.b16 %v706
        %v739 = vunpack.c.l.b16 %v707
        %v740 = vunpack.c.l.b16 %v708
        %v741 = vunpack.c.l.b16 %v709
        %v742 = vunpack.c.l.b16 %v710
        %v743 = vunpack.c.l.b16 %v711
        %v744 = vunpack.c.l.b16 %v712
        %v745 = vunpack.c.l.b16 %v713
        %v746 = vpack.c.b16 %v731, %v730
        %v747 = vpack.c.b16 %v733, %v732
        %v748 = vpack.c.b16 %v735, %v734
        %v749 = vpack.c.b16 %v737, %v736
        %v750 = vpack.c.b16 %v739, %v738
        %v751 = vpack.c.b16 %v741, %v740
        %v752 = vpack.c.b16 %v743, %v742
        %v753 = vpack.c.b16 %v745, %v744
        %762 = vmatprep.subr.bf16.mxu0 0
        %763 = vmatpush1.bf16.msra.mxu0 %v746
        %764 = vmatprep.subr.bf16.mxu0 0
        %765 = vmatpush1.bf16.msra.mxu0 %v747
        %766 = vmatprep.subr.bf16.mxu0 0
        %767 = vmatpush1.bf16.msra.mxu0 %v748
        %768 = vmatprep.subr.bf16.mxu0 0
        %769 = vmatpush1.bf16.msra.mxu0 %v749
        %770 = vmatprep.subr.bf16.mxu0 0
        %771 = vmatpush1.bf16.msra.mxu0 %v750
        %772 = vmatprep.subr.bf16.mxu0 0
        %773 = vmatpush1.bf16.msra.mxu0 %v751
        %774 = vmatprep.subr.bf16.mxu0 0
        %775 = vmatpush1.bf16.msra.mxu0 %v752
        %776 = vmatprep.subr.bf16.mxu0 0
        %777 = vmatpush1.bf16.msra.mxu0 %v753
        %778 = vmatprep.subr.bf16.mxu0 0
        %779 = vmatpush1.bf16.msra.mxu0 0
        %780 = vmatprep.subr.bf16.mxu0 0
        %781 = vmatpush1.bf16.msra.mxu0 0
        %782 = vmatprep.subr.bf16.mxu0 0
        %783 = vmatpush1.bf16.msra.mxu0 0
        %784 = vmatprep.subr.bf16.mxu0 0
        %785 = vmatpush1.bf16.msra.mxu0 0
        %786 = vmatprep.subr.bf16.mxu0 0
        %787 = vmatpush1.bf16.msra.mxu0 0
        %788 = vmatprep.subr.bf16.mxu0 0
        %789 = vmatpush1.bf16.msra.mxu0 0
        %790 = vmatprep.subr.bf16.mxu0 0
        %791 = vmatpush1.bf16.msra.mxu0 0
        %792 = vmatprep.subr.bf16.mxu0 0
        %793 = vmatpush1.bf16.msra.mxu0 0
        %794 = vmatprep.mubr.bf16.mxu0 0
        %795 = vmatmul.mubr.bf16.gmra.mrb[0].mxu0 %v697
        %v796 = vpop.f32.mrb[0].mxu0
        %v797 = vadd.f32 0.0, %v796
        %v798 = vpop.f32.mrb[0].mxu0
        %v799 = vpop.f32.mrb[0].mxu0
        %v800 = vpop.f32.mrb[0].mxu0
        %801 = vdwg.mxu0
        %v802 = vpack.c.bf16 %v797, %v797
        %v803 = vadd.bf16 %v802, %v388
        %vm804 = vcmask 519168
        %805 = vst.msk [vmem:[%s386] sm:$0xf] %vm804, %v803
        %p806 = scmp.lt.s32.totalorder %s23, 1
        %s807 = scalar_select %p806, %s23, 1
        %s808 = smul.addr %s807, 4
        %s809 = scalar_lea.vmem %s8, %s808
        // Predicated region
        $region77: #{fasternet_forward.12} parent=51 // pred_check
          %p810 = pneg %p214
        $region78: #{fasternet_forward.12} parent=51 // pred_check_branch
          %812 = sbr.rel (%p810) target = $region80
        $region79: #{fasternet_forward.12} parent=51 // pred_region
          _
        $region80: #{fasternet_forward.12} parent=51 // pred_fallthru
          _
      $region52: #{fasternet_forward.12} parent=5 // pred_fallthru
        _
      %p813 = scmp.le.s32.totalorder 2, %s18
      // Predicated region
      $region81: #{fasternet_forward.12} parent=5 // pred_check
        %p814 = pneg %p813
      $region82: #{fasternet_forward.12} parent=5 // pred_check_branch
        %816 = sbr.rel (%p814) target = $region84
      $region83: #{fasternet_forward.12} parent=5 // pred_region
        %s817 = ssub.s32 %s18, 2
        // Predicated region
        $region85: #{fasternet_forward.12} parent=83 // pred_check
          %p818 = pneg %p220
        $region86: #{fasternet_forward.12} parent=83 // pred_check_branch
          %820 = sbr.rel (%p818) target = $region88
        $region87: #{fasternet_forward.12} parent=83 // pred_region
          %p821 = scmp.lt.s32.totalorder %s24, 1
          %s822 = scalar_select %p821, %s24, 1
          %s823 = smul.addr %s822, 4
          %s824 = scalar_lea.vmem %s8, %s823
        $region88: #{fasternet_forward.12} parent=83 // pred_fallthru
          _
      $region84: #{fasternet_forward.12} parent=5 // pred_fallthru
        _
    $region6: #{fasternet_forward.12} parent=1 // loop_footer
      %s22 = sadd.s32 1, %s18
    $region7: #{fasternet_forward.12} parent=1 // loop_footer_branch
      %17 = sbr.rel target = $region3
    $region8: #{fasternet_forward.12} parent=1 // loop_exit
      _
    %825 = vsyncpa [#allocation3], 1
    %s826 = scalar_lea.sflag [#allocation3], 1
    %827 = vsyncpa %s826, 1
    %828 = vsyncpa [#allocation5], 1
    %829 = vsyncpa [#allocation8], 1
    %830 = vsyncpa [#allocation11], 1

// kernel: fasternet_forward.9
$region0: #{fasternet_forward.9}
  #allocation0 [shape = 'u32[]', space=smem, size = 0x4, offset = 0x4, fixed_abs, tag = 'smem constant byte address 0x4 - core index']
  #allocation1 [shape = 'u32[144,128]{1,0:T(1,128)}', space=vmem, size = 0x12000, scoped, tag = 'internal scratch']
  %s0 = inlined_call_operand.vmem [shape: bf16[32,16], index: 0, kind: input, shape index: {}]
  %s1 = inlined_call_operand.vmem [shape: bf16[16,32], index: 1, kind: input, shape index: {}]
  %s2 = inlined_call_operand.vmem [shape: f32[1,32], index: 2, kind: input, shape index: {}]
  %s3 = inlined_call_operand.vmem [shape: bf16[32,32], index: 3, kind: output, shape index: {}]
  %s4 = sld [smem:[#allocation0]]
  $region22: #{fasternet_forward.9} parent=0
    _
  %s6 = ssub.s32 1, %s4
  %s7 = scalar_select 0, %s6, %s4
  // Predicated region
  $region2: #{fasternet_forward.9} parent=0 // pred_check
    _
  $region3: #{fasternet_forward.9} parent=0 // pred_check_branch
    %9 = sbr.rel (0) target = $region5
  $region4: #{fasternet_forward.9} parent=0 // pred_region
    _
  $region5: #{fasternet_forward.9} parent=0 // pred_fallthru
    _
  // Predicated region
  $region6: #{fasternet_forward.9} parent=0 // pred_check
    _
  $region7: #{fasternet_forward.9} parent=0 // pred_check_branch
    %11 = sbr.rel (0) target = $region9
  $region8: #{fasternet_forward.9} parent=0 // pred_region
    _
  $region9: #{fasternet_forward.9} parent=0 // pred_fallthru
    _
  // Predicated region
  $region10: #{fasternet_forward.9} parent=0 // pred_check
    _
  $region11: #{fasternet_forward.9} parent=0 // pred_check_branch
    %13 = sbr.rel (0) target = $region13
  $region12: #{fasternet_forward.9} parent=0 // pred_region
    _
  $region13: #{fasternet_forward.9} parent=0 // pred_fallthru
    _
  %v15 = vld [vmem:[%s0] sm:$0xf]
  %v16 = vld [vmem:[%s0 + $0x4] sm:$0xf]
  %v17 = vld [vmem:[%s0 + $0x8] sm:$0xf]
  %v18 = vld [vmem:[%s0 + $0xc] sm:$0xf]
  %v19 = vld [vmem:[%s1] sm:$0xf]
  %v20 = vld [vmem:[%s1 + $0x4] sm:$0xf]
  %v21 = vld [vmem:[%s2] sm:$0x1]
  %v23 = vlaneseq
  %v24 = vshrl.u32 %v23, 7
  %v25 = vsub.s32 0, %v24
  %v26 = vrot.slane %v21, %v25
  %v32 = vunpack.c.l.b16 %v15
  %v33 = vunpack.c.l.b16 %v16
  %v34 = vunpack.c.l.b16 %v17
  %v35 = vunpack.c.l.b16 %v18
  %v36 = vpack.c.b16 %v33, %v32
  %v37 = vpack.c.b16 %v35, %v34
  %v40 = vunpack.c.l.b16 %v19
  %v41 = vunpack.c.l.b16 %v20
  %v42 = vpack.c.b16 %v41, %v40
  %vm44 = vcmask 130048
  %v46 = vsel %vm44, %v36, 0
  %v49 = vsel %vm44, %v37, 0
  %51 = vmatprep.subr.bf16.mxu0 0
  %52 = vmatpush1.bf16.msra.mxu0 %v42
  %53 = vmatprep.subr.bf16.mxu0 0
  %54 = vmatpush1.bf16.msra.mxu0 0
  %55 = vmatprep.subr.bf16.mxu0 0
  %56 = vmatpush1.bf16.msra.mxu0 0
  %57 = vmatprep.subr.bf16.mxu0 0
  %58 = vmatpush1.bf16.msra.mxu0 0
  %59 = vmatprep.subr.bf16.mxu0 0
  %60 = vmatpush1.bf16.msra.mxu0 0
  %61 = vmatprep.subr.bf16.mxu0 0
  %62 = vmatpush1.bf16.msra.mxu0 0
  %63 = vmatprep.subr.bf16.mxu0 0
  %64 = vmatpush1.bf16.msra.mxu0 0
  %65 = vmatprep.subr.bf16.mxu0 0
  %66 = vmatpush1.bf16.msra.mxu0 0
  %67 = vmatprep.subr.bf16.mxu0 0
  %68 = vmatpush1.bf16.msra.mxu0 0
  %69 = vmatprep.subr.bf16.mxu0 0
  %70 = vmatpush1.bf16.msra.mxu0 0
  %71 = vmatprep.subr.bf16.mxu0 0
  %72 = vmatpush1.bf16.msra.mxu0 0
  %73 = vmatprep.subr.bf16.mxu0 0
  %74 = vmatpush1.bf16.msra.mxu0 0
  %75 = vmatprep.subr.bf16.mxu0 0
  %76 = vmatpush1.bf16.msra.mxu0 0
  %77 = vmatprep.subr.bf16.mxu0 0
  %78 = vmatpush1.bf16.msra.mxu0 0
  %79 = vmatprep.subr.bf16.mxu0 0
  %80 = vmatpush1.bf16.msra.mxu0 0
  %81 = vmatprep.subr.bf16.mxu0 0
  %82 = vmatpush1.bf16.msra.mxu0 0
  %83 = vmatprep.mubr.bf16.mxu0 0
  %84 = vmatmul.mubr.bf16.gmra.mrb[0].mxu0 %v46
  %v85 = vpop.f32.mrb[0].mxu0
  %v86 = vadd.f32 %v26, %v85
  %v87 = vpop.f32.mrb[0].mxu0
  %v88 = vpop.f32.mrb[0].mxu0
  %v89 = vadd.f32 %v26, %v88
  %v90 = vpop.f32.mrb[0].mxu0
  %91 = vmatprep.mubr.bf16.mxu0 0
  %92 = vmatmul.mubr.bf16.gmra.mrb[0].mxu0 %v49
  %v93 = vpop.f32.mrb[0].mxu0
  %v94 = vadd.f32 %v26, %v93
  %v95 = vpop.f32.mrb[0].mxu0
  %v96 = vpop.f32.mrb[0].mxu0
  %v97 = vadd.f32 %v26, %v96
  %v98 = vpop.f32.mrb[0].mxu0
  %99 = vdwg.mxu0
  %v100 = vpack.c.bf16 %v89, %v86
  %v101 = vpack.c.bf16 %v97, %v94
  %v104 = vunpack.c.l.b16 %v100
  %v105 = vunpack.c.h.b16 %v100
  %v106 = vunpack.c.l.b16 %v101
  %v107 = vunpack.c.h.b16 %v101
  %v108 = vpack.c.b16 %v104, %v104
  %v109 = vpack.c.b16 %v105, %v105
  %v110 = vpack.c.b16 %v106, %v106
  %v111 = vpack.c.b16 %v107, %v107
  %vm116 = vcmask 257024
  %117 = vst.msk [vmem:[%s3] sm:$0xf] %vm116, %v108
  %118 = vst.msk [vmem:[%s3 + $0x4] sm:$0xf] %vm116, %v109
  %119 = vst.msk [vmem:[%s3 + $0x8] sm:$0xf] %vm116, %v110
  %120 = vst.msk [vmem:[%s3 + $0xc] sm:$0xf] %vm116, %v111
  // Predicated region
  $region14: #{fasternet_forward.9} parent=0 // pred_check
    _
  $region15: #{fasternet_forward.9} parent=0 // pred_check_branch
    %122 = sbr.rel (0) target = $region17
  $region16: #{fasternet_forward.9} parent=0 // pred_region
    _
  $region17: #{fasternet_forward.9} parent=0 // pred_fallthru
    _
  // Predicated region
  $region18: #{fasternet_forward.9} parent=0 // pred_check
    _
  $region19: #{fasternet_forward.9} parent=0 // pred_check_branch
    %124 = sbr.rel (0) target = $region21
  $region20: #{fasternet_forward.9} parent=0 // pred_region
    _
  $region21: #{fasternet_forward.9} parent=0 // pred_fallthru
    _

// kernel: fasternet_forward.11
$region0: #{fasternet_forward.11}
  #allocation0 [shape = 'u32[]', space=smem, size = 0x4, offset = 0x4, fixed_abs, tag = 'smem constant byte address 0x4 - core index']
  #allocation1 [shape = 'u32[144,128]{1,0:T(1,128)}', space=vmem, size = 0x12000, scoped, tag = 'internal scratch']
  %s0 = inlined_call_operand.vmem [shape: bf16[16,64], index: 0, kind: input, shape index: {}]
  %s1 = inlined_call_operand.vmem [shape: bf16[64,64], index: 1, kind: input, shape index: {}]
  %s2 = inlined_call_operand.hbm [shape: f32[1,64], index: 2, kind: input, shape index: {}]
  %s3 = inlined_call_operand.vmem [shape: bf16[16,64], index: 3, kind: output, shape index: {}]
  %s4 = sld [smem:[#allocation0]]
  $region26: #{fasternet_forward.11} parent=0
    _
  %s6 = ssub.s32 1, %s4
  %s7 = scalar_select 0, %s6, %s4
  $region1: #{fasternet_forward.11} parent=0
    #allocation2 [shape = 'u8[512]{0}', space=vmem, size = 0x400, scoped, tag = 'input window, operand 2, single buffered']
    #allocation3 [shape = 's32[1]{0}', space=sflag, size = 0x4, scoped, tag = 'scoped memory for fasternet_forward.11']
    %8 = vsyncpa [#allocation3], 0
    // Predicated region
    $region2: #{fasternet_forward.11} parent=1 // pred_check
      _
    $region3: #{fasternet_forward.11} parent=1 // pred_check_branch
      %10 = sbr.rel (0) target = $region5
    $region4: #{fasternet_forward.11} parent=1 // pred_region
      _
    $region5: #{fasternet_forward.11} parent=1 // pred_fallthru
      _
    // Predicated region
    $region6: #{fasternet_forward.11} parent=1 // pred_check
      _
    $region7: #{fasternet_forward.11} parent=1 // pred_check_branch
      %12 = sbr.rel (0) target = $region9
    $region8: #{fasternet_forward.11} parent=1 // pred_region
      _
    $region9: #{fasternet_forward.11} parent=1 // pred_fallthru
      _
    // Predicated region
    $region10: #{fasternet_forward.11} parent=1 // pred_check
      _
    $region11: #{fasternet_forward.11} parent=1 // pred_check_branch
      %14 = sbr.rel (0) target = $region13
    $region12: #{fasternet_forward.11} parent=1 // pred_region
      %s16 = ssub.s32 16, 16
      %17 = vsyncadd [#allocation3], %s16
      %s19 = sshll.u32 [#allocation2], 4
      %s20 = int_to_ptr.vmem [resolvable:$true] %s19
      %22 = dma.hbm_to_vmem [thread:$0]  %s2, 16, %s20, [#allocation3]
    $region13: #{fasternet_forward.11} parent=1 // pred_fallthru
      _
    // Predicated region
    $region14: #{fasternet_forward.11} parent=1 // pred_check
      _
    $region15: #{fasternet_forward.11} parent=1 // pred_check_branch
      %24 = sbr.rel (0) target = $region17
    $region16: #{fasternet_forward.11} parent=1 // pred_region
      %25 = dma.done [#allocation3], 16
    $region17: #{fasternet_forward.11} parent=1 // pred_fallthru
      _
    %v27 = vld [vmem:[%s0] sm:$0xf]
    %v28 = vld [vmem:[%s0 + $0x4] sm:$0xf]
    %v29 = vld [vmem:[%s1] sm:$0xf]
    %v30 = vld [vmem:[%s1 + $0x4] sm:$0xf]
    %v31 = vld [vmem:[%s1 + $0x8] sm:$0xf]
    %v32 = vld [vmem:[%s1 + $0xc] sm:$0xf]
    %v33 = vld [vmem:[%s1 + $0x10] sm:$0xf]
    %v34 = vld [vmem:[%s1 + $0x14] sm:$0xf]
    %v35 = vld [vmem:[%s1 + $0x18] sm:$0xf]
    %v36 = vld [vmem:[%s1 + $0x1c] sm:$0xf]
    %v37 = vld [vmem:[#allocation2] sm:$0x1]
    %v39 = vlaneseq
    %v40 = vshrl.u32 %v39, 7
    %v41 = vsub.s32 0, %v40
    %v42 = vrot.slane %v37, %v41
    %v46 = vunpack.c.l.b16 %v27
    %v47 = vunpack.c.l.b16 %v28
    %v48 = vpack.c.b16 %v47, %v46
    %v57 = vunpack.c.l.b16 %v29
    %v58 = vunpack.c.l.b16 %v30
    %v59 = vunpack.c.l.b16 %v31
    %v60 = vunpack.c.l.b16 %v32
    %v61 = vunpack.c.l.b16 %v33
    %v62 = vunpack.c.l.b16 %v34
    %v63 = vunpack.c.l.b16 %v35
    %v64 = vunpack.c.l.b16 %v36
    %v65 = vpack.c.b16 %v58, %v57
    %v66 = vpack.c.b16 %v60, %v59
    %v67 = vpack.c.b16 %v62, %v61
    %v68 = vpack.c.b16 %v64, %v63
    %vm73 = vcmask 523264
    %v75 = vsel %vm73, %v48, 0
    %77 = vmatprep.subr.bf16.mxu0 0
    %78 = vmatpush1.bf16.msra.mxu0 %v65
    %79 = vmatprep.subr.bf16.mxu0 0
    %80 = vmatpush1.bf16.msra.mxu0 %v66
    %81 = vmatprep.subr.bf16.mxu0 0
    %82 = vmatpush1.bf16.msra.mxu0 %v67
    %83 = vmatprep.subr.bf16.mxu0 0
    %84 = vmatpush1.bf16.msra.mxu0 %v68
    %85 = vmatprep.subr.bf16.mxu0 0
    %86 = vmatpush1.bf16.msra.mxu0 0
    %87 = vmatprep.subr.bf16.mxu0 0
    %88 = vmatpush1.bf16.msra.mxu0 0
    %89 = vmatprep.subr.bf16.mxu0 0
    %90 = vmatpush1.bf16.msra.mxu0 0
    %91 = vmatprep.subr.bf16.mxu0 0
    %92 = vmatpush1.bf16.msra.mxu0 0
    %93 = vmatprep.subr.bf16.mxu0 0
    %94 = vmatpush1.bf16.msra.mxu0 0
    %95 = vmatprep.subr.bf16.mxu0 0
    %96 = vmatpush1.bf16.msra.mxu0 0
    %97 = vmatprep.subr.bf16.mxu0 0
    %98 = vmatpush1.bf16.msra.mxu0 0
    %99 = vmatprep.subr.bf16.mxu0 0
    %100 = vmatpush1.bf16.msra.mxu0 0
    %101 = vmatprep.subr.bf16.mxu0 0
    %102 = vmatpush1.bf16.msra.mxu0 0
    %103 = vmatprep.subr.bf16.mxu0 0
    %104 = vmatpush1.bf16.msra.mxu0 0
    %105 = vmatprep.subr.bf16.mxu0 0
    %106 = vmatpush1.bf16.msra.mxu0 0
    %107 = vmatprep.subr.bf16.mxu0 0
    %108 = vmatpush1.bf16.msra.mxu0 0
    %109 = vmatprep.mubr.bf16.mxu0 0
    %110 = vmatmul.mubr.bf16.gmra.mrb[0].mxu0 %v75
    %v111 = vpop.f32.mrb[0].mxu0
    %v112 = vadd.f32 %v42, %v111
    %v113 = vpop.f32.mrb[0].mxu0
    %v114 = vpop.f32.mrb[0].mxu0
    %v115 = vadd.f32 %v42, %v114
    %v116 = vpop.f32.mrb[0].mxu0
    %117 = vdwg.mxu0
    %v118 = vpack.c.bf16 %v115, %v112
    %v120 = vunpack.c.l.b16 %v118
    %v121 = vunpack.c.h.b16 %v118
    %v122 = vpack.c.b16 %v120, %v120
    %v123 = vpack.c.b16 %v121, %v121
    %vm126 = vcmask 519168
    %127 = vst.msk [vmem:[%s3] sm:$0xf] %vm126, %v122
    %128 = vst.msk [vmem:[%s3 + $0x4] sm:$0xf] %vm126, %v123
    // Predicated region
    $region18: #{fasternet_forward.11} parent=1 // pred_check
      _
    $region19: #{fasternet_forward.11} parent=1 // pred_check_branch
      %130 = sbr.rel (0) target = $region21
    $region20: #{fasternet_forward.11} parent=1 // pred_region
      _
    $region21: #{fasternet_forward.11} parent=1 // pred_fallthru
      _
    // Predicated region
    $region22: #{fasternet_forward.11} parent=1 // pred_check
      _
    $region23: #{fasternet_forward.11} parent=1 // pred_check_branch
      %132 = sbr.rel (0) target = $region25
    $region24: #{fasternet_forward.11} parent=1 // pred_region
      _
    $region25: #{fasternet_forward.11} parent=1 // pred_fallthru
      _
    %133 = vsyncpa [#allocation3], 1

// kernel: fasternet_forward.10
$region0: #{fasternet_forward.10}
  #allocation0 [shape = 'u32[]', space=smem, size = 0x4, offset = 0x4, fixed_abs, tag = 'smem constant byte address 0x4 - core index']
  #allocation1 [shape = 'u32[144,128]{1,0:T(1,128)}', space=vmem, size = 0x12000, scoped, tag = 'internal scratch']
  %s0 = inlined_call_operand.vmem [shape: bf16[2,16,32], index: 0, kind: input, shape index: {}]
  %s1 = inlined_call_operand.hbm [shape: bf16[8,8], index: 1, kind: input, shape index: {}]
  %s2 = inlined_call_operand.hbm [shape: bf16[8,8], index: 2, kind: input, shape index: {}]
  %s3 = inlined_call_operand.hbm [shape: bf16[8,8], index: 3, kind: input, shape index: {}]
  %s4 = inlined_call_operand.hbm [shape: bf16[8,64], index: 4, kind: input, shape index: {}]
  %s5 = inlined_call_operand.hbm [shape: bf16[24,64], index: 5, kind: input, shape index: {}]
  %s6 = inlined_call_operand.hbm [shape: f32[1,64], index: 6, kind: input, shape index: {}]
  %s7 = inlined_call_operand.vmem [shape: bf16[64,32], index: 7, kind: input, shape index: {}]
  %s8 = inlined_call_operand.vmem [shape: bf16[2,16,32], index: 8, kind: output, shape index: {}]
  %s9 = sld [smem:[#allocation0]]
  $region89: #{fasternet_forward.10} parent=0
    _
  %s11 = ssub.s32 1, %s9
  %s12 = scalar_select 0, %s11, %s9
  $region1: #{fasternet_forward.10} parent=0
    #allocation2 [shape = 'u8[2048]{0}', space=vmem, size = 0x800, scoped, tag = 'input window, operand 1, single buffered']
    #allocation3 [shape = 's32[2]{0}', space=sflag, size = 0x8, scoped, tag = 'scoped memory for fasternet_forward.10']
    #allocation4 [shape = 'u8[2048]{0}', space=vmem, size = 0x800, scoped, tag = 'input window, operand 2, single buffered']
    #allocation5 [shape = 's32[1]{0}', space=sflag, size = 0x4, scoped, tag = 'scoped memory for fasternet_forward.10']
    #allocation6 [shape = 'u8[2048]{0}', space=vmem, size = 0x800, scoped, tag = 'input window, operand 3, single buffered']
    #allocation7 [shape = 'u8[2048]{0}', space=vmem, size = 0x800, scoped, tag = 'input window, operand 4, single buffered']
    #allocation8 [shape = 's32[1]{0}', space=sflag, size = 0x4, scoped, tag = 'scoped memory for fasternet_forward.10']
    #allocation9 [shape = 'u8[6144]{0}', space=vmem, size = 0x1800, scoped, tag = 'input window, operand 5, single buffered']
    #allocation10 [shape = 'u8[512]{0}', space=vmem, size = 0x400, scoped, tag = 'input window, operand 6, single buffered']
    #allocation11 [shape = 's32[1]{0}', space=sflag, size = 0x4, scoped, tag = 'scoped memory for fasternet_forward.10']
    %13 = vsyncpa [#allocation3], 0
    %14 = vsyncpa [#allocation5], 0
    %15 = vsyncpa [#allocation8], 0
    %16 = vsyncpa [#allocation11], 0
    loop: start=0, step=1, limit=4
    $region2: #{fasternet_forward.10} parent=1 // loop_pre_header
      _
    $region3: #{fasternet_forward.10} parent=1 // loop_header
      %s18 = sphi 0, %s22
      %p19 = scmp.ge.s32.totalorder %s18, 4
      %s28 = sphi 0, %s30
      %s31 = sphi 0, %s28
      %s32 = sphi 0, %s31
      %s48 = sphi 0, %s32
      %s52 = sphi 0, %s52
      %s54 = sphi 0, %s52
      %s55 = sphi 0, %s54
      %s69 = sphi 0, %s55
      %s73 = sphi 0, %s73
      %s75 = sphi 0, %s73
      %s76 = sphi 0, %s75
      %s90 = sphi 0, %s76
      %s94 = sphi 0, %s94
      %s96 = sphi 0, %s94
      %s97 = sphi 0, %s96
      %s111 = sphi 0, %s97
      %s115 = sphi 0, %s115
      %s117 = sphi 0, %s115
      %s118 = sphi 0, %s117
      %s132 = sphi 0, %s118
      %s136 = sphi 0, %s136
      %s138 = sphi 0, %s136
      %s139 = sphi 0, %s138
      %s153 = sphi 0, %s139
      %s157 = sphi 0, %s157
      %s159 = sphi 0, %s157
      %s160 = sphi 0, %s159
      %s174 = sphi 0, %s160
      %s178 = sphi 0, %s178
      %s180 = sphi 0, %s178
      %s181 = sphi 0, %s180
      %s195 = sphi 0, %s181
      %s201 = sphi 0, %s203
      %s204 = sphi 0, %s201
      %s205 = sphi 0, %s204
      %s221 = sphi 0, %s205
    $region4: #{fasternet_forward.10} parent=1 // loop_header_branch
      %21 = sbr.rel (%p19) target = $region8
    $region5: #{fasternet_forward.10} parent=1 // loop_body
      %s23 = ssub.s32 %s18, 1
      %s24 = ssub.s32 %s18, 2
      %s25 = sadd.s32 %s18, 1
      %s26 = ssub.s32 %s18, %s25
      %p27 = scmp.eq.s32.totalorder %s26, 0
      %s29 = sadd.s32 %s28, 1
      %s30 = scalar_select %p27, %s28, %s29
      %p33 = pneg %p27
      %p34 = scmp.eq.s32.totalorder %s18, 1
      %p35 = por %p33, %p34
      %p36 = scmp.ne.s32.totalorder %s28, %s31
      %p37 = scmp.eq.s32.totalorder %s18, 0
      %p38 = por %p36, %p37
      %p39 = scmp.ne.s32.totalorder %s28, %s31
      %p40 = scmp.eq.s32.totalorder %s23, 1
      %p41 = por %p39, %p40
      %p42 = scmp.ne.s32.totalorder %s31, %s32
      %p43 = scmp.eq.s32.totalorder %s23, 0
      %p44 = por %p42, %p43
      %p45 = scmp.ne.s32.totalorder %s31, %s32
      %p46 = scmp.eq.s32.totalorder %s24, 1
      %p47 = por %p45, %p46
      %p49 = scmp.ne.s32.totalorder %s32, %s48
      %p50 = scmp.eq.s32.totalorder %s24, 0
      %p51 = por %p49, %p50
      %s53 = sadd.s32 %s52, 1
      %p56 = scmp.eq.s32.totalorder %s18, 1
      %p57 = scmp.ne.s32.totalorder %s52, %s54
      %p58 = scmp.eq.s32.totalorder %s18, 0
      %p59 = por %p57, %p58
      %p60 = scmp.ne.s32.totalorder %s52, %s54
      %p61 = scmp.eq.s32.totalorder %s23, 1
      %p62 = por %p60, %p61
      %p63 = scmp.ne.s32.totalorder %s54, %s55
      %p64 = scmp.eq.s32.totalorder %s23, 0
      %p65 = por %p63, %p64
      %p66 = scmp.ne.s32.totalorder %s54, %s55
      %p67 = scmp.eq.s32.totalorder %s24, 1
      %p68 = por %p66, %p67
      %p70 = scmp.ne.s32.totalorder %s55, %s69
      %p71 = scmp.eq.s32.totalorder %s24, 0
      %p72 = por %p70, %p71
      %s74 = sadd.s32 %s73, 1
      %p77 = scmp.eq.s32.totalorder %s18, 1
      %p78 = scmp.ne.s32.totalorder %s73, %s75
      %p79 = scmp.eq.s32.totalorder %s18, 0
      %p80 = por %p78, %p79
      %p81 = scmp.ne.s32.totalorder %s73, %s75
      %p82 = scmp.eq.s32.totalorder %s23, 1
      %p83 = por %p81, %p82
      %p84 = scmp.ne.s32.totalorder %s75, %s76
      %p85 = scmp.eq.s32.totalorder %s23, 0
      %p86 = por %p84, %p85
      %p87 = scmp.ne.s32.totalorder %s75, %s76
      %p88 = scmp.eq.s32.totalorder %s24, 1
      %p89 = por %p87, %p88
      %p91 = scmp.ne.s32.totalorder %s76, %s90
      %p92 = scmp.eq.s32.totalorder %s24, 0
      %p93 = por %p91, %p92
      %s95 = sadd.s32 %s94, 1
      %p98 = scmp.eq.s32.totalorder %s18, 1
      %p99 = scmp.ne.s32.totalorder %s94, %s96
      %p100 = scmp.eq.s32.totalorder %s18, 0
      %p101 = por %p99, %p100
      %p102 = scmp.ne.s32.totalorder %s94, %s96
      %p103 = scmp.eq.s32.totalorder %s23, 1
      %p104 = por %p102, %p103
      %p105 = scmp.ne.s32.totalorder %s96, %s97
      %p106 = scmp.eq.s32.totalorder %s23, 0
      %p107 = por %p105, %p106
      %p108 = scmp.ne.s32.totalorder %s96, %s97
      %p109 = scmp.eq.s32.totalorder %s24, 1
      %p110 = por %p108, %p109
      %p112 = scmp.ne.s32.totalorder %s97, %s111
      %p113 = scmp.eq.s32.totalorder %s24, 0
      %p114 = por %p112, %p113
      %s116 = sadd.s32 %s115, 1
      %p119 = scmp.eq.s32.totalorder %s18, 1
      %p120 = scmp.ne.s32.totalorder %s115, %s117
      %p121 = scmp.eq.s32.totalorder %s18, 0
      %p122 = por %p120, %p121
      %p123 = scmp.ne.s32.totalorder %s115, %s117
      %p124 = scmp.eq.s32.totalorder %s23, 1
      %p125 = por %p123, %p124
      %p126 = scmp.ne.s32.totalorder %s117, %s118
      %p127 = scmp.eq.s32.totalorder %s23, 0
      %p128 = por %p126, %p127
      %p129 = scmp.ne.s32.totalorder %s117, %s118
      %p130 = scmp.eq.s32.totalorder %s24, 1
      %p131 = por %p129, %p130
      %p133 = scmp.ne.s32.totalorder %s118, %s132
      %p134 = scmp.eq.s32.totalorder %s24, 0
      %p135 = por %p133, %p134
      %s137 = sadd.s32 %s136, 1
      %p140 = scmp.eq.s32.totalorder %s18, 1
      %p141 = scmp.ne.s32.totalorder %s136, %s138
      %p142 = scmp.eq.s32.totalorder %s18, 0
      %p143 = por %p141, %p142
      %p144 = scmp.ne.s32.totalorder %s136, %s138
      %p145 = scmp.eq.s32.totalorder %s23, 1
      %p146 = por %p144, %p145
      %p147 = scmp.ne.s32.totalorder %s138, %s139
      %p148 = scmp.eq.s32.totalorder %s23, 0
      %p149 = por %p147, %p148
      %p150 = scmp.ne.s32.totalorder %s138, %s139
      %p151 = scmp.eq.s32.totalorder %s24, 1
      %p152 = por %p150, %p151
      %p154 = scmp.ne.s32.totalorder %s139, %s153
      %p155 = scmp.eq.s32.totalorder %s24, 0
      %p156 = por %p154, %p155
      %s158 = sadd.s32 %s157, 1
      %p161 = scmp.eq.s32.totalorder %s18, 1
      %p162 = scmp.ne.s32.totalorder %s157, %s159
      %p163 = scmp.eq.s32.totalorder %s18, 0
      %p164 = por %p162, %p163
      %p165 = scmp.ne.s32.totalorder %s157, %s159
      %p166 = scmp.eq.s32.totalorder %s23, 1
      %p167 = por %p165, %p166
      %p168 = scmp.ne.s32.totalorder %s159, %s160
      %p169 = scmp.eq.s32.totalorder %s23, 0
      %p170 = por %p168, %p169
      %p171 = scmp.ne.s32.totalorder %s159, %s160
      %p172 = scmp.eq.s32.totalorder %s24, 1
      %p173 = por %p171, %p172
      %p175 = scmp.ne.s32.totalorder %s160, %s174
      %p176 = scmp.eq.s32.totalorder %s24, 0
      %p177 = por %p175, %p176
      %s179 = sadd.s32 %s178, 1
      %p182 = scmp.eq.s32.totalorder %s18, 1
      %p183 = scmp.ne.s32.totalorder %s178, %s180
      %p184 = scmp.eq.s32.totalorder %s18, 0
      %p185 = por %p183, %p184
      %p186 = scmp.ne.s32.totalorder %s178, %s180
      %p187 = scmp.eq.s32.totalorder %s23, 1
      %p188 = por %p186, %p187
      %p189 = scmp.ne.s32.totalorder %s180, %s181
      %p190 = scmp.eq.s32.totalorder %s23, 0
      %p191 = por %p189, %p190
      %p192 = scmp.ne.s32.totalorder %s180, %s181
      %p193 = scmp.eq.s32.totalorder %s24, 1
      %p194 = por %p192, %p193
      %p196 = scmp.ne.s32.totalorder %s181, %s195
      %p197 = scmp.eq.s32.totalorder %s24, 0
      %p198 = por %p196, %p197
      %s199 = ssub.s32 %s18, %s25
      %p200 = scmp.eq.s32.totalorder %s199, 0
      %s202 = sadd.s32 %s201, 1
      %s203 = scalar_select %p200, %s201, %s202
      %p206 = pneg %p200
      %p207 = scmp.eq.s32.totalorder %s18, 1
      %p208 = por %p206, %p207
      %p209 = scmp.ne.s32.totalorder %s201, %s204
      %p210 = scmp.eq.s32.totalorder %s18, 0
      %p211 = por %p209, %p210
      %p212 = scmp.ne.s32.totalorder %s201, %s204
      %p213 = scmp.eq.s32.totalorder %s23, 1
      %p214 = por %p212, %p213
      %p215 = scmp.ne.s32.totalorder %s204, %s205
      %p216 = scmp.eq.s32.totalorder %s23, 0
      %p217 = por %p215, %p216
      %p218 = scmp.ne.s32.totalorder %s204, %s205
      %p219 = scmp.eq.s32.totalorder %s24, 1
      %p220 = por %p218, %p219
      %p222 = scmp.ne.s32.totalorder %s205, %s221
      %p223 = scmp.eq.s32.totalorder %s24, 0
      %p224 = por %p222, %p223
      %p225 = scmp.le.s32.totalorder 1, %s18
      %p226 = scmp.lt.s32.totalorder %s18, 3
      %p227 = pnand %p225, %p226
      %p228 = pneg %p227
      // Predicated region
      $region9: #{fasternet_forward.10} parent=5 // pred_check
        _
      $region10: #{fasternet_forward.10} parent=5 // pred_check_branch
        %230 = sbr.rel (%p227) target = $region12
      $region11: #{fasternet_forward.10} parent=5 // pred_region
        %s231 = ssub.s32 %s18, 1
        // Predicated region
        $region13: #{fasternet_forward.10} parent=11 // pred_check
          %p232 = pneg %p65
        $region14: #{fasternet_forward.10} parent=11 // pred_check_branch
          %234 = sbr.rel (%p232) target = $region16
        $region15: #{fasternet_forward.10} parent=11 // pred_region
          %s236 = ssub.s32 64, 64
          %237 = vsyncadd [#allocation3], %s236
          %s239 = sshll.u32 [#allocation2], 4
          %s240 = int_to_ptr.vmem [resolvable:$true] %s239
          %242 = dma.hbm_to_vmem [thread:$0]  %s1, 64, %s240, [#allocation3]
        $region16: #{fasternet_forward.10} parent=11 // pred_fallthru
          _
        // Predicated region
        $region17: #{fasternet_forward.10} parent=11 // pred_check
          %p243 = pneg %p86
        $region18: #{fasternet_forward.10} parent=11 // pred_check_branch
          %245 = sbr.rel (%p243) target = $region20
        $region19: #{fasternet_forward.10} parent=11 // pred_region
          %s247 = ssub.s32 64, 64
          %248 = vsyncadd [#allocation5], %s247
          %s250 = sshll.u32 [#allocation4], 4
          %s251 = int_to_ptr.vmem [resolvable:$true] %s250
          %253 = dma.hbm_to_vmem [thread:$0]  %s2, 64, %s251, [#allocation5]
        $region20: #{fasternet_forward.10} parent=11 // pred_fallthru
          _
        // Predicated region
        $region21: #{fasternet_forward.10} parent=11 // pred_check
          %p254 = pneg %p107
        $region22: #{fasternet_forward.10} parent=11 // pred_check_branch
          %256 = sbr.rel (%p254) target = $region24
        $region23: #{fasternet_forward.10} parent=11 // pred_region
          %s258 = ssub.s32 64, 64
          %259 = vsyncadd [#allocation5], %s258
          %s261 = sshll.u32 [#allocation6], 4
          %s262 = int_to_ptr.vmem [resolvable:$true] %s261
          %264 = dma.hbm_to_vmem [thread:$0]  %s3, 64, %s262, [#allocation5]
        $region24: #{fasternet_forward.10} parent=11 // pred_fallthru
          _
        // Predicated region
        $region25: #{fasternet_forward.10} parent=11 // pred_check
          %p265 = pneg %p128
        $region26: #{fasternet_forward.10} parent=11 // pred_check_branch
          %267 = sbr.rel (%p265) target = $region28
        $region27: #{fasternet_forward.10} parent=11 // pred_region
          %s269 = ssub.s32 64, 64
          %270 = vsyncadd [#allocation8], %s269
          %s272 = sshll.u32 [#allocation7], 4
          %s273 = int_to_ptr.vmem [resolvable:$true] %s272
          %275 = dma.hbm_to_vmem [thread:$0]  %s4, 64, %s273, [#allocation8]
        $region28: #{fasternet_forward.10} parent=11 // pred_fallthru
          _
        // Predicated region
        $region29: #{fasternet_forward.10} parent=11 // pred_check
          %p276 = pneg %p149
        $region30: #{fasternet_forward.10} parent=11 // pred_check_branch
          %278 = sbr.rel (%p276) target = $region32
        $region31: #{fasternet_forward.10} parent=11 // pred_region
          %s280 = ssub.s32 192, 192
          %281 = vsyncadd [#allocation8], %s280
          %s282 = sshll.u32 [#allocation9], 4
          %s283 = int_to_ptr.vmem [resolvable:$true] %s282
          %288 = dma.hbm_to_vmem [thread:$0]  %s5, 192, %s283, [#allocation8], 64, 64, 4
        $region32: #{fasternet_forward.10} parent=11 // pred_fallthru
          _
        // Predicated region
        $region33: #{fasternet_forward.10} parent=11 // pred_check
          %p289 = pneg %p170
        $region34: #{fasternet_forward.10} parent=11 // pred_check_branch
          %291 = sbr.rel (%p289) target = $region36
        $region35: #{fasternet_forward.10} parent=11 // pred_region
          %s293 = ssub.s32 16, 16
          %294 = vsyncadd [#allocation11], %s293
          %s296 = sshll.u32 [#allocation10], 4
          %s297 = int_to_ptr.vmem [resolvable:$true] %s296
          %299 = dma.hbm_to_vmem [thread:$0]  %s6, 16, %s297, [#allocation11]
        $region36: #{fasternet_forward.10} parent=11 // pred_fallthru
          _
        // Predicated region
        $region37: #{fasternet_forward.10} parent=11 // pred_check
          %p300 = pneg %p191
        $region38: #{fasternet_forward.10} parent=11 // pred_check_branch
          %302 = sbr.rel (%p300) target = $region40
        $region39: #{fasternet_forward.10} parent=11 // pred_region
          _
        $region40: #{fasternet_forward.10} parent=11 // pred_fallthru
          _
      $region12: #{fasternet_forward.10} parent=5 // pred_fallthru
        _
      %p303 = scmp.lt.s32.totalorder %s18, 2
      // Predicated region
      $region41: #{fasternet_forward.10} parent=5 // pred_check
        %p304 = pneg %p303
      $region42: #{fasternet_forward.10} parent=5 // pred_check_branch
        %306 = sbr.rel (%p304) target = $region44
      $region43: #{fasternet_forward.10} parent=5 // pred_region
        // Predicated region
        $region45: #{fasternet_forward.10} parent=43 // pred_check
          %p307 = pneg %p38
        $region46: #{fasternet_forward.10} parent=43 // pred_check_branch
          %309 = sbr.rel (%p307) target = $region48
        $region47: #{fasternet_forward.10} parent=43 // pred_region
          %p310 = scmp.lt.s32.totalorder %s18, 1
          %s311 = scalar_select %p310, %s18, 1
          %s312 = smul.addr %s311, 2
          %s313 = smul.addr %s312, 4
          %s314 = scalar_lea.vmem %s0, %s313
        $region48: #{fasternet_forward.10} parent=43 // pred_fallthru
          _
      $region44: #{fasternet_forward.10} parent=5 // pred_fallthru
        _
      %p315 = scmp.le.s32.totalorder 1, %s18
      %p316 = scmp.lt.s32.totalorder %s18, 3
      %p317 = pnand %p315, %p316
      %p318 = pneg %p317
      // Predicated region
      $region49: #{fasternet_forward.10} parent=5 // pred_check
        _
      $region50: #{fasternet_forward.10} parent=5 // pred_check_branch
        %320 = sbr.rel (%p317) target = $region52
      $region51: #{fasternet_forward.10} parent=5 // pred_region
        %s321 = ssub.s32 %s18, 1
        // Predicated region
        $region53: #{fasternet_forward.10} parent=51 // pred_check
          %p322 = pneg %p65
        $region54: #{fasternet_forward.10} parent=51 // pred_check_branch
          %324 = sbr.rel (%p322) target = $region56
        $region55: #{fasternet_forward.10} parent=51 // pred_region
          %325 = dma.done [#allocation3], 64
        $region56: #{fasternet_forward.10} parent=51 // pred_fallthru
          _
        // Predicated region
        $region57: #{fasternet_forward.10} parent=51 // pred_check
          %p326 = pneg %p86
        $region58: #{fasternet_forward.10} parent=51 // pred_check_branch
          %328 = sbr.rel (%p326) target = $region60
        $region59: #{fasternet_forward.10} parent=51 // pred_region
          %329 = dma.done [#allocation5], 64
        $region60: #{fasternet_forward.10} parent=51 // pred_fallthru
          _
        // Predicated region
        $region61: #{fasternet_forward.10} parent=51 // pred_check
          %p330 = pneg %p107
        $region62: #{fasternet_forward.10} parent=51 // pred_check_branch
          %332 = sbr.rel (%p330) target = $region64
        $region63: #{fasternet_forward.10} parent=51 // pred_region
          %333 = dma.done [#allocation5], 64
        $region64: #{fasternet_forward.10} parent=51 // pred_fallthru
          _
        // Predicated region
        $region65: #{fasternet_forward.10} parent=51 // pred_check
          %p334 = pneg %p128
        $region66: #{fasternet_forward.10} parent=51 // pred_check_branch
          %336 = sbr.rel (%p334) target = $region68
        $region67: #{fasternet_forward.10} parent=51 // pred_region
          %337 = dma.done [#allocation8], 64
        $region68: #{fasternet_forward.10} parent=51 // pred_fallthru
          _
        // Predicated region
        $region69: #{fasternet_forward.10} parent=51 // pred_check
          %p338 = pneg %p149
        $region70: #{fasternet_forward.10} parent=51 // pred_check_branch
          %340 = sbr.rel (%p338) target = $region72
        $region71: #{fasternet_forward.10} parent=51 // pred_region
          %341 = dma.done [#allocation8], 192
        $region72: #{fasternet_forward.10} parent=51 // pred_fallthru
          _
        // Predicated region
        $region73: #{fasternet_forward.10} parent=51 // pred_check
          %p342 = pneg %p170
        $region74: #{fasternet_forward.10} parent=51 // pred_check_branch
          %344 = sbr.rel (%p342) target = $region76
        $region75: #{fasternet_forward.10} parent=51 // pred_region
          %345 = dma.done [#allocation11], 16
        $region76: #{fasternet_forward.10} parent=51 // pred_fallthru
          _
        %p346 = scmp.lt.s32.totalorder %s23, 1
        %s347 = scalar_select %p346, %s23, 1
        %s348 = smul.addr %s347, 2
        %s349 = smul.addr %s348, 4
        %s350 = scalar_lea.vmem %s0, %s349
        %p351 = pneg %p44
        %p352 = pneg %p41
        %p353 = pneg %p65
        %p354 = pneg %p62
        %p355 = pneg %p86
        %p356 = pneg %p83
        %p357 = pneg %p107
        %p358 = pneg %p104
        %p359 = pneg %p128
        %p360 = pneg %p125
        %p361 = pneg %p149
        %p362 = pneg %p146
        %p363 = pneg %p170
        %p364 = pneg %p167
        %p365 = pneg %p191
        %p366 = pneg %p188
        %p367 = pneg %p217
        %p368 = pneg %p214
        %p369 = scmp.lt.s32.totalorder %s23, 1
        %s370 = scalar_select %p369, %s23, 1
        %s371 = smul.addr %s370, 2
        %s372 = smul.addr %s371, 4
        %s373 = scalar_lea.vmem %s8, %s372
        %p374 = scmp.lt.s32.totalorder %s23, 1
        %s375 = scalar_select %p374, %s23, 1
        %s376 = smul.addr %s375, 2
        %s377 = smul.addr %s376, 4
        %s378 = scalar_lea.vmem %s0, %s377
        %p379 = scmp.lt.s32.totalorder %s23, 1
        %s380 = scalar_select %p379, %s23, 1
        %s381 = smul.addr %s380, 2
        %s382 = smul.addr %s381, 4
        %s383 = scalar_lea.vmem %s8, %s382
        %v385 = vld [vmem:[%s378] sm:$0xf]
        %v386 = vld [vmem:[%s378 + $0x4] sm:$0xf]
        %v389 = vunpack.c.l.b16 %v385
        %v390 = vunpack.c.l.b16 %v386
        %v391 = vpack.c.b16 %v390, %v389
        %v393 = vshrl.u32 %v391, 16
        %v395 = vrot.slane %v393, 7
        %v396 = vshll.u32 %v391, 16
        %v398 = vor.u32 %v395, %v396
        %vm400 = vcmask 1040384
        %vm401 = vsmask.f32 256
        %vm402 = vmand %vm400, %vm401
        %v403 = vsel %vm402, 0, %v398
        %v404 = vrot.slane %v396, 1
        %v405 = vor.u32 %v393, %v404
        %vm407 = vcmask 1047552
        %vm408 = vsmask.f32 7424
        %vm409 = vmand %vm407, %vm408
        %v410 = vsel %vm409, %v405, 0
        %v411 = vld [vmem:[#allocation4] sm:$0xf]
        %v412 = vld [vmem:[#allocation2] sm:$0xf]
        %vm413 = vcmask 64512
        %v415 = vsel %vm413, %v403, 0
        %vm417 = vcmask 1043456
        %v419 = vsel %vm417, %v412, 0
        %421 = vmatprep.subr.bf16.mxu0 0
        %422 = vmatpush1.bf16.msra.mxu0 %v419
        %423 = vmatprep.subr.bf16.mxu0 0
        %424 = vmatpush1.bf16.msra.mxu0 0
        %425 = vmatprep.subr.bf16.mxu0 0
        %426 = vmatpush1.bf16.msra.mxu0 0
        %427 = vmatprep.subr.bf16.mxu0 0
        %428 = vmatpush1.bf16.msra.mxu0 0
        %429 = vmatprep.subr.bf16.mxu0 0
        %430 = vmatpush1.bf16.msra.mxu0 0
        %431 = vmatprep.subr.bf16.mxu0 0
        %432 = vmatpush1.bf16.msra.mxu0 0
        %433 = vmatprep.subr.bf16.mxu0 0
        %434 = vmatpush1.bf16.msra.mxu0 0
        %435 = vmatprep.subr.bf16.mxu0 0
        %436 = vmatpush1.bf16.msra.mxu0 0
        %437 = vmatprep.subr.bf16.mxu0 0
        %438 = vmatpush1.bf16.msra.mxu0 0
        %439 = vmatprep.subr.bf16.mxu0 0
        %440 = vmatpush1.bf16.msra.mxu0 0
        %441 = vmatprep.subr.bf16.mxu0 0
        %442 = vmatpush1.bf16.msra.mxu0 0
        %443 = vmatprep.subr.bf16.mxu0 0
        %444 = vmatpush1.bf16.msra.mxu0 0
        %445 = vmatprep.subr.bf16.mxu0 0
        %446 = vmatpush1.bf16.msra.mxu0 0
        %447 = vmatprep.subr.bf16.mxu0 0
        %448 = vmatpush1.bf16.msra.mxu0 0
        %449 = vmatprep.subr.bf16.mxu0 0
        %450 = vmatpush1.bf16.msra.mxu0 0
        %451 = vmatprep.subr.bf16.mxu0 0
        %452 = vmatpush1.bf16.msra.mxu0 0
        %453 = vmatprep.mubr.bf16.mxu0 0
        %454 = vmatmul.mubr.bf16.gmra.mrb[0].mxu0 %v415
        %v455 = vpop.f32.mrb[0].mxu0
        %v456 = vadd.f32 0.0, %v455
        %v457 = vpop.f32.mrb[0].mxu0
        %v458 = vpop.f32.mrb[0].mxu0
        %v459 = vadd.f32 0.0, %v458
        %v460 = vpop.f32.mrb[0].mxu0
        %461 = vdwg.mxu0
        %v462 = vsel %vm413, %v391, 0
        %v465 = vsel %vm417, %v411, 0
        %467 = vmatprep.subr.bf16.mxu0 0
        %468 = vmatpush1.bf16.msra.mxu0 %v465
        %469 = vmatprep.subr.bf16.mxu0 0
        %470 = vmatpush1.bf16.msra.mxu0 0
        %471 = vmatprep.subr.bf16.mxu0 0
        %472 = vmatpush1.bf16.msra.mxu0 0
        %473 = vmatprep.subr.bf16.mxu0 0
        %474 = vmatpush1.bf16.msra.mxu0 0
        %475 = vmatprep.subr.bf16.mxu0 0
        %476 = vmatpush1.bf16.msra.mxu0 0
        %477 = vmatprep.subr.bf16.mxu0 0
        %478 = vmatpush1.bf16.msra.mxu0 0
        %479 = vmatprep.subr.bf16.mxu0 0
        %480 = vmatpush1.bf16.msra.mxu0 0
        %481 = vmatprep.subr.bf16.mxu0 0
        %482 = vmatpush1.bf16.msra.mxu0 0
        %483 = vmatprep.subr.bf16.mxu0 0
        %484 = vmatpush1.bf16.msra.mxu0 0
        %485 = vmatprep.subr.bf16.mxu0 0
        %486 = vmatpush1.bf16.msra.mxu0 0
        %487 = vmatprep.subr.bf16.mxu0 0
        %488 = vmatpush1.bf16.msra.mxu0 0
        %489 = vmatprep.subr.bf16.mxu0 0
        %490 = vmatpush1.bf16.msra.mxu0 0
        %491 = vmatprep.subr.bf16.mxu0 0
        %492 = vmatpush1.bf16.msra.mxu0 0
        %493 = vmatprep.subr.bf16.mxu0 0
        %494 = vmatpush1.bf16.msra.mxu0 0
        %495 = vmatprep.subr.bf16.mxu0 0
        %496 = vmatpush1.bf16.msra.mxu0 0
        %497 = vmatprep.subr.bf16.mxu0 0
        %498 = vmatpush1.bf16.msra.mxu0 0
        %499 = vmatprep.mubr.bf16.mxu0 0
        %500 = vmatmul.mubr.bf16.gmra.mrb[0].mxu0 %v462
        %v501 = vpop.f32.mrb[0].mxu0
        %v502 = vadd.f32 %v456, %v501
        %v503 = vpop.f32.mrb[0].mxu0
        %v504 = vpop.f32.mrb[0].mxu0
        %v505 = vadd.f32 %v459, %v504
        %v506 = vpop.f32.mrb[0].mxu0
        %507 = vdwg.mxu0
        %v508 = vld [vmem:[#allocation6] sm:$0xf]
        %v510 = vsel %vm413, %v410, 0
        %v513 = vsel %vm417, %v508, 0
        %515 = vmatprep.subr.bf16.mxu0 0
        %516 = vmatpush1.bf16.msra.mxu0 %v513
        %517 = vmatprep.subr.bf16.mxu0 0
        %518 = vmatpush1.bf16.msra.mxu0 0
        %519 = vmatprep.subr.bf16.mxu0 0
        %520 = vmatpush1.bf16.msra.mxu0 0
        %521 = vmatprep.subr.bf16.mxu0 0
        %522 = vmatpush1.bf16.msra.mxu0 0
        %523 = vmatprep.subr.bf16.mxu0 0
        %524 = vmatpush1.bf16.msra.mxu0 0
        %525 = vmatprep.subr.bf16.mxu0 0
        %526 = vmatpush1.bf16.msra.mxu0 0
        %527 = vmatprep.subr.bf16.mxu0 0
        %528 = vmatpush1.bf16.msra.mxu0 0
        %529 = vmatprep.subr.bf16.mxu0 0
        %530 = vmatpush1.bf16.msra.mxu0 0
        %531 = vmatprep.subr.bf16.mxu0 0
        %532 = vmatpush1.bf16.msra.mxu0 0
        %533 = vmatprep.subr.bf16.mxu0 0
        %534 = vmatpush1.bf16.msra.mxu0 0
        %535 = vmatprep.subr.bf16.mxu0 0
        %536 = vmatpush1.bf16.msra.mxu0 0
        %537 = vmatprep.subr.bf16.mxu0 0
        %538 = vmatpush1.bf16.msra.mxu0 0
        %539 = vmatprep.subr.bf16.mxu0 0
        %540 = vmatpush1.bf16.msra.mxu0 0
        %541 = vmatprep.subr.bf16.mxu0 0
        %542 = vmatpush1.bf16.msra.mxu0 0
        %543 = vmatprep.subr.bf16.mxu0 0
        %544 = vmatpush1.bf16.msra.mxu0 0
        %545 = vmatprep.subr.bf16.mxu0 0
        %546 = vmatpush1.bf16.msra.mxu0 0
        %547 = vmatprep.mubr.bf16.mxu0 0
        %548 = vmatmul.mubr.bf16.gmra.mrb[0].mxu0 %v510
        %v549 = vpop.f32.mrb[0].mxu0
        %v550 = vadd.f32 0.0, %v549
        %v551 = vpop.f32.mrb[0].mxu0
        %v552 = vpop.f32.mrb[0].mxu0
        %v553 = vadd.f32 0.0, %v552
        %v554 = vpop.f32.mrb[0].mxu0
        %555 = vdwg.mxu0
        %v556 = vadd.f32 %v502, %v550
        %v557 = vadd.f32 %v505, %v553
        %v558 = vpack.c.bf16 %v557, %v556
        %v559 = vld [vmem:[#allocation7] sm:$0xf]
        %v560 = vld [vmem:[#allocation9] sm:$0xf]
        %v561 = vld [vmem:[#allocation9 + $0x4] sm:$0xf]
        %v562 = vld [vmem:[#allocation9 + $0x8] sm:$0xf]
        %563 = vrot.lane.b32.xlu0 %v391, 120
        %v564 = vpop.permute.xlu0 %563
        %v568 = vunpack.c.l.b16 %v560
        %v569 = vunpack.c.l.b16 %v561
        %v570 = vunpack.c.l.b16 %v562
        %v571 = vpack.c.b16 %v569, %v568
        %v572 = vpack.c.b16 %v570, %v570
        %vm574 = vcmask 195584
        %v576 = vsel %vm574, %v564, 0
        %v579 = vsel %vm417, %v572, 0
        %581 = vmatprep.subr.bf16.mxu0 0
        %582 = vmatpush1.bf16.msra.mxu0 %v571
        %583 = vmatprep.subr.bf16.mxu0 0
        %584 = vmatpush1.bf16.msra.mxu0 %v579
        %585 = vmatprep.subr.bf16.mxu0 0
        %586 = vmatpush1.bf16.msra.mxu0 0
        %587 = vmatprep.subr.bf16.mxu0 0
        %588 = vmatpush1.bf16.msra.mxu0 0
        %589 = vmatprep.subr.bf16.mxu0 0
        %590 = vmatpush1.bf16.msra.mxu0 0
        %591 = vmatprep.subr.bf16.mxu0 0
        %592 = vmatpush1.bf16.msra.mxu0 0
        %593 = vmatprep.subr.bf16.mxu0 0
        %594 = vmatpush1.bf16.msra.mxu0 0
        %595 = vmatprep.subr.bf16.mxu0 0
        %596 = vmatpush1.bf16.msra.mxu0 0
        %597 = vmatprep.subr.bf16.mxu0 0
        %598 = vmatpush1.bf16.msra.mxu0 0
        %599 = vmatprep.subr.bf16.mxu0 0
        %600 = vmatpush1.bf16.msra.mxu0 0
        %601 = vmatprep.subr.bf16.mxu0 0
        %602 = vmatpush1.bf16.msra.mxu0 0
        %603 = vmatprep.subr.bf16.mxu0 0
        %604 = vmatpush1.bf16.msra.mxu0 0
        %605 = vmatprep.subr.bf16.mxu0 0
        %606 = vmatpush1.bf16.msra.mxu0 0
        %607 = vmatprep.subr.bf16.mxu0 0
        %608 = vmatpush1.bf16.msra.mxu0 0
        %609 = vmatprep.subr.bf16.mxu0 0
        %610 = vmatpush1.bf16.msra.mxu0 0
        %611 = vmatprep.subr.bf16.mxu0 0
        %612 = vmatpush1.bf16.msra.mxu0 0
        %613 = vmatprep.mubr.bf16.mxu0 0
        %614 = vmatmul.mubr.bf16.gmra.mrb[0].mxu0 %v576
        %v615 = vpop.f32.mrb[0].mxu0
        %v616 = vadd.f32 0.0, %v615
        %v617 = vpop.f32.mrb[0].mxu0
        %v618 = vpop.f32.mrb[0].mxu0
        %v619 = vadd.f32 0.0, %v618
        %v620 = vpop.f32.mrb[0].mxu0
        %621 = vdwg.mxu0
        %v623 = vsel %vm413, %v558, 0
        %v626 = vsel %vm417, %v559, 0
        %628 = vmatprep.subr.bf16.mxu0 0
        %629 = vmatpush1.bf16.msra.mxu0 %v626
        %630 = vmatprep.subr.bf16.mxu0 0
        %631 = vmatpush1.bf16.msra.mxu0 0
        %632 = vmatprep.subr.bf16.mxu0 0
        %633 = vmatpush1.bf16.msra.mxu0 0
        %634 = vmatprep.subr.bf16.mxu0 0
        %635 = vmatpush1.bf16.msra.mxu0 0
        %636 = vmatprep.subr.bf16.mxu0 0
        %637 = vmatpush1.bf16.msra.mxu0 0
        %638 = vmatprep.subr.bf16.mxu0 0
        %639 = vmatpush1.bf16.msra.mxu0 0
        %640 = vmatprep.subr.bf16.mxu0 0
        %641 = vmatpush1.bf16.msra.mxu0 0
        %642 = vmatprep.subr.bf16.mxu0 0
        %643 = vmatpush1.bf16.msra.mxu0 0
        %644 = vmatprep.subr.bf16.mxu0 0
        %645 = vmatpush1.bf16.msra.mxu0 0
        %646 = vmatprep.subr.bf16.mxu0 0
        %647 = vmatpush1.bf16.msra.mxu0 0
        %648 = vmatprep.subr.bf16.mxu0 0
        %649 = vmatpush1.bf16.msra.mxu0 0
        %650 = vmatprep.subr.bf16.mxu0 0
        %651 = vmatpush1.bf16.msra.mxu0 0
        %652 = vmatprep.subr.bf16.mxu0 0
        %653 = vmatpush1.bf16.msra.mxu0 0
        %654 = vmatprep.subr.bf16.mxu0 0
        %655 = vmatpush1.bf16.msra.mxu0 0
        %656 = vmatprep.subr.bf16.mxu0 0
        %657 = vmatpush1.bf16.msra.mxu0 0
        %658 = vmatprep.subr.bf16.mxu0 0
        %659 = vmatpush1.bf16.msra.mxu0 0
        %660 = vmatprep.mubr.bf16.mxu0 0
        %661 = vmatmul.mubr.bf16.gmra.mrb[0].mxu0 %v623
        %v662 = vpop.f32.mrb[0].mxu0
        %v663 = vadd.f32 %v616, %v662
        %v664 = vpop.f32.mrb[0].mxu0
        %v665 = vpop.f32.mrb[0].mxu0
        %v666 = vadd.f32 %v619, %v665
        %v667 = vpop.f32.mrb[0].mxu0
        %668 = vdwg.mxu0
        %v669 = vld [vmem:[#allocation10] sm:$0x1]
        %v671 = vlaneseq
        %v672 = vshrl.u32 %v671, 7
        %v673 = vsub.s32 0, %v672
        %v674 = vrot.slane %v669, %v673
        %v676 = vadd.f32 %v663, %v674
        %v677 = vadd.f32 %v666, %v674
        %v678 = vmax.f32 %v676, 0.0
        %v679 = vmax.f32 %v677, 0.0
        %v680 = vpack.c.bf16 %v679, %v678
        %v681 = vld [vmem:[%s7] sm:$0xf]
        %v682 = vld [vmem:[%s7 + $0x4] sm:$0xf]
        %v683 = vld [vmem:[%s7 + $0x8] sm:$0xf]
        %v684 = vld [vmem:[%s7 + $0xc] sm:$0xf]
        %v685 = vld [vmem:[%s7 + $0x10] sm:$0xf]
        %v686 = vld [vmem:[%s7 + $0x14] sm:$0xf]
        %v687 = vld [vmem:[%s7 + $0x18] sm:$0xf]
        %v688 = vld [vmem:[%s7 + $0x1c] sm:$0xf]
        %v697 = vunpack.c.l.b16 %v681
        %v698 = vunpack.c.l.b16 %v682
        %v699 = vunpack.c.l.b16 %v683
        %v700 = vunpack.c.l.b16 %v684
        %v701 = vunpack.c.l.b16 %v685
        %v702 = vunpack.c.l.b16 %v686
        %v703 = vunpack.c.l.b16 %v687
        %v704 = vunpack.c.l.b16 %v688
        %v705 = vpack.c.b16 %v698, %v697
        %v706 = vpack.c.b16 %v700, %v699
        %v707 = vpack.c.b16 %v702, %v701
        %v708 = vpack.c.b16 %v704, %v703
        %vm713 = vcmask 523264
        %v715 = vsel %vm713, %v680, 0
        %717 = vmatprep.subr.bf16.mxu0 0
        %718 = vmatpush1.bf16.msra.mxu0 %v705
        %719 = vmatprep.subr.bf16.mxu0 0
        %720 = vmatpush1.bf16.msra.mxu0 %v706
        %721 = vmatprep.subr.bf16.mxu0 0
        %722 = vmatpush1.bf16.msra.mxu0 %v707
        %723 = vmatprep.subr.bf16.mxu0 0
        %724 = vmatpush1.bf16.msra.mxu0 %v708
        %725 = vmatprep.subr.bf16.mxu0 0
        %726 = vmatpush1.bf16.msra.mxu0 0
        %727 = vmatprep.subr.bf16.mxu0 0
        %728 = vmatpush1.bf16.msra.mxu0 0
        %729 = vmatprep.subr.bf16.mxu0 0
        %730 = vmatpush1.bf16.msra.mxu0 0
        %731 = vmatprep.subr.bf16.mxu0 0
        %732 = vmatpush1.bf16.msra.mxu0 0
        %733 = vmatprep.subr.bf16.mxu0 0
        %734 = vmatpush1.bf16.msra.mxu0 0
        %735 = vmatprep.subr.bf16.mxu0 0
        %736 = vmatpush1.bf16.msra.mxu0 0
        %737 = vmatprep.subr.bf16.mxu0 0
        %738 = vmatpush1.bf16.msra.mxu0 0
        %739 = vmatprep.subr.bf16.mxu0 0
        %740 = vmatpush1.bf16.msra.mxu0 0
        %741 = vmatprep.subr.bf16.mxu0 0
        %742 = vmatpush1.bf16.msra.mxu0 0
        %743 = vmatprep.subr.bf16.mxu0 0
        %744 = vmatpush1.bf16.msra.mxu0 0
        %745 = vmatprep.subr.bf16.mxu0 0
        %746 = vmatpush1.bf16.msra.mxu0 0
        %747 = vmatprep.subr.bf16.mxu0 0
        %748 = vmatpush1.bf16.msra.mxu0 0
        %749 = vmatprep.mubr.bf16.mxu0 0
        %750 = vmatmul.mubr.bf16.gmra.mrb[0].mxu0 %v715
        %v751 = vpop.f32.mrb[0].mxu0
        %v752 = vadd.f32 0.0, %v751
        %v753 = vpop.f32.mrb[0].mxu0
        %v754 = vpop.f32.mrb[0].mxu0
        %v755 = vadd.f32 0.0, %v754
        %v756 = vpop.f32.mrb[0].mxu0
        %757 = vdwg.mxu0
        %v758 = vpack.c.bf16 %v755, %v752
        %v760 = vadd.bf16 %v758, %v391
        %v762 = vunpack.c.l.b16 %v760
        %v763 = vunpack.c.h.b16 %v760
        %v764 = vpack.c.b16 %v762, %v762
        %v765 = vpack.c.b16 %v763, %v763
        %vm768 = vcmask 257024
        %769 = vst.msk [vmem:[%s383] sm:$0xf] %vm768, %v764
        %770 = vst.msk [vmem:[%s383 + $0x4] sm:$0xf] %vm768, %v765
        %p771 = scmp.lt.s32.totalorder %s23, 1
        %s772 = scalar_select %p771, %s23, 1
        %s773 = smul.addr %s772, 2
        %s774 = smul.addr %s773, 4
        %s775 = scalar_lea.vmem %s8, %s774
        // Predicated region
        $region77: #{fasternet_forward.10} parent=51 // pred_check
          %p776 = pneg %p214
        $region78: #{fasternet_forward.10} parent=51 // pred_check_branch
          %778 = sbr.rel (%p776) target = $region80
        $region79: #{fasternet_forward.10} parent=51 // pred_region
          _
        $region80: #{fasternet_forward.10} parent=51 // pred_fallthru
          _
      $region52: #{fasternet_forward.10} parent=5 // pred_fallthru
        _
      %p779 = scmp.le.s32.totalorder 2, %s18
      // Predicated region
      $region81: #{fasternet_forward.10} parent=5 // pred_check
        %p780 = pneg %p779
      $region82: #{fasternet_forward.10} parent=5 // pred_check_branch
        %782 = sbr.rel (%p780) target = $region84
      $region83: #{fasternet_forward.10} parent=5 // pred_region
        %s783 = ssub.s32 %s18, 2
        // Predicated region
        $region85: #{fasternet_forward.10} parent=83 // pred_check
          %p784 = pneg %p220
        $region86: #{fasternet_forward.10} parent=83 // pred_check_branch
          %786 = sbr.rel (%p784) target = $region88
        $region87: #{fasternet_forward.10} parent=83 // pred_region
          %p787 = scmp.lt.s32.totalorder %s24, 1
          %s788 = scalar_select %p787, %s24, 1
          %s789 = smul.addr %s788, 2
          %s790 = smul.addr %s789, 4
          %s791 = scalar_lea.vmem %s8, %s790
        $region88: #{fasternet_forward.10} parent=83 // pred_fallthru
          _
      $region84: #{fasternet_forward.10} parent=5 // pred_fallthru
        _
    $region6: #{fasternet_forward.10} parent=1 // loop_footer
      %s22 = sadd.s32 1, %s18
    $region7: #{fasternet_forward.10} parent=1 // loop_footer_branch
      %17 = sbr.rel target = $region3
    $region8: #{fasternet_forward.10} parent=1 // loop_exit
      _
    %792 = vsyncpa [#allocation3], 1
    %s793 = scalar_lea.sflag [#allocation3], 1
    %794 = vsyncpa %s793, 1
    %795 = vsyncpa [#allocation5], 1
    %796 = vsyncpa [#allocation8], 1
    %797 = vsyncpa [#allocation11], 1

// kernel: fasternet_forward.13
$region0: #{fasternet_forward.13}
  #allocation0 [shape = 'u32[]', space=smem, size = 0x4, offset = 0x4, fixed_abs, tag = 'smem constant byte address 0x4 - core index']
  #allocation1 [shape = 'u32[144,128]{1,0:T(1,128)}', space=vmem, size = 0x12000, scoped, tag = 'internal scratch']
  %s0 = inlined_call_operand.vmem [shape: bf16[8,128], index: 0, kind: input, shape index: {}]
  %s1 = inlined_call_operand.hbm [shape: bf16[128,128], index: 1, kind: input, shape index: {}]
  %s2 = inlined_call_operand.hbm [shape: f32[1,128], index: 2, kind: input, shape index: {}]
  %s3 = inlined_call_operand.vmem [shape: bf16[8,128], index: 3, kind: output, shape index: {}]
  %s4 = sld [smem:[#allocation0]]
  $region30: #{fasternet_forward.13} parent=0
    _
  %s6 = ssub.s32 1, %s4
  %s7 = scalar_select 0, %s6, %s4
  $region1: #{fasternet_forward.13} parent=0
    #allocation2 [shape = 'u8[32768]{0}', space=vmem, size = 0x8000, scoped, tag = 'input window, operand 1, single buffered']
    #allocation3 [shape = 's32[1]{0}', space=sflag, size = 0x4, scoped, tag = 'scoped memory for fasternet_forward.13']
    #allocation4 [shape = 'u8[512]{0}', space=vmem, size = 0x400, scoped, tag = 'input window, operand 2, single buffered']
    #allocation5 [shape = 's32[1]{0}', space=sflag, size = 0x4, scoped, tag = 'scoped memory for fasternet_forward.13']
    %8 = vsyncpa [#allocation3], 0
    %9 = vsyncpa [#allocation5], 0
    // Predicated region
    $region2: #{fasternet_forward.13} parent=1 // pred_check
      _
    $region3: #{fasternet_forward.13} parent=1 // pred_check_branch
      %11 = sbr.rel (0) target = $region5
    $region4: #{fasternet_forward.13} parent=1 // pred_region
      _
    $region5: #{fasternet_forward.13} parent=1 // pred_fallthru
      _
    // Predicated region
    $region6: #{fasternet_forward.13} parent=1 // pred_check
      _
    $region7: #{fasternet_forward.13} parent=1 // pred_check_branch
      %13 = sbr.rel (0) target = $region9
    $region8: #{fasternet_forward.13} parent=1 // pred_region
      %s15 = ssub.s32 1024, 1024
      %16 = vsyncadd [#allocation3], %s15
      %s17 = sshll.u32 [#allocation2], 4
      %s18 = int_to_ptr.vmem [resolvable:$true] %s17
      %23 = dma.hbm_to_vmem [thread:$0]  %s1, 1024, %s18, [#allocation3], 64, 64, 4
    $region9: #{fasternet_forward.13} parent=1 // pred_fallthru
      _
    // Predicated region
    $region10: #{fasternet_forward.13} parent=1 // pred_check
      _
    $region11: #{fasternet_forward.13} parent=1 // pred_check_branch
      %25 = sbr.rel (0) target = $region13
    $region12: #{fasternet_forward.13} parent=1 // pred_region
      %s27 = ssub.s32 16, 16
      %28 = vsyncadd [#allocation5], %s27
      %s30 = sshll.u32 [#allocation4], 4
      %s31 = int_to_ptr.vmem [resolvable:$true] %s30
      %33 = dma.hbm_to_vmem [thread:$0]  %s2, 16, %s31, [#allocation5]
    $region13: #{fasternet_forward.13} parent=1 // pred_fallthru
      _
    // Predicated region
    $region14: #{fasternet_forward.13} parent=1 // pred_check
      _
    $region15: #{fasternet_forward.13} parent=1 // pred_check_branch
      %35 = sbr.rel (0) target = $region17
    $region16: #{fasternet_forward.13} parent=1 // pred_region
      %36 = dma.done [#allocation3], 1024
    $region17: #{fasternet_forward.13} parent=1 // pred_fallthru
      _
    // Predicated region
    $region18: #{fasternet_forward.13} parent=1 // pred_check
      _
    $region19: #{fasternet_forward.13} parent=1 // pred_check_branch
      %38 = sbr.rel (0) target = $region21
    $region20: #{fasternet_forward.13} parent=1 // pred_region
      %39 = dma.done [#allocation5], 16
    $region21: #{fasternet_forward.13} parent=1 // pred_fallthru
      _
    %v41 = vld [vmem:[%s0] sm:$0xf]
    %v42 = vld [vmem:[#allocation2] sm:$0xf]
    %v43 = vld [vmem:[#allocation2 + $0x4] sm:$0xf]
    %v44 = vld [vmem:[#allocation2 + $0x8] sm:$0xf]
    %v45 = vld [vmem:[#allocation2 + $0xc] sm:$0xf]
    %v46 = vld [vmem:[#allocation2 + $0x10] sm:$0xf]
    %v47 = vld [vmem:[#allocation2 + $0x14] sm:$0xf]
    %v48 = vld [vmem:[#allocation2 + $0x18] sm:$0xf]
    %v49 = vld [vmem:[#allocation2 + $0x1c] sm:$0xf]
    %v50 = vld [vmem:[#allocation2 + $0x20] sm:$0xf]
    %v51 = vld [vmem:[#allocation2 + $0x24] sm:$0xf]
    %v52 = vld [vmem:[#allocation2 + $0x28] sm:$0xf]
    %v53 = vld [vmem:[#allocation2 + $0x2c] sm:$0xf]
    %v54 = vld [vmem:[#allocation2 + $0x30] sm:$0xf]
    %v55 = vld [vmem:[#allocation2 + $0x34] sm:$0xf]
    %v56 = vld [vmem:[#allocation2 + $0x38] sm:$0xf]
    %v57 = vld [vmem:[#allocation2 + $0x3c] sm:$0xf]
    %v58 = vld [vmem:[#allocation4] sm:$0x1]
    %v60 = vlaneseq
    %v61 = vshrl.u32 %v60, 7
    %v62 = vsub.s32 0, %v61
    %v63 = vrot.slane %v58, %v62
    %v81 = vunpack.c.l.b16 %v42
    %v82 = vunpack.c.l.b16 %v43
    %v83 = vunpack.c.l.b16 %v44
    %v84 = vunpack.c.l.b16 %v45
    %v85 = vunpack.c.l.b16 %v46
    %v86 = vunpack.c.l.b16 %v47
    %v87 = vunpack.c.l.b16 %v48
    %v88 = vunpack.c.l.b16 %v49
    %v89 = vunpack.c.l.b16 %v50
    %v90 = vunpack.c.l.b16 %v51
    %v91 = vunpack.c.l.b16 %v52
    %v92 = vunpack.c.l.b16 %v53
    %v93 = vunpack.c.l.b16 %v54
    %v94 = vunpack.c.l.b16 %v55
    %v95 = vunpack.c.l.b16 %v56
    %v96 = vunpack.c.l.b16 %v57
    %v97 = vpack.c.b16 %v82, %v81
    %v98 = vpack.c.b16 %v84, %v83
    %v99 = vpack.c.b16 %v86, %v85
    %v100 = vpack.c.b16 %v88, %v87
    %v101 = vpack.c.b16 %v90, %v89
    %v102 = vpack.c.b16 %v92, %v91
    %v103 = vpack.c.b16 %v94, %v93
    %v104 = vpack.c.b16 %v96, %v95
    %113 = vmatprep.subr.bf16.mxu0 0
    %114 = vmatpush1.bf16.msra.mxu0 %v97
    %115 = vmatprep.subr.bf16.mxu0 0
    %116 = vmatpush1.bf16.msra.mxu0 %v98
    %117 = vmatprep.subr.bf16.mxu0 0
    %118 = vmatpush1.bf16.msra.mxu0 %v99
    %119 = vmatprep.subr.bf16.mxu0 0
    %120 = vmatpush1.bf16.msra.mxu0 %v100
    %121 = vmatprep.subr.bf16.mxu0 0
    %122 = vmatpush1.bf16.msra.mxu0 %v101
    %123 = vmatprep.subr.bf16.mxu0 0
    %124 = vmatpush1.bf16.msra.mxu0 %v102
    %125 = vmatprep.subr.bf16.mxu0 0
    %126 = vmatpush1.bf16.msra.mxu0 %v103
    %127 = vmatprep.subr.bf16.mxu0 0
    %128 = vmatpush1.bf16.msra.mxu0 %v104
    %129 = vmatprep.subr.bf16.mxu0 0
    %130 = vmatpush1.bf16.msra.mxu0 0
    %131 = vmatprep.subr.bf16.mxu0 0
    %132 = vmatpush1.bf16.msra.mxu0 0
    %133 = vmatprep.subr.bf16.mxu0 0
    %134 = vmatpush1.bf16.msra.mxu0 0
    %135 = vmatprep.subr.bf16.mxu0 0
    %136 = vmatpush1.bf16.msra.mxu0 0
    %137 = vmatprep.subr.bf16.mxu0 0
    %138 = vmatpush1.bf16.msra.mxu0 0
    %139 = vmatprep.subr.bf16.mxu0 0
    %140 = vmatpush1.bf16.msra.mxu0 0
    %141 = vmatprep.subr.bf16.mxu0 0
    %142 = vmatpush1.bf16.msra.mxu0 0
    %143 = vmatprep.subr.bf16.mxu0 0
    %144 = vmatpush1.bf16.msra.mxu0 0
    %145 = vmatprep.mubr.bf16.mxu0 0
    %146 = vmatmul.mubr.bf16.gmra.mrb[0].mxu0 %v41
    %v147 = vpop.f32.mrb[0].mxu0
    %v148 = vadd.f32 %v63, %v147
    %v149 = vpop.f32.mrb[0].mxu0
    %v150 = vpop.f32.mrb[0].mxu0
    %v151 = vpop.f32.mrb[0].mxu0
    %152 = vdwg.mxu0
    %v153 = vpack.c.bf16 %v148, %v148
    %154 = vst [vmem:[%s3] sm:$0xf] %v153
    // Predicated region
    $region22: #{fasternet_forward.13} parent=1 // pred_check
      _
    $region23: #{fasternet_forward.13} parent=1 // pred_check_branch
      %156 = sbr.rel (0) target = $region25
    $region24: #{fasternet_forward.13} parent=1 // pred_region
      _
    $region25: #{fasternet_forward.13} parent=1 // pred_fallthru
      _
    // Predicated region
    $region26: #{fasternet_forward.13} parent=1 // pred_check
      _
    $region27: #{fasternet_forward.13} parent=1 // pred_check_branch
      %158 = sbr.rel (0) target = $region29
    $region28: #{fasternet_forward.13} parent=1 // pred_region
      _
    $region29: #{fasternet_forward.13} parent=1 // pred_fallthru
      _
    %159 = vsyncpa [#allocation3], 1
    %160 = vsyncpa [#allocation5], 1

// kernel: fasternet_forward.15
$region0: #{fasternet_forward.15}
  #allocation0 [shape = 'u32[]', space=smem, size = 0x4, offset = 0x4, fixed_abs, tag = 'smem constant byte address 0x4 - core index']
  #allocation1 [shape = 'u32[144,128]{1,0:T(1,128)}', space=vmem, size = 0x12000, scoped, tag = 'internal scratch']
  %s0 = inlined_call_operand.vmem [shape: bf16[4,256], index: 0, kind: input, shape index: {}]
  %s1 = inlined_call_operand.vmem [shape: bf16[256,256], index: 1, kind: input, shape index: {}]
  %s2 = inlined_call_operand.hbm [shape: f32[1,256], index: 2, kind: input, shape index: {}]
  %s3 = inlined_call_operand.vmem [shape: bf16[4,256], index: 3, kind: output, shape index: {}]
  %s4 = sld [smem:[#allocation0]]
  $region26: #{fasternet_forward.15} parent=0
    _
  %s6 = ssub.s32 1, %s4
  %s7 = scalar_select 0, %s6, %s4
  $region1: #{fasternet_forward.15} parent=0
    #allocation2 [shape = 'u8[1024]{0}', space=vmem, size = 0x400, scoped, tag = 'input window, operand 2, single buffered']
    #allocation3 [shape = 's32[1]{0}', space=sflag, size = 0x4, scoped, tag = 'scoped memory for fasternet_forward.15']
    %8 = vsyncpa [#allocation3], 0
    // Predicated region
    $region2: #{fasternet_forward.15} parent=1 // pred_check
      _
    $region3: #{fasternet_forward.15} parent=1 // pred_check_branch
      %10 = sbr.rel (0) target = $region5
    $region4: #{fasternet_forward.15} parent=1 // pred_region
      _
    $region5: #{fasternet_forward.15} parent=1 // pred_fallthru
      _
    // Predicated region
    $region6: #{fasternet_forward.15} parent=1 // pred_check
      _
    $region7: #{fasternet_forward.15} parent=1 // pred_check_branch
      %12 = sbr.rel (0) target = $region9
    $region8: #{fasternet_forward.15} parent=1 // pred_region
      _
    $region9: #{fasternet_forward.15} parent=1 // pred_fallthru
      _
    // Predicated region
    $region10: #{fasternet_forward.15} parent=1 // pred_check
      _
    $region11: #{fasternet_forward.15} parent=1 // pred_check_branch
      %14 = sbr.rel (0) target = $region13
    $region12: #{fasternet_forward.15} parent=1 // pred_region
      %s16 = ssub.s32 32, 32
      %17 = vsyncadd [#allocation3], %s16
      %s19 = sshll.u32 [#allocation2], 4
      %s20 = int_to_ptr.vmem [resolvable:$true] %s19
      %22 = dma.hbm_to_vmem [thread:$0]  %s2, 32, %s20, [#allocation3]
    $region13: #{fasternet_forward.15} parent=1 // pred_fallthru
      _
    // Predicated region
    $region14: #{fasternet_forward.15} parent=1 // pred_check
      _
    $region15: #{fasternet_forward.15} parent=1 // pred_check_branch
      %24 = sbr.rel (0) target = $region17
    $region16: #{fasternet_forward.15} parent=1 // pred_region
      %25 = dma.done [#allocation3], 32
    $region17: #{fasternet_forward.15} parent=1 // pred_fallthru
      _
    %v26 = vld [vmem:[%s0] sm:$0xf]
    %v27 = vld [vmem:[%s1] sm:$0xff]
    %v28 = vld [vmem:[%s1 + $0x8] sm:$0xff]
    %v29 = vld [vmem:[%s1 + $0x10] sm:$0xff]
    %v30 = vld [vmem:[%s1 + $0x18] sm:$0xff]
    %v31 = vld [vmem:[%s1 + $0x20] sm:$0xff]
    %v32 = vld [vmem:[%s1 + $0x28] sm:$0xff]
    %v33 = vld [vmem:[%s1 + $0x30] sm:$0xff]
    %v34 = vld [vmem:[%s1 + $0x38] sm:$0xff]
    %v35 = vld [vmem:[%s1 + $0x40] sm:$0xff]
    %v36 = vld [vmem:[%s1 + $0x48] sm:$0xff]
    %v37 = vld [vmem:[%s1 + $0x50] sm:$0xff]
    %v38 = vld [vmem:[%s1 + $0x58] sm:$0xff]
    %v39 = vld [vmem:[%s1 + $0x60] sm:$0xff]
    %v40 = vld [vmem:[%s1 + $0x68] sm:$0xff]
    %v41 = vld [vmem:[%s1 + $0x70] sm:$0xff]
    %v42 = vld [vmem:[%s1 + $0x78] sm:$0xff]
    %v43 = vld [vmem:[%s1 + $0x80] sm:$0xff]
    %v44 = vld [vmem:[%s1 + $0x88] sm:$0xff]
    %v45 = vld [vmem:[%s1 + $0x90] sm:$0xff]
    %v46 = vld [vmem:[%s1 + $0x98] sm:$0xff]
    %v47 = vld [vmem:[%s1 + $0xa0] sm:$0xff]
    %v48 = vld [vmem:[%s1 + $0xa8] sm:$0xff]
    %v49 = vld [vmem:[%s1 + $0xb0] sm:$0xff]
    %v50 = vld [vmem:[%s1 + $0xb8] sm:$0xff]
    %v51 = vld [vmem:[%s1 + $0xc0] sm:$0xff]
    %v52 = vld [vmem:[%s1 + $0xc8] sm:$0xff]
    %v53 = vld [vmem:[%s1 + $0xd0] sm:$0xff]
    %v54 = vld [vmem:[%s1 + $0xd8] sm:$0xff]
    %v55 = vld [vmem:[%s1 + $0xe0] sm:$0xff]
    %v56 = vld [vmem:[%s1 + $0xe8] sm:$0xff]
    %v57 = vld [vmem:[%s1 + $0xf0] sm:$0xff]
    %v58 = vld [vmem:[%s1 + $0xf8] sm:$0xff]
    %v59 = vld [vmem:[#allocation2] sm:$0x3]
    %v61 = vlaneseq
    %v62 = vshrl.u32 %v61, 7
    %v63 = vsub.s32 0, %v62
    %v64 = vrot.slane %v59, %v63
    %v65 = vlaneseq
    %v66 = vshrl.u32 %v65, 7
    %v67 = vsub.s32 1, %v66
    %v68 = vrot.slane %v59, %v67
    %v73 = vunpack.c.l.s4 1983009808
    %v74 = vunpack.c.0.s8 %v73
    %v75 = vlaneseq
    %v76 = vshrl.u32 %v75, 7
    %v77 = vsub.s32 %v74, %v76
    %v78 = vrot.slane %v26, %v77
    %v79 = vcombine.high %v78, %v78
    %v114 = vunpack.c.l.b16 %v27
    %v115 = vunpack.c.h.b16 %v27
    %v116 = vunpack.c.l.b16 %v28
    %v117 = vunpack.c.h.b16 %v28
    %v118 = vunpack.c.l.b16 %v29
    %v119 = vunpack.c.h.b16 %v29
    %v120 = vunpack.c.l.b16 %v30
    %v121 = vunpack.c.h.b16 %v30
    %v122 = vunpack.c.l.b16 %v31
    %v123 = vunpack.c.h.b16 %v31
    %v124 = vunpack.c.l.b16 %v32
    %v125 = vunpack.c.h.b16 %v32
    %v126 = vunpack.c.l.b16 %v33
    %v127 = vunpack.c.h.b16 %v33
    %v128 = vunpack.c.l.b16 %v34
    %v129 = vunpack.c.h.b16 %v34
    %v130 = vunpack.c.l.b16 %v35
    %v131 = vunpack.c.h.b16 %v35
    %v132 = vunpack.c.l.b16 %v36
    %v133 = vunpack.c.h.b16 %v36
    %v134 = vunpack.c.l.b16 %v37
    %v135 = vunpack.c.h.b16 %v37
    %v136 = vunpack.c.l.b16 %v38
    %v137 = vunpack.c.h.b16 %v38
    %v138 = vunpack.c.l.b16 %v39
    %v139 = vunpack.c.h.b16 %v39
    %v140 = vunpack.c.l.b16 %v40
    %v141 = vunpack.c.h.b16 %v40
    %v142 = vunpack.c.l.b16 %v41
    %v143 = vunpack.c.h.b16 %v41
    %v144 = vunpack.c.l.b16 %v42
    %v145 = vunpack.c.h.b16 %v42
    %v146 = vunpack.c.l.b16 %v43
    %v147 = vunpack.c.h.b16 %v43
    %v148 = vunpack.c.l.b16 %v44
    %v149 = vunpack.c.h.b16 %v44
    %v150 = vunpack.c.l.b16 %v45
    %v151 = vunpack.c.h.b16 %v45
    %v152 = vunpack.c.l.b16 %v46
    %v153 = vunpack.c.h.b16 %v46
    %v154 = vunpack.c.l.b16 %v47
    %v155 = vunpack.c.h.b16 %v47
    %v156 = vunpack.c.l.b16 %v48
    %v157 = vunpack.c.h.b16 %v48
    %v158 = vunpack.c.l.b16 %v49
    %v159 = vunpack.c.h.b16 %v49
    %v160 = vunpack.c.l.b16 %v50
    %v161 = vunpack.c.h.b16 %v50
    %v162 = vunpack.c.l.b16 %v51
    %v163 = vunpack.c.h.b16 %v51
    %v164 = vunpack.c.l.b16 %v52
    %v165 = vunpack.c.h.b16 %v52
    %v166 = vunpack.c.l.b16 %v53
    %v167 = vunpack.c.h.b16 %v53
    %v168 = vunpack.c.l.b16 %v54
    %v169 = vunpack.c.h.b16 %v54
    %v170 = vunpack.c.l.b16 %v55
    %v171 = vunpack.c.h.b16 %v55
    %v172 = vunpack.c.l.b16 %v56
    %v173 = vunpack.c.h.b16 %v56
    %v174 = vunpack.c.l.b16 %v57
    %v175 = vunpack.c.h.b16 %v57
    %v176 = vunpack.c.l.b16 %v58
    %v177 = vunpack.c.h.b16 %v58
    %v178 = vpack.c.b16 %v116, %v114
    %v179 = vpack.c.b16 %v117, %v115
    %v180 = vpack.c.b16 %v120, %v118
    %v181 = vpack.c.b16 %v121, %v119
    %v182 = vpack.c.b16 %v124, %v122
    %v183 = vpack.c.b16 %v125, %v123
    %v184 = vpack.c.b16 %v128, %v126
    %v185 = vpack.c.b16 %v129, %v127
    %v186 = vpack.c.b16 %v132, %v130
    %v187 = vpack.c.b16 %v133, %v131
    %v188 = vpack.c.b16 %v136, %v134
    %v189 = vpack.c.b16 %v137, %v135
    %v190 = vpack.c.b16 %v140, %v138
    %v191 = vpack.c.b16 %v141, %v139
    %v192 = vpack.c.b16 %v144, %v142
    %v193 = vpack.c.b16 %v145, %v143
    %v194 = vpack.c.b16 %v148, %v146
    %v195 = vpack.c.b16 %v149, %v147
    %v196 = vpack.c.b16 %v152, %v150
    %v197 = vpack.c.b16 %v153, %v151
    %v198 = vpack.c.b16 %v156, %v154
    %v199 = vpack.c.b16 %v157, %v155
    %v200 = vpack.c.b16 %v160, %v158
    %v201 = vpack.c.b16 %v161, %v159
    %v202 = vpack.c.b16 %v164, %v162
    %v203 = vpack.c.b16 %v165, %v163
    %v204 = vpack.c.b16 %v168, %v166
    %v205 = vpack.c.b16 %v169, %v167
    %v206 = vpack.c.b16 %v172, %v170
    %v207 = vpack.c.b16 %v173, %v171
    %v208 = vpack.c.b16 %v176, %v174
    %v209 = vpack.c.b16 %v177, %v175
    %242 = vmatprep.subr.bf16.mxu0 %v179
    %243 = vmatpush1.bf16.msra.mxu0 %v178
    %244 = vmatprep.subr.bf16.mxu0 %v181
    %245 = vmatpush1.bf16.msra.mxu0 %v180
    %246 = vmatprep.subr.bf16.mxu0 %v183
    %247 = vmatpush1.bf16.msra.mxu0 %v182
    %248 = vmatprep.subr.bf16.mxu0 %v185
    %249 = vmatpush1.bf16.msra.mxu0 %v184
    %250 = vmatprep.subr.bf16.mxu0 %v187
    %251 = vmatpush1.bf16.msra.mxu0 %v186
    %252 = vmatprep.subr.bf16.mxu0 %v189
    %253 = vmatpush1.bf16.msra.mxu0 %v188
    %254 = vmatprep.subr.bf16.mxu0 %v191
    %255 = vmatpush1.bf16.msra.mxu0 %v190
    %256 = vmatprep.subr.bf16.mxu0 %v193
    %257 = vmatpush1.bf16.msra.mxu0 %v192
    %258 = vmatprep.subr.bf16.mxu0 %v195
    %259 = vmatpush1.bf16.msra.mxu0 %v194
    %260 = vmatprep.subr.bf16.mxu0 %v197
    %261 = vmatpush1.bf16.msra.mxu0 %v196
    %262 = vmatprep.subr.bf16.mxu0 %v199
    %263 = vmatpush1.bf16.msra.mxu0 %v198
    %264 = vmatprep.subr.bf16.mxu0 %v201
    %265 = vmatpush1.bf16.msra.mxu0 %v200
    %266 = vmatprep.subr.bf16.mxu0 %v203
    %267 = vmatpush1.bf16.msra.mxu0 %v202
    %268 = vmatprep.subr.bf16.mxu0 %v205
    %269 = vmatpush1.bf16.msra.mxu0 %v204
    %270 = vmatprep.subr.bf16.mxu0 %v207
    %271 = vmatpush1.bf16.msra.mxu0 %v206
    %272 = vmatprep.subr.bf16.mxu0 %v209
    %273 = vmatpush1.bf16.msra.mxu0 %v208
    %274 = vmatprep.mubr.bf16.mxu0 %v79
    %275 = vmatmul.mubr.bf16.gmra.mrb[0].mxu0 %v78
    %v276 = vpop.f32.mrb[0].mxu0
    %v277 = vadd.f32 %v64, %v276
    %v278 = vpop.f32.mrb[0].mxu0
    %v279 = vadd.f32 %v68, %v278
    %v280 = vpop.f32.mrb[0].mxu0
    %v281 = vpop.f32.mrb[0].mxu0
    %282 = vdwg.mxu0
    %v283 = vpack.c.bf16 %v277, %v277
    %v284 = vpack.c.bf16 %v279, %v279
    %v287 = vcombine.low %v283, %v284
    %v289 = vunpack.c.l.s4 1983009808
    %v290 = vunpack.c.0.s8 %v289
    %v291 = vlaneseq
    %v292 = vshrl.u32 %v291, 7
    %v293 = vsub.s32 %v290, %v292
    %v294 = vrot.slane %v287, %v293
    %296 = vst [vmem:[%s3] sm:$0xf] %v294
    // Predicated region
    $region18: #{fasternet_forward.15} parent=1 // pred_check
      _
    $region19: #{fasternet_forward.15} parent=1 // pred_check_branch
      %298 = sbr.rel (0) target = $region21
    $region20: #{fasternet_forward.15} parent=1 // pred_region
      _
    $region21: #{fasternet_forward.15} parent=1 // pred_fallthru
      _
    // Predicated region
    $region22: #{fasternet_forward.15} parent=1 // pred_check
      _
    $region23: #{fasternet_forward.15} parent=1 // pred_check_branch
      %300 = sbr.rel (0) target = $region25
    $region24: #{fasternet_forward.15} parent=1 // pred_region
      _
    $region25: #{fasternet_forward.15} parent=1 // pred_fallthru
      _
    %301 = vsyncpa [#allocation3], 1

// kernel: fasternet_forward.14
$region0: #{fasternet_forward.14}
  #allocation0 [shape = 'u32[]', space=smem, size = 0x4, offset = 0x4, fixed_abs, tag = 'smem constant byte address 0x4 - core index']
  #allocation1 [shape = 'u32[144,128]{1,0:T(1,128)}', space=vmem, size = 0x12000, scoped, tag = 'internal scratch']
  %s0 = inlined_call_operand.vmem [shape: bf16[2,4,128], index: 0, kind: input, shape index: {}]
  %s1 = inlined_call_operand.hbm [shape: bf16[32,32], index: 1, kind: input, shape index: {}]
  %s2 = inlined_call_operand.hbm [shape: bf16[32,32], index: 2, kind: input, shape index: {}]
  %s3 = inlined_call_operand.hbm [shape: bf16[32,32], index: 3, kind: input, shape index: {}]
  %s4 = inlined_call_operand.hbm [shape: bf16[32,256], index: 4, kind: input, shape index: {}]
  %s5 = inlined_call_operand.vmem [shape: bf16[96,256], index: 5, kind: input, shape index: {}]
  %s6 = inlined_call_operand.hbm [shape: f32[1,256], index: 6, kind: input, shape index: {}]
  %s7 = inlined_call_operand.hbm [shape: bf16[256,128], index: 7, kind: input, shape index: {}]
  %s8 = inlined_call_operand.vmem [shape: bf16[2,4,128], index: 8, kind: output, shape index: {}]
  %s9 = sld [smem:[#allocation0]]
  $region89: #{fasternet_forward.14} parent=0
    _
  %s11 = ssub.s32 1, %s9
  %s12 = scalar_select 0, %s11, %s9
  $region1: #{fasternet_forward.14} parent=0
    #allocation2 [shape = 'u8[8192]{0}', space=vmem, size = 0x2000, scoped, tag = 'input window, operand 1, single buffered']
    #allocation3 [shape = 's32[2]{0}', space=sflag, size = 0x8, scoped, tag = 'scoped memory for fasternet_forward.14']
    #allocation4 [shape = 'u8[8192]{0}', space=vmem, size = 0x2000, scoped, tag = 'input window, operand 2, single buffered']
    #allocation5 [shape = 's32[1]{0}', space=sflag, size = 0x4, scoped, tag = 'scoped memory for fasternet_forward.14']
    #allocation6 [shape = 'u8[8192]{0}', space=vmem, size = 0x2000, scoped, tag = 'input window, operand 3, single buffered']
    #allocation7 [shape = 'u8[16384]{0}', space=vmem, size = 0x4000, scoped, tag = 'input window, operand 4, single buffered']
    #allocation8 [shape = 's32[1]{0}', space=sflag, size = 0x4, scoped, tag = 'scoped memory for fasternet_forward.14']
    #allocation9 [shape = 'u8[1024]{0}', space=vmem, size = 0x400, scoped, tag = 'input window, operand 6, single buffered']
    #allocation10 [shape = 'u8[65536]{0}', space=vmem, size = 0x10000, scoped, tag = 'input window, operand 7, single buffered']
    #allocation11 [shape = 's32[1]{0}', space=sflag, size = 0x4, scoped, tag = 'scoped memory for fasternet_forward.14']
    %13 = vsyncpa [#allocation3], 0
    %14 = vsyncpa [#allocation5], 0
    %15 = vsyncpa [#allocation8], 0
    %16 = vsyncpa [#allocation11], 0
    loop: start=0, step=1, limit=4
    $region2: #{fasternet_forward.14} parent=1 // loop_pre_header
      _
    $region3: #{fasternet_forward.14} parent=1 // loop_header
      %s18 = sphi 0, %s22
      %p19 = scmp.ge.s32.totalorder %s18, 4
      %s28 = sphi 0, %s30
      %s31 = sphi 0, %s28
      %s32 = sphi 0, %s31
      %s48 = sphi 0, %s32
      %s52 = sphi 0, %s52
      %s54 = sphi 0, %s52
      %s55 = sphi 0, %s54
      %s69 = sphi 0, %s55
      %s73 = sphi 0, %s73
      %s75 = sphi 0, %s73
      %s76 = sphi 0, %s75
      %s90 = sphi 0, %s76
      %s94 = sphi 0, %s94
      %s96 = sphi 0, %s94
      %s97 = sphi 0, %s96
      %s111 = sphi 0, %s97
      %s115 = sphi 0, %s115
      %s117 = sphi 0, %s115
      %s118 = sphi 0, %s117
      %s132 = sphi 0, %s118
      %s136 = sphi 0, %s136
      %s138 = sphi 0, %s136
      %s139 = sphi 0, %s138
      %s153 = sphi 0, %s139
      %s157 = sphi 0, %s157
      %s159 = sphi 0, %s157
      %s160 = sphi 0, %s159
      %s174 = sphi 0, %s160
      %s178 = sphi 0, %s178
      %s180 = sphi 0, %s178
      %s181 = sphi 0, %s180
      %s195 = sphi 0, %s181
      %s201 = sphi 0, %s203
      %s204 = sphi 0, %s201
      %s205 = sphi 0, %s204
      %s221 = sphi 0, %s205
    $region4: #{fasternet_forward.14} parent=1 // loop_header_branch
      %21 = sbr.rel (%p19) target = $region8
    $region5: #{fasternet_forward.14} parent=1 // loop_body
      %s23 = ssub.s32 %s18, 1
      %s24 = ssub.s32 %s18, 2
      %s25 = sadd.s32 %s18, 1
      %s26 = ssub.s32 %s18, %s25
      %p27 = scmp.eq.s32.totalorder %s26, 0
      %s29 = sadd.s32 %s28, 1
      %s30 = scalar_select %p27, %s28, %s29
      %p33 = pneg %p27
      %p34 = scmp.eq.s32.totalorder %s18, 1
      %p35 = por %p33, %p34
      %p36 = scmp.ne.s32.totalorder %s28, %s31
      %p37 = scmp.eq.s32.totalorder %s18, 0
      %p38 = por %p36, %p37
      %p39 = scmp.ne.s32.totalorder %s28, %s31
      %p40 = scmp.eq.s32.totalorder %s23, 1
      %p41 = por %p39, %p40
      %p42 = scmp.ne.s32.totalorder %s31, %s32
      %p43 = scmp.eq.s32.totalorder %s23, 0
      %p44 = por %p42, %p43
      %p45 = scmp.ne.s32.totalorder %s31, %s32
      %p46 = scmp.eq.s32.totalorder %s24, 1
      %p47 = por %p45, %p46
      %p49 = scmp.ne.s32.totalorder %s32, %s48
      %p50 = scmp.eq.s32.totalorder %s24, 0
      %p51 = por %p49, %p50
      %s53 = sadd.s32 %s52, 1
      %p56 = scmp.eq.s32.totalorder %s18, 1
      %p57 = scmp.ne.s32.totalorder %s52, %s54
      %p58 = scmp.eq.s32.totalorder %s18, 0
      %p59 = por %p57, %p58
      %p60 = scmp.ne.s32.totalorder %s52, %s54
      %p61 = scmp.eq.s32.totalorder %s23, 1
      %p62 = por %p60, %p61
      %p63 = scmp.ne.s32.totalorder %s54, %s55
      %p64 = scmp.eq.s32.totalorder %s23, 0
      %p65 = por %p63, %p64
      %p66 = scmp.ne.s32.totalorder %s54, %s55
      %p67 = scmp.eq.s32.totalorder %s24, 1
      %p68 = por %p66, %p67
      %p70 = scmp.ne.s32.totalorder %s55, %s69
      %p71 = scmp.eq.s32.totalorder %s24, 0
      %p72 = por %p70, %p71
      %s74 = sadd.s32 %s73, 1
      %p77 = scmp.eq.s32.totalorder %s18, 1
      %p78 = scmp.ne.s32.totalorder %s73, %s75
      %p79 = scmp.eq.s32.totalorder %s18, 0
      %p80 = por %p78, %p79
      %p81 = scmp.ne.s32.totalorder %s73, %s75
      %p82 = scmp.eq.s32.totalorder %s23, 1
      %p83 = por %p81, %p82
      %p84 = scmp.ne.s32.totalorder %s75, %s76
      %p85 = scmp.eq.s32.totalorder %s23, 0
      %p86 = por %p84, %p85
      %p87 = scmp.ne.s32.totalorder %s75, %s76
      %p88 = scmp.eq.s32.totalorder %s24, 1
      %p89 = por %p87, %p88
      %p91 = scmp.ne.s32.totalorder %s76, %s90
      %p92 = scmp.eq.s32.totalorder %s24, 0
      %p93 = por %p91, %p92
      %s95 = sadd.s32 %s94, 1
      %p98 = scmp.eq.s32.totalorder %s18, 1
      %p99 = scmp.ne.s32.totalorder %s94, %s96
      %p100 = scmp.eq.s32.totalorder %s18, 0
      %p101 = por %p99, %p100
      %p102 = scmp.ne.s32.totalorder %s94, %s96
      %p103 = scmp.eq.s32.totalorder %s23, 1
      %p104 = por %p102, %p103
      %p105 = scmp.ne.s32.totalorder %s96, %s97
      %p106 = scmp.eq.s32.totalorder %s23, 0
      %p107 = por %p105, %p106
      %p108 = scmp.ne.s32.totalorder %s96, %s97
      %p109 = scmp.eq.s32.totalorder %s24, 1
      %p110 = por %p108, %p109
      %p112 = scmp.ne.s32.totalorder %s97, %s111
      %p113 = scmp.eq.s32.totalorder %s24, 0
      %p114 = por %p112, %p113
      %s116 = sadd.s32 %s115, 1
      %p119 = scmp.eq.s32.totalorder %s18, 1
      %p120 = scmp.ne.s32.totalorder %s115, %s117
      %p121 = scmp.eq.s32.totalorder %s18, 0
      %p122 = por %p120, %p121
      %p123 = scmp.ne.s32.totalorder %s115, %s117
      %p124 = scmp.eq.s32.totalorder %s23, 1
      %p125 = por %p123, %p124
      %p126 = scmp.ne.s32.totalorder %s117, %s118
      %p127 = scmp.eq.s32.totalorder %s23, 0
      %p128 = por %p126, %p127
      %p129 = scmp.ne.s32.totalorder %s117, %s118
      %p130 = scmp.eq.s32.totalorder %s24, 1
      %p131 = por %p129, %p130
      %p133 = scmp.ne.s32.totalorder %s118, %s132
      %p134 = scmp.eq.s32.totalorder %s24, 0
      %p135 = por %p133, %p134
      %s137 = sadd.s32 %s136, 1
      %p140 = scmp.eq.s32.totalorder %s18, 1
      %p141 = scmp.ne.s32.totalorder %s136, %s138
      %p142 = scmp.eq.s32.totalorder %s18, 0
      %p143 = por %p141, %p142
      %p144 = scmp.ne.s32.totalorder %s136, %s138
      %p145 = scmp.eq.s32.totalorder %s23, 1
      %p146 = por %p144, %p145
      %p147 = scmp.ne.s32.totalorder %s138, %s139
      %p148 = scmp.eq.s32.totalorder %s23, 0
      %p149 = por %p147, %p148
      %p150 = scmp.ne.s32.totalorder %s138, %s139
      %p151 = scmp.eq.s32.totalorder %s24, 1
      %p152 = por %p150, %p151
      %p154 = scmp.ne.s32.totalorder %s139, %s153
      %p155 = scmp.eq.s32.totalorder %s24, 0
      %p156 = por %p154, %p155
      %s158 = sadd.s32 %s157, 1
      %p161 = scmp.eq.s32.totalorder %s18, 1
      %p162 = scmp.ne.s32.totalorder %s157, %s159
      %p163 = scmp.eq.s32.totalorder %s18, 0
      %p164 = por %p162, %p163
      %p165 = scmp.ne.s32.totalorder %s157, %s159
      %p166 = scmp.eq.s32.totalorder %s23, 1
      %p167 = por %p165, %p166
      %p168 = scmp.ne.s32.totalorder %s159, %s160
      %p169 = scmp.eq.s32.totalorder %s23, 0
      %p170 = por %p168, %p169
      %p171 = scmp.ne.s32.totalorder %s159, %s160
      %p172 = scmp.eq.s32.totalorder %s24, 1
      %p173 = por %p171, %p172
      %p175 = scmp.ne.s32.totalorder %s160, %s174
      %p176 = scmp.eq.s32.totalorder %s24, 0
      %p177 = por %p175, %p176
      %s179 = sadd.s32 %s178, 1
      %p182 = scmp.eq.s32.totalorder %s18, 1
      %p183 = scmp.ne.s32.totalorder %s178, %s180
      %p184 = scmp.eq.s32.totalorder %s18, 0
      %p185 = por %p183, %p184
      %p186 = scmp.ne.s32.totalorder %s178, %s180
      %p187 = scmp.eq.s32.totalorder %s23, 1
      %p188 = por %p186, %p187
      %p189 = scmp.ne.s32.totalorder %s180, %s181
      %p190 = scmp.eq.s32.totalorder %s23, 0
      %p191 = por %p189, %p190
      %p192 = scmp.ne.s32.totalorder %s180, %s181
      %p193 = scmp.eq.s32.totalorder %s24, 1
      %p194 = por %p192, %p193
      %p196 = scmp.ne.s32.totalorder %s181, %s195
      %p197 = scmp.eq.s32.totalorder %s24, 0
      %p198 = por %p196, %p197
      %s199 = ssub.s32 %s18, %s25
      %p200 = scmp.eq.s32.totalorder %s199, 0
      %s202 = sadd.s32 %s201, 1
      %s203 = scalar_select %p200, %s201, %s202
      %p206 = pneg %p200
      %p207 = scmp.eq.s32.totalorder %s18, 1
      %p208 = por %p206, %p207
      %p209 = scmp.ne.s32.totalorder %s201, %s204
      %p210 = scmp.eq.s32.totalorder %s18, 0
      %p211 = por %p209, %p210
      %p212 = scmp.ne.s32.totalorder %s201, %s204
      %p213 = scmp.eq.s32.totalorder %s23, 1
      %p214 = por %p212, %p213
      %p215 = scmp.ne.s32.totalorder %s204, %s205
      %p216 = scmp.eq.s32.totalorder %s23, 0
      %p217 = por %p215, %p216
      %p218 = scmp.ne.s32.totalorder %s204, %s205
      %p219 = scmp.eq.s32.totalorder %s24, 1
      %p220 = por %p218, %p219
      %p222 = scmp.ne.s32.totalorder %s205, %s221
      %p223 = scmp.eq.s32.totalorder %s24, 0
      %p224 = por %p222, %p223
      %p225 = scmp.le.s32.totalorder 1, %s18
      %p226 = scmp.lt.s32.totalorder %s18, 3
      %p227 = pnand %p225, %p226
      %p228 = pneg %p227
      // Predicated region
      $region9: #{fasternet_forward.14} parent=5 // pred_check
        _
      $region10: #{fasternet_forward.14} parent=5 // pred_check_branch
        %230 = sbr.rel (%p227) target = $region12
      $region11: #{fasternet_forward.14} parent=5 // pred_region
        %s231 = ssub.s32 %s18, 1
        // Predicated region
        $region13: #{fasternet_forward.14} parent=11 // pred_check
          %p232 = pneg %p65
        $region14: #{fasternet_forward.14} parent=11 // pred_check_branch
          %234 = sbr.rel (%p232) target = $region16
        $region15: #{fasternet_forward.14} parent=11 // pred_region
          %s236 = ssub.s32 256, 256
          %237 = vsyncadd [#allocation3], %s236
          %s238 = sshll.u32 [#allocation2], 4
          %s239 = int_to_ptr.vmem [resolvable:$true] %s238
          %244 = dma.hbm_to_vmem [thread:$0]  %s1, 256, %s239, [#allocation3], 64, 64, 4
        $region16: #{fasternet_forward.14} parent=11 // pred_fallthru
          _
        // Predicated region
        $region17: #{fasternet_forward.14} parent=11 // pred_check
          %p245 = pneg %p86
        $region18: #{fasternet_forward.14} parent=11 // pred_check_branch
          %247 = sbr.rel (%p245) target = $region20
        $region19: #{fasternet_forward.14} parent=11 // pred_region
          %s249 = ssub.s32 256, 256
          %250 = vsyncadd [#allocation5], %s249
          %s251 = sshll.u32 [#allocation4], 4
          %s252 = int_to_ptr.vmem [resolvable:$true] %s251
          %257 = dma.hbm_to_vmem [thread:$0]  %s2, 256, %s252, [#allocation5], 64, 64, 4
        $region20: #{fasternet_forward.14} parent=11 // pred_fallthru
          _
        // Predicated region
        $region21: #{fasternet_forward.14} parent=11 // pred_check
          %p258 = pneg %p107
        $region22: #{fasternet_forward.14} parent=11 // pred_check_branch
          %260 = sbr.rel (%p258) target = $region24
        $region23: #{fasternet_forward.14} parent=11 // pred_region
          %s262 = ssub.s32 256, 256
          %263 = vsyncadd [#allocation5], %s262
          %s264 = sshll.u32 [#allocation6], 4
          %s265 = int_to_ptr.vmem [resolvable:$true] %s264
          %270 = dma.hbm_to_vmem [thread:$0]  %s3, 256, %s265, [#allocation5], 64, 64, 4
        $region24: #{fasternet_forward.14} parent=11 // pred_fallthru
          _
        // Predicated region
        $region25: #{fasternet_forward.14} parent=11 // pred_check
          %p271 = pneg %p128
        $region26: #{fasternet_forward.14} parent=11 // pred_check_branch
          %273 = sbr.rel (%p271) target = $region28
        $region27: #{fasternet_forward.14} parent=11 // pred_region
          %s275 = ssub.s32 512, 512
          %276 = vsyncadd [#allocation8], %s275
          %s277 = sshll.u32 [#allocation7], 4
          %s278 = int_to_ptr.vmem [resolvable:$true] %s277
          %283 = dma.hbm_to_vmem [thread:$0]  %s4, 512, %s278, [#allocation8], 128, 128, 8
        $region28: #{fasternet_forward.14} parent=11 // pred_fallthru
          _
        // Predicated region
        $region29: #{fasternet_forward.14} parent=11 // pred_check
          %p284 = pneg %p149
        $region30: #{fasternet_forward.14} parent=11 // pred_check_branch
          %286 = sbr.rel (%p284) target = $region32
        $region31: #{fasternet_forward.14} parent=11 // pred_region
          _
        $region32: #{fasternet_forward.14} parent=11 // pred_fallthru
          _
        // Predicated region
        $region33: #{fasternet_forward.14} parent=11 // pred_check
          %p287 = pneg %p170
        $region34: #{fasternet_forward.14} parent=11 // pred_check_branch
          %289 = sbr.rel (%p287) target = $region36
        $region35: #{fasternet_forward.14} parent=11 // pred_region
          %s291 = ssub.s32 32, 32
          %292 = vsyncadd [#allocation8], %s291
          %s294 = sshll.u32 [#allocation9], 4
          %s295 = int_to_ptr.vmem [resolvable:$true] %s294
          %297 = dma.hbm_to_vmem [thread:$0]  %s6, 32, %s295, [#allocation8]
        $region36: #{fasternet_forward.14} parent=11 // pred_fallthru
          _
        // Predicated region
        $region37: #{fasternet_forward.14} parent=11 // pred_check
          %p298 = pneg %p191
        $region38: #{fasternet_forward.14} parent=11 // pred_check_branch
          %300 = sbr.rel (%p298) target = $region40
        $region39: #{fasternet_forward.14} parent=11 // pred_region
          %s302 = ssub.s32 2048, 2048
          %303 = vsyncadd [#allocation11], %s302
          %s304 = sshll.u32 [#allocation10], 4
          %s305 = int_to_ptr.vmem [resolvable:$true] %s304
          %310 = dma.hbm_to_vmem [thread:$0]  %s7, 2048, %s305, [#allocation11], 64, 64, 4
        $region40: #{fasternet_forward.14} parent=11 // pred_fallthru
          _
      $region12: #{fasternet_forward.14} parent=5 // pred_fallthru
        _
      %p311 = scmp.lt.s32.totalorder %s18, 2
      // Predicated region
      $region41: #{fasternet_forward.14} parent=5 // pred_check
        %p312 = pneg %p311
      $region42: #{fasternet_forward.14} parent=5 // pred_check_branch
        %314 = sbr.rel (%p312) target = $region44
      $region43: #{fasternet_forward.14} parent=5 // pred_region
        // Predicated region
        $region45: #{fasternet_forward.14} parent=43 // pred_check
          %p315 = pneg %p38
        $region46: #{fasternet_forward.14} parent=43 // pred_check_branch
          %317 = sbr.rel (%p315) target = $region48
        $region47: #{fasternet_forward.14} parent=43 // pred_region
          %p318 = scmp.lt.s32.totalorder %s18, 1
          %s319 = scalar_select %p318, %s18, 1
          %s320 = smul.addr %s319, 2
          %s321 = scalar_lea.vmem %s0, %s320
        $region48: #{fasternet_forward.14} parent=43 // pred_fallthru
          _
      $region44: #{fasternet_forward.14} parent=5 // pred_fallthru
        _
      %p322 = scmp.le.s32.totalorder 1, %s18
      %p323 = scmp.lt.s32.totalorder %s18, 3
      %p324 = pnand %p322, %p323
      %p325 = pneg %p324
      // Predicated region
      $region49: #{fasternet_forward.14} parent=5 // pred_check
        _
      $region50: #{fasternet_forward.14} parent=5 // pred_check_branch
        %327 = sbr.rel (%p324) target = $region52
      $region51: #{fasternet_forward.14} parent=5 // pred_region
        %s328 = ssub.s32 %s18, 1
        // Predicated region
        $region53: #{fasternet_forward.14} parent=51 // pred_check
          %p329 = pneg %p65
        $region54: #{fasternet_forward.14} parent=51 // pred_check_branch
          %331 = sbr.rel (%p329) target = $region56
        $region55: #{fasternet_forward.14} parent=51 // pred_region
          %332 = dma.done [#allocation3], 256
        $region56: #{fasternet_forward.14} parent=51 // pred_fallthru
          _
        // Predicated region
        $region57: #{fasternet_forward.14} parent=51 // pred_check
          %p333 = pneg %p86
        $region58: #{fasternet_forward.14} parent=51 // pred_check_branch
          %335 = sbr.rel (%p333) target = $region60
        $region59: #{fasternet_forward.14} parent=51 // pred_region
          %336 = dma.done [#allocation5], 256
        $region60: #{fasternet_forward.14} parent=51 // pred_fallthru
          _
        // Predicated region
        $region61: #{fasternet_forward.14} parent=51 // pred_check
          %p337 = pneg %p107
        $region62: #{fasternet_forward.14} parent=51 // pred_check_branch
          %339 = sbr.rel (%p337) target = $region64
        $region63: #{fasternet_forward.14} parent=51 // pred_region
          %340 = dma.done [#allocation5], 256
        $region64: #{fasternet_forward.14} parent=51 // pred_fallthru
          _
        // Predicated region
        $region65: #{fasternet_forward.14} parent=51 // pred_check
          %p341 = pneg %p128
        $region66: #{fasternet_forward.14} parent=51 // pred_check_branch
          %343 = sbr.rel (%p341) target = $region68
        $region67: #{fasternet_forward.14} parent=51 // pred_region
          %344 = dma.done [#allocation8], 512
        $region68: #{fasternet_forward.14} parent=51 // pred_fallthru
          _
        // Predicated region
        $region69: #{fasternet_forward.14} parent=51 // pred_check
          %p345 = pneg %p170
        $region70: #{fasternet_forward.14} parent=51 // pred_check_branch
          %347 = sbr.rel (%p345) target = $region72
        $region71: #{fasternet_forward.14} parent=51 // pred_region
          %348 = dma.done [#allocation8], 32
        $region72: #{fasternet_forward.14} parent=51 // pred_fallthru
          _
        // Predicated region
        $region73: #{fasternet_forward.14} parent=51 // pred_check
          %p349 = pneg %p191
        $region74: #{fasternet_forward.14} parent=51 // pred_check_branch
          %351 = sbr.rel (%p349) target = $region76
        $region75: #{fasternet_forward.14} parent=51 // pred_region
          %352 = dma.done [#allocation11], 2048
        $region76: #{fasternet_forward.14} parent=51 // pred_fallthru
          _
        %p353 = scmp.lt.s32.totalorder %s23, 1
        %s354 = scalar_select %p353, %s23, 1
        %s355 = smul.addr %s354, 2
        %s356 = scalar_lea.vmem %s0, %s355
        %p357 = pneg %p44
        %p358 = pneg %p41
        %p359 = pneg %p65
        %p360 = pneg %p62
        %p361 = pneg %p86
        %p362 = pneg %p83
        %p363 = pneg %p107
        %p364 = pneg %p104
        %p365 = pneg %p128
        %p366 = pneg %p125
        %p367 = pneg %p149
        %p368 = pneg %p146
        %p369 = pneg %p170
        %p370 = pneg %p167
        %p371 = pneg %p191
        %p372 = pneg %p188
        %p373 = pneg %p217
        %p374 = pneg %p214
        %p375 = scmp.lt.s32.totalorder %s23, 1
        %s376 = scalar_select %p375, %s23, 1
        %s377 = smul.addr %s376, 2
        %s378 = scalar_lea.vmem %s8, %s377
        %p379 = scmp.lt.s32.totalorder %s23, 1
        %s380 = scalar_select %p379, %s23, 1
        %s381 = smul.addr %s380, 2
        %s382 = scalar_lea.vmem %s0, %s381
        %p383 = scmp.lt.s32.totalorder %s23, 1
        %s384 = scalar_select %p383, %s23, 1
        %s385 = smul.addr %s384, 2
        %s386 = scalar_lea.vmem %s8, %s385
        %v388 = vld [vmem:[%s382] sm:$0x3]
        %v391 = vunpack.c.l.s4 1983009808
        %v392 = vunpack.c.0.s8 %v391
        %v393 = vlaneseq
        %v394 = vshrl.u32 %v393, 7
        %v395 = vsub.s32 %v392, %v394
        %v396 = vrot.slane %v388, %v395
        %v398 = vshrl.u32 %v396, 16
        %v400 = vrot.slane %v398, 7
        %v401 = vshll.u32 %v396, 16
        %v403 = vor.u32 %v400, %v401
        %vm405 = vcmask 1040384
        %vm406 = vsmask.f32 256
        %vm407 = vmand %vm405, %vm406
        %v408 = vsel %vm407, 0, %v403
        %v409 = vrot.slane %v401, 1
        %v410 = vor.u32 %v398, %v409
        %vm412 = vcmask 1041408
        %vm413 = vsmask.f32 1280
        %vm414 = vmand %vm412, %vm413
        %v415 = vsel %vm414, %v410, 0
        %v416 = vld [vmem:[#allocation4] sm:$0xf]
        %v417 = vld [vmem:[#allocation4 + $0x4] sm:$0xf]
        %v418 = vld [vmem:[#allocation4 + $0x8] sm:$0xf]
        %v419 = vld [vmem:[#allocation4 + $0xc] sm:$0xf]
        %v420 = vld [vmem:[#allocation2] sm:$0xf]
        %v421 = vld [vmem:[#allocation2 + $0x4] sm:$0xf]
        %v422 = vld [vmem:[#allocation2 + $0x8] sm:$0xf]
        %v423 = vld [vmem:[#allocation2 + $0xc] sm:$0xf]
        %v428 = vunpack.c.l.b16 %v420
        %v429 = vunpack.c.l.b16 %v421
        %v430 = vunpack.c.l.b16 %v422
        %v431 = vunpack.c.l.b16 %v423
        %v432 = vpack.c.b16 %v429, %v428
        %v433 = vpack.c.b16 %v431, %v430
        %vm436 = vcmask 261120
        %v438 = vsel %vm436, %v408, 0
        %440 = vmatprep.subr.bf16.mxu0 0
        %441 = vmatpush1.bf16.msra.mxu0 %v432
        %442 = vmatprep.subr.bf16.mxu0 0
        %443 = vmatpush1.bf16.msra.mxu0 %v433
        %444 = vmatprep.subr.bf16.mxu0 0
        %445 = vmatpush1.bf16.msra.mxu0 0
        %446 = vmatprep.subr.bf16.mxu0 0
        %447 = vmatpush1.bf16.msra.mxu0 0
        %448 = vmatprep.subr.bf16.mxu0 0
        %449 = vmatpush1.bf16.msra.mxu0 0
        %450 = vmatprep.subr.bf16.mxu0 0
        %451 = vmatpush1.bf16.msra.mxu0 0
        %452 = vmatprep.subr.bf16.mxu0 0
        %453 = vmatpush1.bf16.msra.mxu0 0
        %454 = vmatprep.subr.bf16.mxu0 0
        %455 = vmatpush1.bf16.msra.mxu0 0
        %456 = vmatprep.subr.bf16.mxu0 0
        %457 = vmatpush1.bf16.msra.mxu0 0
        %458 = vmatprep.subr.bf16.mxu0 0
        %459 = vmatpush1.bf16.msra.mxu0 0
        %460 = vmatprep.subr.bf16.mxu0 0
        %461 = vmatpush1.bf16.msra.mxu0 0
        %462 = vmatprep.subr.bf16.mxu0 0
        %463 = vmatpush1.bf16.msra.mxu0 0
        %464 = vmatprep.subr.bf16.mxu0 0
        %465 = vmatpush1.bf16.msra.mxu0 0
        %466 = vmatprep.subr.bf16.mxu0 0
        %467 = vmatpush1.bf16.msra.mxu0 0
        %468 = vmatprep.subr.bf16.mxu0 0
        %469 = vmatpush1.bf16.msra.mxu0 0
        %470 = vmatprep.subr.bf16.mxu0 0
        %471 = vmatpush1.bf16.msra.mxu0 0
        %472 = vmatprep.mubr.bf16.mxu0 0
        %473 = vmatmul.mubr.bf16.gmra.mrb[0].mxu0 %v438
        %v474 = vpop.f32.mrb[0].mxu0
        %v475 = vadd.f32 0.0, %v474
        %v476 = vpop.f32.mrb[0].mxu0
        %v477 = vpop.f32.mrb[0].mxu0
        %v478 = vpop.f32.mrb[0].mxu0
        %479 = vdwg.mxu0
        %v484 = vunpack.c.l.b16 %v416
        %v485 = vunpack.c.l.b16 %v417
        %v486 = vunpack.c.l.b16 %v418
        %v487 = vunpack.c.l.b16 %v419
        %v488 = vpack.c.b16 %v485, %v484
        %v489 = vpack.c.b16 %v487, %v486
        %v493 = vsel %vm436, %v388, 0
        %495 = vmatprep.subr.bf16.mxu0 0
        %496 = vmatpush1.bf16.msra.mxu0 %v488
        %497 = vmatprep.subr.bf16.mxu0 0
        %498 = vmatpush1.bf16.msra.mxu0 %v489
        %499 = vmatprep.subr.bf16.mxu0 0
        %500 = vmatpush1.bf16.msra.mxu0 0
        %501 = vmatprep.subr.bf16.mxu0 0
        %502 = vmatpush1.bf16.msra.mxu0 0
        %503 = vmatprep.subr.bf16.mxu0 0
        %504 = vmatpush1.bf16.msra.mxu0 0
        %505 = vmatprep.subr.bf16.mxu0 0
        %506 = vmatpush1.bf16.msra.mxu0 0
        %507 = vmatprep.subr.bf16.mxu0 0
        %508 = vmatpush1.bf16.msra.mxu0 0
        %509 = vmatprep.subr.bf16.mxu0 0
        %510 = vmatpush1.bf16.msra.mxu0 0
        %511 = vmatprep.subr.bf16.mxu0 0
        %512 = vmatpush1.bf16.msra.mxu0 0
        %513 = vmatprep.subr.bf16.mxu0 0
        %514 = vmatpush1.bf16.msra.mxu0 0
        %515 = vmatprep.subr.bf16.mxu0 0
        %516 = vmatpush1.bf16.msra.mxu0 0
        %517 = vmatprep.subr.bf16.mxu0 0
        %518 = vmatpush1.bf16.msra.mxu0 0
        %519 = vmatprep.subr.bf16.mxu0 0
        %520 = vmatpush1.bf16.msra.mxu0 0
        %521 = vmatprep.subr.bf16.mxu0 0
        %522 = vmatpush1.bf16.msra.mxu0 0
        %523 = vmatprep.subr.bf16.mxu0 0
        %524 = vmatpush1.bf16.msra.mxu0 0
        %525 = vmatprep.subr.bf16.mxu0 0
        %526 = vmatpush1.bf16.msra.mxu0 0
        %527 = vmatprep.mubr.bf16.mxu0 0
        %528 = vmatmul.mubr.bf16.gmra.mrb[0].mxu0 %v493
        %v529 = vpop.f32.mrb[0].mxu0
        %v530 = vadd.f32 %v475, %v529
        %v531 = vpop.f32.mrb[0].mxu0
        %v532 = vpop.f32.mrb[0].mxu0
        %v533 = vpop.f32.mrb[0].mxu0
        %534 = vdwg.mxu0
        %v535 = vld [vmem:[#allocation6] sm:$0xf]
        %v536 = vld [vmem:[#allocation6 + $0x4] sm:$0xf]
        %v537 = vld [vmem:[#allocation6 + $0x8] sm:$0xf]
        %v538 = vld [vmem:[#allocation6 + $0xc] sm:$0xf]
        %v543 = vunpack.c.l.b16 %v535
        %v544 = vunpack.c.l.b16 %v536
        %v545 = vunpack.c.l.b16 %v537
        %v546 = vunpack.c.l.b16 %v538
        %v547 = vpack.c.b16 %v544, %v543
        %v548 = vpack.c.b16 %v546, %v545
        %v552 = vsel %vm436, %v415, 0
        %554 = vmatprep.subr.bf16.mxu0 0
        %555 = vmatpush1.bf16.msra.mxu0 %v547
        %556 = vmatprep.subr.bf16.mxu0 0
        %557 = vmatpush1.bf16.msra.mxu0 %v548
        %558 = vmatprep.subr.bf16.mxu0 0
        %559 = vmatpush1.bf16.msra.mxu0 0
        %560 = vmatprep.subr.bf16.mxu0 0
        %561 = vmatpush1.bf16.msra.mxu0 0
        %562 = vmatprep.subr.bf16.mxu0 0
        %563 = vmatpush1.bf16.msra.mxu0 0
        %564 = vmatprep.subr.bf16.mxu0 0
        %565 = vmatpush1.bf16.msra.mxu0 0
        %566 = vmatprep.subr.bf16.mxu0 0
        %567 = vmatpush1.bf16.msra.mxu0 0
        %568 = vmatprep.subr.bf16.mxu0 0
        %569 = vmatpush1.bf16.msra.mxu0 0
        %570 = vmatprep.subr.bf16.mxu0 0
        %571 = vmatpush1.bf16.msra.mxu0 0
        %572 = vmatprep.subr.bf16.mxu0 0
        %573 = vmatpush1.bf16.msra.mxu0 0
        %574 = vmatprep.subr.bf16.mxu0 0
        %575 = vmatpush1.bf16.msra.mxu0 0
        %576 = vmatprep.subr.bf16.mxu0 0
        %577 = vmatpush1.bf16.msra.mxu0 0
        %578 = vmatprep.subr.bf16.mxu0 0
        %579 = vmatpush1.bf16.msra.mxu0 0
        %580 = vmatprep.subr.bf16.mxu0 0
        %581 = vmatpush1.bf16.msra.mxu0 0
        %582 = vmatprep.subr.bf16.mxu0 0
        %583 = vmatpush1.bf16.msra.mxu0 0
        %584 = vmatprep.subr.bf16.mxu0 0
        %585 = vmatpush1.bf16.msra.mxu0 0
        %586 = vmatprep.mubr.bf16.mxu0 0
        %587 = vmatmul.mubr.bf16.gmra.mrb[0].mxu0 %v552
        %v588 = vpop.f32.mrb[0].mxu0
        %v589 = vadd.f32 0.0, %v588
        %v590 = vpop.f32.mrb[0].mxu0
        %v591 = vpop.f32.mrb[0].mxu0
        %v592 = vpop.f32.mrb[0].mxu0
        %593 = vdwg.mxu0
        %v594 = vadd.f32 %v530, %v589
        %v595 = vpack.c.bf16 %v594, %v594
        %v596 = vld [vmem:[#allocation7] sm:$0xff]
        %v597 = vld [vmem:[#allocation7 + $0x8] sm:$0xff]
        %v598 = vld [vmem:[#allocation7 + $0x10] sm:$0xff]
        %v599 = vld [vmem:[#allocation7 + $0x18] sm:$0xff]
        %v600 = vld [vmem:[%s5] sm:$0xff]
        %v601 = vld [vmem:[%s5 + $0x8] sm:$0xff]
        %v602 = vld [vmem:[%s5 + $0x10] sm:$0xff]
        %v603 = vld [vmem:[%s5 + $0x18] sm:$0xff]
        %v604 = vld [vmem:[%s5 + $0x20] sm:$0xff]
        %v605 = vld [vmem:[%s5 + $0x28] sm:$0xff]
        %v606 = vld [vmem:[%s5 + $0x30] sm:$0xff]
        %v607 = vld [vmem:[%s5 + $0x38] sm:$0xff]
        %v608 = vld [vmem:[%s5 + $0x40] sm:$0xff]
        %v609 = vld [vmem:[%s5 + $0x48] sm:$0xff]
        %v610 = vld [vmem:[%s5 + $0x50] sm:$0xff]
        %v611 = vld [vmem:[%s5 + $0x58] sm:$0xff]
        %612 = vrot.lane.b32.xlu0 %v396, 96
        %v613 = vpop.permute.xlu0 %612
        %v626 = vunpack.c.l.b16 %v600
        %v627 = vunpack.c.h.b16 %v600
        %v628 = vunpack.c.l.b16 %v601
        %v629 = vunpack.c.h.b16 %v601
        %v630 = vunpack.c.l.b16 %v602
        %v631 = vunpack.c.h.b16 %v602
        %v632 = vunpack.c.l.b16 %v603
        %v633 = vunpack.c.h.b16 %v603
        %v634 = vunpack.c.l.b16 %v604
        %v635 = vunpack.c.h.b16 %v604
        %v636 = vunpack.c.l.b16 %v605
        %v637 = vunpack.c.h.b16 %v605
        %v638 = vunpack.c.l.b16 %v606
        %v639 = vunpack.c.h.b16 %v606
        %v640 = vunpack.c.l.b16 %v607
        %v641 = vunpack.c.h.b16 %v607
        %v642 = vunpack.c.l.b16 %v608
        %v643 = vunpack.c.h.b16 %v608
        %v644 = vunpack.c.l.b16 %v609
        %v645 = vunpack.c.h.b16 %v609
        %v646 = vunpack.c.l.b16 %v610
        %v647 = vunpack.c.h.b16 %v610
        %v648 = vunpack.c.l.b16 %v611
        %v649 = vunpack.c.h.b16 %v611
        %v650 = vpack.c.b16 %v628, %v626
        %v651 = vpack.c.b16 %v629, %v627
        %v652 = vpack.c.b16 %v632, %v630
        %v653 = vpack.c.b16 %v633, %v631
        %v654 = vpack.c.b16 %v636, %v634
        %v655 = vpack.c.b16 %v637, %v635
        %v656 = vpack.c.b16 %v640, %v638
        %v657 = vpack.c.b16 %v641, %v639
        %v658 = vpack.c.b16 %v644, %v642
        %v659 = vpack.c.b16 %v645, %v643
        %v660 = vpack.c.b16 %v648, %v646
        %v661 = vpack.c.b16 %v649, %v647
        %vm674 = vcmask 785408
        %v676 = vsel %vm674, %v613, 0
        %678 = vmatprep.subr.bf16.mxu0 %v651
        %679 = vmatpush1.bf16.msra.mxu0 %v650
        %680 = vmatprep.subr.bf16.mxu0 %v653
        %681 = vmatpush1.bf16.msra.mxu0 %v652
        %682 = vmatprep.subr.bf16.mxu0 %v655
        %683 = vmatpush1.bf16.msra.mxu0 %v654
        %684 = vmatprep.subr.bf16.mxu0 %v657
        %685 = vmatpush1.bf16.msra.mxu0 %v656
        %686 = vmatprep.subr.bf16.mxu0 %v659
        %687 = vmatpush1.bf16.msra.mxu0 %v658
        %688 = vmatprep.subr.bf16.mxu0 %v661
        %689 = vmatpush1.bf16.msra.mxu0 %v660
        %690 = vmatprep.subr.bf16.mxu0 0
        %691 = vmatpush1.bf16.msra.mxu0 0
        %692 = vmatprep.subr.bf16.mxu0 0
        %693 = vmatpush1.bf16.msra.mxu0 0
        %694 = vmatprep.subr.bf16.mxu0 0
        %695 = vmatpush1.bf16.msra.mxu0 0
        %696 = vmatprep.subr.bf16.mxu0 0
        %697 = vmatpush1.bf16.msra.mxu0 0
        %698 = vmatprep.subr.bf16.mxu0 0
        %699 = vmatpush1.bf16.msra.mxu0 0
        %700 = vmatprep.subr.bf16.mxu0 0
        %701 = vmatpush1.bf16.msra.mxu0 0
        %702 = vmatprep.subr.bf16.mxu0 0
        %703 = vmatpush1.bf16.msra.mxu0 0
        %704 = vmatprep.subr.bf16.mxu0 0
        %705 = vmatpush1.bf16.msra.mxu0 0
        %706 = vmatprep.subr.bf16.mxu0 0
        %707 = vmatpush1.bf16.msra.mxu0 0
        %708 = vmatprep.subr.bf16.mxu0 0
        %709 = vmatpush1.bf16.msra.mxu0 0
        %710 = vmatprep.mubr.bf16.mxu0 0
        %711 = vmatmul.mubr.bf16.gmra.mrb[0].mxu0 %v676
        %v712 = vpop.f32.mrb[0].mxu0
        %v713 = vadd.f32 0.0, %v712
        %v714 = vpop.f32.mrb[0].mxu0
        %v715 = vadd.f32 0.0, %v714
        %v716 = vpop.f32.mrb[0].mxu0
        %v717 = vpop.f32.mrb[0].mxu0
        %718 = vdwg.mxu0
        %v723 = vunpack.c.l.b16 %v596
        %v724 = vunpack.c.h.b16 %v596
        %v725 = vunpack.c.l.b16 %v597
        %v726 = vunpack.c.h.b16 %v597
        %v727 = vunpack.c.l.b16 %v598
        %v728 = vunpack.c.h.b16 %v598
        %v729 = vunpack.c.l.b16 %v599
        %v730 = vunpack.c.h.b16 %v599
        %v731 = vpack.c.b16 %v725, %v723
        %v732 = vpack.c.b16 %v726, %v724
        %v733 = vpack.c.b16 %v729, %v727
        %v734 = vpack.c.b16 %v730, %v728
        %v740 = vsel %vm436, %v595, 0
        %742 = vmatprep.subr.bf16.mxu0 %v732
        %743 = vmatpush1.bf16.msra.mxu0 %v731
        %744 = vmatprep.subr.bf16.mxu0 %v734
        %745 = vmatpush1.bf16.msra.mxu0 %v733
        %746 = vmatprep.subr.bf16.mxu0 0
        %747 = vmatpush1.bf16.msra.mxu0 0
        %748 = vmatprep.subr.bf16.mxu0 0
        %749 = vmatpush1.bf16.msra.mxu0 0
        %750 = vmatprep.subr.bf16.mxu0 0
        %751 = vmatpush1.bf16.msra.mxu0 0
        %752 = vmatprep.subr.bf16.mxu0 0
        %753 = vmatpush1.bf16.msra.mxu0 0
        %754 = vmatprep.subr.bf16.mxu0 0
        %755 = vmatpush1.bf16.msra.mxu0 0
        %756 = vmatprep.subr.bf16.mxu0 0
        %757 = vmatpush1.bf16.msra.mxu0 0
        %758 = vmatprep.subr.bf16.mxu0 0
        %759 = vmatpush1.bf16.msra.mxu0 0
        %760 = vmatprep.subr.bf16.mxu0 0
        %761 = vmatpush1.bf16.msra.mxu0 0
        %762 = vmatprep.subr.bf16.mxu0 0
        %763 = vmatpush1.bf16.msra.mxu0 0
        %764 = vmatprep.subr.bf16.mxu0 0
        %765 = vmatpush1.bf16.msra.mxu0 0
        %766 = vmatprep.subr.bf16.mxu0 0
        %767 = vmatpush1.bf16.msra.mxu0 0
        %768 = vmatprep.subr.bf16.mxu0 0
        %769 = vmatpush1.bf16.msra.mxu0 0
        %770 = vmatprep.subr.bf16.mxu0 0
        %771 = vmatpush1.bf16.msra.mxu0 0
        %772 = vmatprep.subr.bf16.mxu0 0
        %773 = vmatpush1.bf16.msra.mxu0 0
        %774 = vmatprep.mubr.bf16.mxu0 0
        %775 = vmatmul.mubr.bf16.gmra.mrb[0].mxu0 %v740
        %v776 = vpop.f32.mrb[0].mxu0
        %v777 = vadd.f32 %v713, %v776
        %v778 = vpop.f32.mrb[0].mxu0
        %v779 = vadd.f32 %v715, %v778
        %v780 = vpop.f32.mrb[0].mxu0
        %v781 = vpop.f32.mrb[0].mxu0
        %782 = vdwg.mxu0
        %v783 = vld [vmem:[#allocation9] sm:$0x3]
        %v785 = vlaneseq
        %v786 = vshrl.u32 %v785, 7
        %v787 = vsub.s32 0, %v786
        %v788 = vrot.slane %v783, %v787
        %v789 = vlaneseq
        %v790 = vshrl.u32 %v789, 7
        %v791 = vsub.s32 1, %v790
        %v792 = vrot.slane %v783, %v791
        %v795 = vadd.f32 %v777, %v788
        %v796 = vadd.f32 %v779, %v792
        %v797 = vmax.f32 %v795, 0.0
        %v798 = vmax.f32 %v796, 0.0
        %v799 = vpack.c.bf16 %v797, %v797
        %v800 = vpack.c.bf16 %v798, %v798
        %v801 = vld [vmem:[#allocation10] sm:$0xf]
        %v802 = vld [vmem:[#allocation10 + $0x4] sm:$0xf]
        %v803 = vld [vmem:[#allocation10 + $0x8] sm:$0xf]
        %v804 = vld [vmem:[#allocation10 + $0xc] sm:$0xf]
        %v805 = vld [vmem:[#allocation10 + $0x10] sm:$0xf]
        %v806 = vld [vmem:[#allocation10 + $0x14] sm:$0xf]
        %v807 = vld [vmem:[#allocation10 + $0x18] sm:$0xf]
        %v808 = vld [vmem:[#allocation10 + $0x1c] sm:$0xf]
        %v809 = vld [vmem:[#allocation10 + $0x20] sm:$0xf]
        %v810 = vld [vmem:[#allocation10 + $0x24] sm:$0xf]
        %v811 = vld [vmem:[#allocation10 + $0x28] sm:$0xf]
        %v812 = vld [vmem:[#allocation10 + $0x2c] sm:$0xf]
        %v813 = vld [vmem:[#allocation10 + $0x30] sm:$0xf]
        %v814 = vld [vmem:[#allocation10 + $0x34] sm:$0xf]
        %v815 = vld [vmem:[#allocation10 + $0x38] sm:$0xf]
        %v816 = vld [vmem:[#allocation10 + $0x3c] sm:$0xf]
        %v817 = vld [vmem:[#allocation10 + $0x40] sm:$0xf]
        %v818 = vld [vmem:[#allocation10 + $0x44] sm:$0xf]
        %v819 = vld [vmem:[#allocation10 + $0x48] sm:$0xf]
        %v820 = vld [vmem:[#allocation10 + $0x4c] sm:$0xf]
        %v821 = vld [vmem:[#allocation10 + $0x50] sm:$0xf]
        %v822 = vld [vmem:[#allocation10 + $0x54] sm:$0xf]
        %v823 = vld [vmem:[#allocation10 + $0x58] sm:$0xf]
        %v824 = vld [vmem:[#allocation10 + $0x5c] sm:$0xf]
        %v825 = vld [vmem:[#allocation10 + $0x60] sm:$0xf]
        %v826 = vld [vmem:[#allocation10 + $0x64] sm:$0xf]
        %v827 = vld [vmem:[#allocation10 + $0x68] sm:$0xf]
        %v828 = vld [vmem:[#allocation10 + $0x6c] sm:$0xf]
        %v829 = vld [vmem:[#allocation10 + $0x70] sm:$0xf]
        %v830 = vld [vmem:[#allocation10 + $0x74] sm:$0xf]
        %v831 = vld [vmem:[#allocation10 + $0x78] sm:$0xf]
        %v832 = vld [vmem:[#allocation10 + $0x7c] sm:$0xf]
        %v865 = vunpack.c.l.b16 %v801
        %v866 = vunpack.c.l.b16 %v802
        %v867 = vunpack.c.l.b16 %v803
        %v868 = vunpack.c.l.b16 %v804
        %v869 = vunpack.c.l.b16 %v805
        %v870 = vunpack.c.l.b16 %v806
        %v871 = vunpack.c.l.b16 %v807
        %v872 = vunpack.c.l.b16 %v808
        %v873 = vunpack.c.l.b16 %v809
        %v874 = vunpack.c.l.b16 %v810
        %v875 = vunpack.c.l.b16 %v811
        %v876 = vunpack.c.l.b16 %v812
        %v877 = vunpack.c.l.b16 %v813
        %v878 = vunpack.c.l.b16 %v814
        %v879 = vunpack.c.l.b16 %v815
        %v880 = vunpack.c.l.b16 %v816
        %v881 = vunpack.c.l.b16 %v817
        %v882 = vunpack.c.l.b16 %v818
        %v883 = vunpack.c.l.b16 %v819
        %v884 = vunpack.c.l.b16 %v820
        %v885 = vunpack.c.l.b16 %v821
        %v886 = vunpack.c.l.b16 %v822
        %v887 = vunpack.c.l.b16 %v823
        %v888 = vunpack.c.l.b16 %v824
        %v889 = vunpack.c.l.b16 %v825
        %v890 = vunpack.c.l.b16 %v826
        %v891 = vunpack.c.l.b16 %v827
        %v892 = vunpack.c.l.b16 %v828
        %v893 = vunpack.c.l.b16 %v829
        %v894 = vunpack.c.l.b16 %v830
        %v895 = vunpack.c.l.b16 %v831
        %v896 = vunpack.c.l.b16 %v832
        %v897 = vpack.c.b16 %v866, %v865
        %v898 = vpack.c.b16 %v868, %v867
        %v899 = vpack.c.b16 %v870, %v869
        %v900 = vpack.c.b16 %v872, %v871
        %v901 = vpack.c.b16 %v874, %v873
        %v902 = vpack.c.b16 %v876, %v875
        %v903 = vpack.c.b16 %v878, %v877
        %v904 = vpack.c.b16 %v880, %v879
        %v905 = vpack.c.b16 %v882, %v881
        %v906 = vpack.c.b16 %v884, %v883
        %v907 = vpack.c.b16 %v886, %v885
        %v908 = vpack.c.b16 %v888, %v887
        %v909 = vpack.c.b16 %v890, %v889
        %v910 = vpack.c.b16 %v892, %v891
        %v911 = vpack.c.b16 %v894, %v893
        %v912 = vpack.c.b16 %v896, %v895
        %929 = vmatprep.subr.bf16.mxu0 0
        %930 = vmatpush1.bf16.msra.mxu0 %v897
        %931 = vmatprep.subr.bf16.mxu0 0
        %932 = vmatpush1.bf16.msra.mxu0 %v898
        %933 = vmatprep.subr.bf16.mxu0 0
        %934 = vmatpush1.bf16.msra.mxu0 %v899
        %935 = vmatprep.subr.bf16.mxu0 0
        %936 = vmatpush1.bf16.msra.mxu0 %v900
        %937 = vmatprep.subr.bf16.mxu0 0
        %938 = vmatpush1.bf16.msra.mxu0 %v901
        %939 = vmatprep.subr.bf16.mxu0 0
        %940 = vmatpush1.bf16.msra.mxu0 %v902
        %941 = vmatprep.subr.bf16.mxu0 0
        %942 = vmatpush1.bf16.msra.mxu0 %v903
        %943 = vmatprep.subr.bf16.mxu0 0
        %944 = vmatpush1.bf16.msra.mxu0 %v904
        %945 = vmatprep.subr.bf16.mxu0 0
        %946 = vmatpush1.bf16.msra.mxu0 %v905
        %947 = vmatprep.subr.bf16.mxu0 0
        %948 = vmatpush1.bf16.msra.mxu0 %v906
        %949 = vmatprep.subr.bf16.mxu0 0
        %950 = vmatpush1.bf16.msra.mxu0 %v907
        %951 = vmatprep.subr.bf16.mxu0 0
        %952 = vmatpush1.bf16.msra.mxu0 %v908
        %953 = vmatprep.subr.bf16.mxu0 0
        %954 = vmatpush1.bf16.msra.mxu0 %v909
        %955 = vmatprep.subr.bf16.mxu0 0
        %956 = vmatpush1.bf16.msra.mxu0 %v910
        %957 = vmatprep.subr.bf16.mxu0 0
        %958 = vmatpush1.bf16.msra.mxu0 %v911
        %959 = vmatprep.subr.bf16.mxu0 0
        %960 = vmatpush1.bf16.msra.mxu0 %v912
        %961 = vmatprep.mubr.bf16.mxu0 %v800
        %962 = vmatmul.mubr.bf16.gmra.mrb[0].mxu0 %v799
        %v963 = vpop.f32.mrb[0].mxu0
        %v964 = vadd.f32 0.0, %v963
        %v965 = vpop.f32.mrb[0].mxu0
        %v966 = vpop.f32.mrb[0].mxu0
        %v967 = vpop.f32.mrb[0].mxu0
        %968 = vdwg.mxu0
        %v969 = vpack.c.bf16 %v964, %v964
        %v970 = vadd.bf16 %v969, %v388
        %971 = vst [vmem:[%s386] sm:$0x3] %v970
        %p972 = scmp.lt.s32.totalorder %s23, 1
        %s973 = scalar_select %p972, %s23, 1
        %s974 = smul.addr %s973, 2
        %s975 = scalar_lea.vmem %s8, %s974
        // Predicated region
        $region77: #{fasternet_forward.14} parent=51 // pred_check
          %p976 = pneg %p214
        $region78: #{fasternet_forward.14} parent=51 // pred_check_branch
          %978 = sbr.rel (%p976) target = $region80
        $region79: #{fasternet_forward.14} parent=51 // pred_region
          _
        $region80: #{fasternet_forward.14} parent=51 // pred_fallthru
          _
      $region52: #{fasternet_forward.14} parent=5 // pred_fallthru
        _
      %p979 = scmp.le.s32.totalorder 2, %s18
      // Predicated region
      $region81: #{fasternet_forward.14} parent=5 // pred_check
        %p980 = pneg %p979
      $region82: #{fasternet_forward.14} parent=5 // pred_check_branch
        %982 = sbr.rel (%p980) target = $region84
      $region83: #{fasternet_forward.14} parent=5 // pred_region
        %s983 = ssub.s32 %s18, 2
        // Predicated region
        $region85: #{fasternet_forward.14} parent=83 // pred_check
          %p984 = pneg %p220
        $region86: #{fasternet_forward.14} parent=83 // pred_check_branch
          %986 = sbr.rel (%p984) target = $region88
        $region87: #{fasternet_forward.14} parent=83 // pred_region
          %p987 = scmp.lt.s32.totalorder %s24, 1
          %s988 = scalar_select %p987, %s24, 1
          %s989 = smul.addr %s988, 2
          %s990 = scalar_lea.vmem %s8, %s989
        $region88: #{fasternet_forward.14} parent=83 // pred_fallthru
          _
      $region84: #{fasternet_forward.14} parent=5 // pred_fallthru
        _
    $region6: #{fasternet_forward.14} parent=1 // loop_footer
      %s22 = sadd.s32 1, %s18
    $region7: #{fasternet_forward.14} parent=1 // loop_footer_branch
      %17 = sbr.rel target = $region3
    $region8: #{fasternet_forward.14} parent=1 // loop_exit
      _
    %991 = vsyncpa [#allocation3], 1
    %s992 = scalar_lea.sflag [#allocation3], 1
    %993 = vsyncpa %s992, 1
    %994 = vsyncpa [#allocation5], 1
    %995 = vsyncpa [#allocation8], 1
    %996 = vsyncpa [#allocation11], 1

// kernel: fasternet_forward.16
$region0: #{fasternet_forward.16}
  #allocation0 [shape = 'u32[]', space=smem, size = 0x4, offset = 0x4, fixed_abs, tag = 'smem constant byte address 0x4 - core index']
  #allocation1 [shape = 'u32[144,128]{1,0:T(1,128)}', space=vmem, size = 0x12000, scoped, tag = 'internal scratch']
  %s0 = inlined_call_operand.vmem [shape: bf16[2,2,256], index: 0, kind: input, shape index: {}]
  %s1 = inlined_call_operand.hbm [shape: bf16[64,64], index: 1, kind: input, shape index: {}]
  %s2 = inlined_call_operand.hbm [shape: bf16[64,64], index: 2, kind: input, shape index: {}]
  %s3 = inlined_call_operand.hbm [shape: bf16[64,64], index: 3, kind: input, shape index: {}]
  %s4 = inlined_call_operand.vmem [shape: bf16[64,512], index: 4, kind: input, shape index: {}]
  %s5 = inlined_call_operand.vmem [shape: bf16[192,512], index: 5, kind: input, shape index: {}]
  %s6 = inlined_call_operand.hbm [shape: f32[1,512], index: 6, kind: input, shape index: {}]
  %s7 = inlined_call_operand.vmem [shape: bf16[512,256], index: 7, kind: input, shape index: {}]
  %s8 = inlined_call_operand.vmem [shape: bf16[2,2,256], index: 8, kind: output, shape index: {}]
  %s9 = sld [smem:[#allocation0]]
  $region81: #{fasternet_forward.16} parent=0
    _
  %s11 = ssub.s32 1, %s9
  %s12 = scalar_select 0, %s11, %s9
  $region1: #{fasternet_forward.16} parent=0
    #allocation2 [shape = 'u8[16384]{0}', space=vmem, size = 0x4000, scoped, tag = 'input window, operand 1, single buffered']
    #allocation3 [shape = 's32[2]{0}', space=sflag, size = 0x8, scoped, tag = 'scoped memory for fasternet_forward.16']
    #allocation4 [shape = 'u8[16384]{0}', space=vmem, size = 0x4000, scoped, tag = 'input window, operand 2, single buffered']
    #allocation5 [shape = 's32[1]{0}', space=sflag, size = 0x4, scoped, tag = 'scoped memory for fasternet_forward.16']
    #allocation6 [shape = 'u8[16384]{0}', space=vmem, size = 0x4000, scoped, tag = 'input window, operand 3, single buffered']
    #allocation7 [shape = 'u8[2048]{0}', space=vmem, size = 0x800, scoped, tag = 'input window, operand 6, single buffered']
    #allocation8 [shape = 's32[1]{0}', space=sflag, size = 0x4, scoped, tag = 'scoped memory for fasternet_forward.16']
    %13 = vsyncpa [#allocation3], 0
    %14 = vsyncpa [#allocation5], 0
    %15 = vsyncpa [#allocation8], 0
    loop: start=0, step=1, limit=4
    $region2: #{fasternet_forward.16} parent=1 // loop_pre_header
      _
    $region3: #{fasternet_forward.16} parent=1 // loop_header
      %s17 = sphi 0, %s21
      %p18 = scmp.ge.s32.totalorder %s17, 4
      %s27 = sphi 0, %s29
      %s30 = sphi 0, %s27
      %s31 = sphi 0, %s30
      %s47 = sphi 0, %s31
      %s51 = sphi 0, %s51
      %s53 = sphi 0, %s51
      %s54 = sphi 0, %s53
      %s68 = sphi 0, %s54
      %s72 = sphi 0, %s72
      %s74 = sphi 0, %s72
      %s75 = sphi 0, %s74
      %s89 = sphi 0, %s75
      %s93 = sphi 0, %s93
      %s95 = sphi 0, %s93
      %s96 = sphi 0, %s95
      %s110 = sphi 0, %s96
      %s114 = sphi 0, %s114
      %s116 = sphi 0, %s114
      %s117 = sphi 0, %s116
      %s131 = sphi 0, %s117
      %s135 = sphi 0, %s135
      %s137 = sphi 0, %s135
      %s138 = sphi 0, %s137
      %s152 = sphi 0, %s138
      %s156 = sphi 0, %s156
      %s158 = sphi 0, %s156
      %s159 = sphi 0, %s158
      %s173 = sphi 0, %s159
      %s177 = sphi 0, %s177
      %s179 = sphi 0, %s177
      %s180 = sphi 0, %s179
      %s194 = sphi 0, %s180
      %s200 = sphi 0, %s202
      %s203 = sphi 0, %s200
      %s204 = sphi 0, %s203
      %s220 = sphi 0, %s204
    $region4: #{fasternet_forward.16} parent=1 // loop_header_branch
      %20 = sbr.rel (%p18) target = $region8
    $region5: #{fasternet_forward.16} parent=1 // loop_body
      %s22 = ssub.s32 %s17, 1
      %s23 = ssub.s32 %s17, 2
      %s24 = sadd.s32 %s17, 1
      %s25 = ssub.s32 %s17, %s24
      %p26 = scmp.eq.s32.totalorder %s25, 0
      %s28 = sadd.s32 %s27, 1
      %s29 = scalar_select %p26, %s27, %s28
      %p32 = pneg %p26
      %p33 = scmp.eq.s32.totalorder %s17, 1
      %p34 = por %p32, %p33
      %p35 = scmp.ne.s32.totalorder %s27, %s30
      %p36 = scmp.eq.s32.totalorder %s17, 0
      %p37 = por %p35, %p36
      %p38 = scmp.ne.s32.totalorder %s27, %s30
      %p39 = scmp.eq.s32.totalorder %s22, 1
      %p40 = por %p38, %p39
      %p41 = scmp.ne.s32.totalorder %s30, %s31
      %p42 = scmp.eq.s32.totalorder %s22, 0
      %p43 = por %p41, %p42
      %p44 = scmp.ne.s32.totalorder %s30, %s31
      %p45 = scmp.eq.s32.totalorder %s23, 1
      %p46 = por %p44, %p45
      %p48 = scmp.ne.s32.totalorder %s31, %s47
      %p49 = scmp.eq.s32.totalorder %s23, 0
      %p50 = por %p48, %p49
      %s52 = sadd.s32 %s51, 1
      %p55 = scmp.eq.s32.totalorder %s17, 1
      %p56 = scmp.ne.s32.totalorder %s51, %s53
      %p57 = scmp.eq.s32.totalorder %s17, 0
      %p58 = por %p56, %p57
      %p59 = scmp.ne.s32.totalorder %s51, %s53
      %p60 = scmp.eq.s32.totalorder %s22, 1
      %p61 = por %p59, %p60
      %p62 = scmp.ne.s32.totalorder %s53, %s54
      %p63 = scmp.eq.s32.totalorder %s22, 0
      %p64 = por %p62, %p63
      %p65 = scmp.ne.s32.totalorder %s53, %s54
      %p66 = scmp.eq.s32.totalorder %s23, 1
      %p67 = por %p65, %p66
      %p69 = scmp.ne.s32.totalorder %s54, %s68
      %p70 = scmp.eq.s32.totalorder %s23, 0
      %p71 = por %p69, %p70
      %s73 = sadd.s32 %s72, 1
      %p76 = scmp.eq.s32.totalorder %s17, 1
      %p77 = scmp.ne.s32.totalorder %s72, %s74
      %p78 = scmp.eq.s32.totalorder %s17, 0
      %p79 = por %p77, %p78
      %p80 = scmp.ne.s32.totalorder %s72, %s74
      %p81 = scmp.eq.s32.totalorder %s22, 1
      %p82 = por %p80, %p81
      %p83 = scmp.ne.s32.totalorder %s74, %s75
      %p84 = scmp.eq.s32.totalorder %s22, 0
      %p85 = por %p83, %p84
      %p86 = scmp.ne.s32.totalorder %s74, %s75
      %p87 = scmp.eq.s32.totalorder %s23, 1
      %p88 = por %p86, %p87
      %p90 = scmp.ne.s32.totalorder %s75, %s89
      %p91 = scmp.eq.s32.totalorder %s23, 0
      %p92 = por %p90, %p91
      %s94 = sadd.s32 %s93, 1
      %p97 = scmp.eq.s32.totalorder %s17, 1
      %p98 = scmp.ne.s32.totalorder %s93, %s95
      %p99 = scmp.eq.s32.totalorder %s17, 0
      %p100 = por %p98, %p99
      %p101 = scmp.ne.s32.totalorder %s93, %s95
      %p102 = scmp.eq.s32.totalorder %s22, 1
      %p103 = por %p101, %p102
      %p104 = scmp.ne.s32.totalorder %s95, %s96
      %p105 = scmp.eq.s32.totalorder %s22, 0
      %p106 = por %p104, %p105
      %p107 = scmp.ne.s32.totalorder %s95, %s96
      %p108 = scmp.eq.s32.totalorder %s23, 1
      %p109 = por %p107, %p108
      %p111 = scmp.ne.s32.totalorder %s96, %s110
      %p112 = scmp.eq.s32.totalorder %s23, 0
      %p113 = por %p111, %p112
      %s115 = sadd.s32 %s114, 1
      %p118 = scmp.eq.s32.totalorder %s17, 1
      %p119 = scmp.ne.s32.totalorder %s114, %s116
      %p120 = scmp.eq.s32.totalorder %s17, 0
      %p121 = por %p119, %p120
      %p122 = scmp.ne.s32.totalorder %s114, %s116
      %p123 = scmp.eq.s32.totalorder %s22, 1
      %p124 = por %p122, %p123
      %p125 = scmp.ne.s32.totalorder %s116, %s117
      %p126 = scmp.eq.s32.totalorder %s22, 0
      %p127 = por %p125, %p126
      %p128 = scmp.ne.s32.totalorder %s116, %s117
      %p129 = scmp.eq.s32.totalorder %s23, 1
      %p130 = por %p128, %p129
      %p132 = scmp.ne.s32.totalorder %s117, %s131
      %p133 = scmp.eq.s32.totalorder %s23, 0
      %p134 = por %p132, %p133
      %s136 = sadd.s32 %s135, 1
      %p139 = scmp.eq.s32.totalorder %s17, 1
      %p140 = scmp.ne.s32.totalorder %s135, %s137
      %p141 = scmp.eq.s32.totalorder %s17, 0
      %p142 = por %p140, %p141
      %p143 = scmp.ne.s32.totalorder %s135, %s137
      %p144 = scmp.eq.s32.totalorder %s22, 1
      %p145 = por %p143, %p144
      %p146 = scmp.ne.s32.totalorder %s137, %s138
      %p147 = scmp.eq.s32.totalorder %s22, 0
      %p148 = por %p146, %p147
      %p149 = scmp.ne.s32.totalorder %s137, %s138
      %p150 = scmp.eq.s32.totalorder %s23, 1
      %p151 = por %p149, %p150
      %p153 = scmp.ne.s32.totalorder %s138, %s152
      %p154 = scmp.eq.s32.totalorder %s23, 0
      %p155 = por %p153, %p154
      %s157 = sadd.s32 %s156, 1
      %p160 = scmp.eq.s32.totalorder %s17, 1
      %p161 = scmp.ne.s32.totalorder %s156, %s158
      %p162 = scmp.eq.s32.totalorder %s17, 0
      %p163 = por %p161, %p162
      %p164 = scmp.ne.s32.totalorder %s156, %s158
      %p165 = scmp.eq.s32.totalorder %s22, 1
      %p166 = por %p164, %p165
      %p167 = scmp.ne.s32.totalorder %s158, %s159
      %p168 = scmp.eq.s32.totalorder %s22, 0
      %p169 = por %p167, %p168
      %p170 = scmp.ne.s32.totalorder %s158, %s159
      %p171 = scmp.eq.s32.totalorder %s23, 1
      %p172 = por %p170, %p171
      %p174 = scmp.ne.s32.totalorder %s159, %s173
      %p175 = scmp.eq.s32.totalorder %s23, 0
      %p176 = por %p174, %p175
      %s178 = sadd.s32 %s177, 1
      %p181 = scmp.eq.s32.totalorder %s17, 1
      %p182 = scmp.ne.s32.totalorder %s177, %s179
      %p183 = scmp.eq.s32.totalorder %s17, 0
      %p184 = por %p182, %p183
      %p185 = scmp.ne.s32.totalorder %s177, %s179
      %p186 = scmp.eq.s32.totalorder %s22, 1
      %p187 = por %p185, %p186
      %p188 = scmp.ne.s32.totalorder %s179, %s180
      %p189 = scmp.eq.s32.totalorder %s22, 0
      %p190 = por %p188, %p189
      %p191 = scmp.ne.s32.totalorder %s179, %s180
      %p192 = scmp.eq.s32.totalorder %s23, 1
      %p193 = por %p191, %p192
      %p195 = scmp.ne.s32.totalorder %s180, %s194
      %p196 = scmp.eq.s32.totalorder %s23, 0
      %p197 = por %p195, %p196
      %s198 = ssub.s32 %s17, %s24
      %p199 = scmp.eq.s32.totalorder %s198, 0
      %s201 = sadd.s32 %s200, 1
      %s202 = scalar_select %p199, %s200, %s201
      %p205 = pneg %p199
      %p206 = scmp.eq.s32.totalorder %s17, 1
      %p207 = por %p205, %p206
      %p208 = scmp.ne.s32.totalorder %s200, %s203
      %p209 = scmp.eq.s32.totalorder %s17, 0
      %p210 = por %p208, %p209
      %p211 = scmp.ne.s32.totalorder %s200, %s203
      %p212 = scmp.eq.s32.totalorder %s22, 1
      %p213 = por %p211, %p212
      %p214 = scmp.ne.s32.totalorder %s203, %s204
      %p215 = scmp.eq.s32.totalorder %s22, 0
      %p216 = por %p214, %p215
      %p217 = scmp.ne.s32.totalorder %s203, %s204
      %p218 = scmp.eq.s32.totalorder %s23, 1
      %p219 = por %p217, %p218
      %p221 = scmp.ne.s32.totalorder %s204, %s220
      %p222 = scmp.eq.s32.totalorder %s23, 0
      %p223 = por %p221, %p222
      %p224 = scmp.le.s32.totalorder 1, %s17
      %p225 = scmp.lt.s32.totalorder %s17, 3
      %p226 = pnand %p224, %p225
      %p227 = pneg %p226
      // Predicated region
      $region9: #{fasternet_forward.16} parent=5 // pred_check
        _
      $region10: #{fasternet_forward.16} parent=5 // pred_check_branch
        %229 = sbr.rel (%p226) target = $region12
      $region11: #{fasternet_forward.16} parent=5 // pred_region
        %s230 = ssub.s32 %s17, 1
        // Predicated region
        $region13: #{fasternet_forward.16} parent=11 // pred_check
          %p231 = pneg %p64
        $region14: #{fasternet_forward.16} parent=11 // pred_check_branch
          %233 = sbr.rel (%p231) target = $region16
        $region15: #{fasternet_forward.16} parent=11 // pred_region
          %s235 = ssub.s32 512, 512
          %236 = vsyncadd [#allocation3], %s235
          %s237 = sshll.u32 [#allocation2], 4
          %s238 = int_to_ptr.vmem [resolvable:$true] %s237
          %243 = dma.hbm_to_vmem [thread:$0]  %s1, 512, %s238, [#allocation3], 64, 64, 4
        $region16: #{fasternet_forward.16} parent=11 // pred_fallthru
          _
        // Predicated region
        $region17: #{fasternet_forward.16} parent=11 // pred_check
          %p244 = pneg %p85
        $region18: #{fasternet_forward.16} parent=11 // pred_check_branch
          %246 = sbr.rel (%p244) target = $region20
        $region19: #{fasternet_forward.16} parent=11 // pred_region
          %s248 = ssub.s32 512, 512
          %249 = vsyncadd [#allocation5], %s248
          %s250 = sshll.u32 [#allocation4], 4
          %s251 = int_to_ptr.vmem [resolvable:$true] %s250
          %256 = dma.hbm_to_vmem [thread:$0]  %s2, 512, %s251, [#allocation5], 64, 64, 4
        $region20: #{fasternet_forward.16} parent=11 // pred_fallthru
          _
        // Predicated region
        $region21: #{fasternet_forward.16} parent=11 // pred_check
          %p257 = pneg %p106
        $region22: #{fasternet_forward.16} parent=11 // pred_check_branch
          %259 = sbr.rel (%p257) target = $region24
        $region23: #{fasternet_forward.16} parent=11 // pred_region
          %s261 = ssub.s32 512, 512
          %262 = vsyncadd [#allocation5], %s261
          %s263 = sshll.u32 [#allocation6], 4
          %s264 = int_to_ptr.vmem [resolvable:$true] %s263
          %269 = dma.hbm_to_vmem [thread:$0]  %s3, 512, %s264, [#allocation5], 64, 64, 4
        $region24: #{fasternet_forward.16} parent=11 // pred_fallthru
          _
        // Predicated region
        $region25: #{fasternet_forward.16} parent=11 // pred_check
          %p270 = pneg %p127
        $region26: #{fasternet_forward.16} parent=11 // pred_check_branch
          %272 = sbr.rel (%p270) target = $region28
        $region27: #{fasternet_forward.16} parent=11 // pred_region
          _
        $region28: #{fasternet_forward.16} parent=11 // pred_fallthru
          _
        // Predicated region
        $region29: #{fasternet_forward.16} parent=11 // pred_check
          %p273 = pneg %p148
        $region30: #{fasternet_forward.16} parent=11 // pred_check_branch
          %275 = sbr.rel (%p273) target = $region32
        $region31: #{fasternet_forward.16} parent=11 // pred_region
          _
        $region32: #{fasternet_forward.16} parent=11 // pred_fallthru
          _
        // Predicated region
        $region33: #{fasternet_forward.16} parent=11 // pred_check
          %p276 = pneg %p169
        $region34: #{fasternet_forward.16} parent=11 // pred_check_branch
          %278 = sbr.rel (%p276) target = $region36
        $region35: #{fasternet_forward.16} parent=11 // pred_region
          %s280 = ssub.s32 64, 64
          %281 = vsyncadd [#allocation8], %s280
          %s283 = sshll.u32 [#allocation7], 4
          %s284 = int_to_ptr.vmem [resolvable:$true] %s283
          %286 = dma.hbm_to_vmem [thread:$0]  %s6, 64, %s284, [#allocation8]
        $region36: #{fasternet_forward.16} parent=11 // pred_fallthru
          _
        // Predicated region
        $region37: #{fasternet_forward.16} parent=11 // pred_check
          %p287 = pneg %p190
        $region38: #{fasternet_forward.16} parent=11 // pred_check_branch
          %289 = sbr.rel (%p287) target = $region40
        $region39: #{fasternet_forward.16} parent=11 // pred_region
          _
        $region40: #{fasternet_forward.16} parent=11 // pred_fallthru
          _
      $region12: #{fasternet_forward.16} parent=5 // pred_fallthru
        _
      %p290 = scmp.lt.s32.totalorder %s17, 2
      // Predicated region
      $region41: #{fasternet_forward.16} parent=5 // pred_check
        %p291 = pneg %p290
      $region42: #{fasternet_forward.16} parent=5 // pred_check_branch
        %293 = sbr.rel (%p291) target = $region44
      $region43: #{fasternet_forward.16} parent=5 // pred_region
        // Predicated region
        $region45: #{fasternet_forward.16} parent=43 // pred_check
          %p294 = pneg %p37
        $region46: #{fasternet_forward.16} parent=43 // pred_check_branch
          %296 = sbr.rel (%p294) target = $region48
        $region47: #{fasternet_forward.16} parent=43 // pred_region
          %p297 = scmp.lt.s32.totalorder %s17, 1
          %s298 = scalar_select %p297, %s17, 1
          %s299 = smul.addr %s298, 2
          %s300 = scalar_lea.vmem %s0, %s299
        $region48: #{fasternet_forward.16} parent=43 // pred_fallthru
          _
      $region44: #{fasternet_forward.16} parent=5 // pred_fallthru
        _
      %p301 = scmp.le.s32.totalorder 1, %s17
      %p302 = scmp.lt.s32.totalorder %s17, 3
      %p303 = pnand %p301, %p302
      %p304 = pneg %p303
      // Predicated region
      $region49: #{fasternet_forward.16} parent=5 // pred_check
        _
      $region50: #{fasternet_forward.16} parent=5 // pred_check_branch
        %306 = sbr.rel (%p303) target = $region52
      $region51: #{fasternet_forward.16} parent=5 // pred_region
        %s307 = ssub.s32 %s17, 1
        // Predicated region
        $region53: #{fasternet_forward.16} parent=51 // pred_check
          %p308 = pneg %p64
        $region54: #{fasternet_forward.16} parent=51 // pred_check_branch
          %310 = sbr.rel (%p308) target = $region56
        $region55: #{fasternet_forward.16} parent=51 // pred_region
          %311 = dma.done [#allocation3], 512
        $region56: #{fasternet_forward.16} parent=51 // pred_fallthru
          _
        // Predicated region
        $region57: #{fasternet_forward.16} parent=51 // pred_check
          %p312 = pneg %p85
        $region58: #{fasternet_forward.16} parent=51 // pred_check_branch
          %314 = sbr.rel (%p312) target = $region60
        $region59: #{fasternet_forward.16} parent=51 // pred_region
          %315 = dma.done [#allocation5], 512
        $region60: #{fasternet_forward.16} parent=51 // pred_fallthru
          _
        // Predicated region
        $region61: #{fasternet_forward.16} parent=51 // pred_check
          %p316 = pneg %p106
        $region62: #{fasternet_forward.16} parent=51 // pred_check_branch
          %318 = sbr.rel (%p316) target = $region64
        $region63: #{fasternet_forward.16} parent=51 // pred_region
          %319 = dma.done [#allocation5], 512
        $region64: #{fasternet_forward.16} parent=51 // pred_fallthru
          _
        // Predicated region
        $region65: #{fasternet_forward.16} parent=51 // pred_check
          %p320 = pneg %p169
        $region66: #{fasternet_forward.16} parent=51 // pred_check_branch
          %322 = sbr.rel (%p320) target = $region68
        $region67: #{fasternet_forward.16} parent=51 // pred_region
          %323 = dma.done [#allocation8], 64
        $region68: #{fasternet_forward.16} parent=51 // pred_fallthru
          _
        %p324 = scmp.lt.s32.totalorder %s22, 1
        %s325 = scalar_select %p324, %s22, 1
        %s326 = smul.addr %s325, 2
        %s327 = scalar_lea.vmem %s0, %s326
        %p328 = pneg %p43
        %p329 = pneg %p40
        %p330 = pneg %p64
        %p331 = pneg %p61
        %p332 = pneg %p85
        %p333 = pneg %p82
        %p334 = pneg %p106
        %p335 = pneg %p103
        %p336 = pneg %p127
        %p337 = pneg %p124
        %p338 = pneg %p148
        %p339 = pneg %p145
        %p340 = pneg %p169
        %p341 = pneg %p166
        %p342 = pneg %p190
        %p343 = pneg %p187
        %p344 = pneg %p216
        %p345 = pneg %p213
        %p346 = scmp.lt.s32.totalorder %s22, 1
        %s347 = scalar_select %p346, %s22, 1
        %s348 = smul.addr %s347, 2
        %s349 = scalar_lea.vmem %s8, %s348
        %p350 = scmp.lt.s32.totalorder %s22, 1
        %s351 = scalar_select %p350, %s22, 1
        %s352 = smul.addr %s351, 2
        %s353 = scalar_lea.vmem %s0, %s352
        %p354 = scmp.lt.s32.totalorder %s22, 1
        %s355 = scalar_select %p354, %s22, 1
        %s356 = smul.addr %s355, 2
        %s357 = scalar_lea.vmem %s8, %s356
        %v359 = vld [vmem:[%s353] sm:$0x3]
        %v362 = vunpack.c.l.s4 1966171168
        %v363 = vunpack.c.0.s8 %v362
        %v364 = vlaneseq
        %v365 = vshrl.u32 %v364, 7
        %v366 = vsub.s32 %v363, %v365
        %v367 = vrot.slane %v359, %v366
        %v369 = vunpack.c.l.s4 1966171168
        %v370 = vunpack.c.0.s8 %v369
        %v371 = vlaneseq
        %v372 = vshrl.u32 %v371, 7
        %v373 = vsub.s32 %v370, %v372
        %v374 = vrot.slane %v367, %v373
        %v376 = vshll.u32 %v374, 16
        %vm379 = vcmask 1040384
        %vm380 = vsmask.f32 256
        %vm381 = vmand %vm379, %vm380
        %v382 = vsel %vm381, 0, %v376
        %v383 = vshrl.u32 %v374, 16
        %v386 = vsel %vm381, %v383, 0
        %v387 = vld [vmem:[#allocation4] sm:$0xf]
        %v388 = vld [vmem:[#allocation4 + $0x4] sm:$0xf]
        %v389 = vld [vmem:[#allocation4 + $0x8] sm:$0xf]
        %v390 = vld [vmem:[#allocation4 + $0xc] sm:$0xf]
        %v391 = vld [vmem:[#allocation4 + $0x10] sm:$0xf]
        %v392 = vld [vmem:[#allocation4 + $0x14] sm:$0xf]
        %v393 = vld [vmem:[#allocation4 + $0x18] sm:$0xf]
        %v394 = vld [vmem:[#allocation4 + $0x1c] sm:$0xf]
        %v395 = vld [vmem:[#allocation2] sm:$0xf]
        %v396 = vld [vmem:[#allocation2 + $0x4] sm:$0xf]
        %v397 = vld [vmem:[#allocation2 + $0x8] sm:$0xf]
        %v398 = vld [vmem:[#allocation2 + $0xc] sm:$0xf]
        %v399 = vld [vmem:[#allocation2 + $0x10] sm:$0xf]
        %v400 = vld [vmem:[#allocation2 + $0x14] sm:$0xf]
        %v401 = vld [vmem:[#allocation2 + $0x18] sm:$0xf]
        %v402 = vld [vmem:[#allocation2 + $0x1c] sm:$0xf]
        %v411 = vunpack.c.l.b16 %v395
        %v412 = vunpack.c.l.b16 %v396
        %v413 = vunpack.c.l.b16 %v397
        %v414 = vunpack.c.l.b16 %v398
        %v415 = vunpack.c.l.b16 %v399
        %v416 = vunpack.c.l.b16 %v400
        %v417 = vunpack.c.l.b16 %v401
        %v418 = vunpack.c.l.b16 %v402
        %v419 = vpack.c.b16 %v412, %v411
        %v420 = vpack.c.b16 %v414, %v413
        %v421 = vpack.c.b16 %v416, %v415
        %v422 = vpack.c.b16 %v418, %v417
        %vm427 = vcmask 523264
        %v429 = vsel %vm427, %v382, 0
        %431 = vmatprep.subr.bf16.mxu0 0
        %432 = vmatpush1.bf16.msra.mxu0 %v419
        %433 = vmatprep.subr.bf16.mxu0 0
        %434 = vmatpush1.bf16.msra.mxu0 %v420
        %435 = vmatprep.subr.bf16.mxu0 0
        %436 = vmatpush1.bf16.msra.mxu0 %v421
        %437 = vmatprep.subr.bf16.mxu0 0
        %438 = vmatpush1.bf16.msra.mxu0 %v422
        %439 = vmatprep.subr.bf16.mxu0 0
        %440 = vmatpush1.bf16.msra.mxu0 0
        %441 = vmatprep.subr.bf16.mxu0 0
        %442 = vmatpush1.bf16.msra.mxu0 0
        %443 = vmatprep.subr.bf16.mxu0 0
        %444 = vmatpush1.bf16.msra.mxu0 0
        %445 = vmatprep.subr.bf16.mxu0 0
        %446 = vmatpush1.bf16.msra.mxu0 0
        %447 = vmatprep.subr.bf16.mxu0 0
        %448 = vmatpush1.bf16.msra.mxu0 0
        %449 = vmatprep.subr.bf16.mxu0 0
        %450 = vmatpush1.bf16.msra.mxu0 0
        %451 = vmatprep.subr.bf16.mxu0 0
        %452 = vmatpush1.bf16.msra.mxu0 0
        %453 = vmatprep.subr.bf16.mxu0 0
        %454 = vmatpush1.bf16.msra.mxu0 0
        %455 = vmatprep.subr.bf16.mxu0 0
        %456 = vmatpush1.bf16.msra.mxu0 0
        %457 = vmatprep.subr.bf16.mxu0 0
        %458 = vmatpush1.bf16.msra.mxu0 0
        %459 = vmatprep.subr.bf16.mxu0 0
        %460 = vmatpush1.bf16.msra.mxu0 0
        %461 = vmatprep.subr.bf16.mxu0 0
        %462 = vmatpush1.bf16.msra.mxu0 0
        %463 = vmatprep.mubr.bf16.mxu0 0
        %464 = vmatmul.mubr.bf16.gmra.mrb[0].mxu0 %v429
        %v465 = vpop.f32.mrb[0].mxu0
        %v466 = vadd.f32 0.0, %v465
        %v467 = vpop.f32.mrb[0].mxu0
        %v468 = vpop.f32.mrb[0].mxu0
        %v469 = vpop.f32.mrb[0].mxu0
        %470 = vdwg.mxu0
        %v479 = vunpack.c.l.b16 %v387
        %v480 = vunpack.c.l.b16 %v388
        %v481 = vunpack.c.l.b16 %v389
        %v482 = vunpack.c.l.b16 %v390
        %v483 = vunpack.c.l.b16 %v391
        %v484 = vunpack.c.l.b16 %v392
        %v485 = vunpack.c.l.b16 %v393
        %v486 = vunpack.c.l.b16 %v394
        %v487 = vpack.c.b16 %v480, %v479
        %v488 = vpack.c.b16 %v482, %v481
        %v489 = vpack.c.b16 %v484, %v483
        %v490 = vpack.c.b16 %v486, %v485
        %v496 = vsel %vm427, %v359, 0
        %498 = vmatprep.subr.bf16.mxu0 0
        %499 = vmatpush1.bf16.msra.mxu0 %v487
        %500 = vmatprep.subr.bf16.mxu0 0
        %501 = vmatpush1.bf16.msra.mxu0 %v488
        %502 = vmatprep.subr.bf16.mxu0 0
        %503 = vmatpush1.bf16.msra.mxu0 %v489
        %504 = vmatprep.subr.bf16.mxu0 0
        %505 = vmatpush1.bf16.msra.mxu0 %v490
        %506 = vmatprep.subr.bf16.mxu0 0
        %507 = vmatpush1.bf16.msra.mxu0 0
        %508 = vmatprep.subr.bf16.mxu0 0
        %509 = vmatpush1.bf16.msra.mxu0 0
        %510 = vmatprep.subr.bf16.mxu0 0
        %511 = vmatpush1.bf16.msra.mxu0 0
        %512 = vmatprep.subr.bf16.mxu0 0
        %513 = vmatpush1.bf16.msra.mxu0 0
        %514 = vmatprep.subr.bf16.mxu0 0
        %515 = vmatpush1.bf16.msra.mxu0 0
        %516 = vmatprep.subr.bf16.mxu0 0
        %517 = vmatpush1.bf16.msra.mxu0 0
        %518 = vmatprep.subr.bf16.mxu0 0
        %519 = vmatpush1.bf16.msra.mxu0 0
        %520 = vmatprep.subr.bf16.mxu0 0
        %521 = vmatpush1.bf16.msra.mxu0 0
        %522 = vmatprep.subr.bf16.mxu0 0
        %523 = vmatpush1.bf16.msra.mxu0 0
        %524 = vmatprep.subr.bf16.mxu0 0
        %525 = vmatpush1.bf16.msra.mxu0 0
        %526 = vmatprep.subr.bf16.mxu0 0
        %527 = vmatpush1.bf16.msra.mxu0 0
        %528 = vmatprep.subr.bf16.mxu0 0
        %529 = vmatpush1.bf16.msra.mxu0 0
        %530 = vmatprep.mubr.bf16.mxu0 0
        %531 = vmatmul.mubr.bf16.gmra.mrb[0].mxu0 %v496
        %v532 = vpop.f32.mrb[0].mxu0
        %v533 = vadd.f32 %v466, %v532
        %v534 = vpop.f32.mrb[0].mxu0
        %v535 = vpop.f32.mrb[0].mxu0
        %v536 = vpop.f32.mrb[0].mxu0
        %537 = vdwg.mxu0
        %v538 = vld [vmem:[#allocation6] sm:$0xf]
        %v539 = vld [vmem:[#allocation6 + $0x4] sm:$0xf]
        %v540 = vld [vmem:[#allocation6 + $0x8] sm:$0xf]
        %v541 = vld [vmem:[#allocation6 + $0xc] sm:$0xf]
        %v542 = vld [vmem:[#allocation6 + $0x10] sm:$0xf]
        %v543 = vld [vmem:[#allocation6 + $0x14] sm:$0xf]
        %v544 = vld [vmem:[#allocation6 + $0x18] sm:$0xf]
        %v545 = vld [vmem:[#allocation6 + $0x1c] sm:$0xf]
        %v554 = vunpack.c.l.b16 %v538
        %v555 = vunpack.c.l.b16 %v539
        %v556 = vunpack.c.l.b16 %v540
        %v557 = vunpack.c.l.b16 %v541
        %v558 = vunpack.c.l.b16 %v542
        %v559 = vunpack.c.l.b16 %v543
        %v560 = vunpack.c.l.b16 %v544
        %v561 = vunpack.c.l.b16 %v545
        %v562 = vpack.c.b16 %v555, %v554
        %v563 = vpack.c.b16 %v557, %v556
        %v564 = vpack.c.b16 %v559, %v558
        %v565 = vpack.c.b16 %v561, %v560
        %v571 = vsel %vm427, %v386, 0
        %573 = vmatprep.subr.bf16.mxu0 0
        %574 = vmatpush1.bf16.msra.mxu0 %v562
        %575 = vmatprep.subr.bf16.mxu0 0
        %576 = vmatpush1.bf16.msra.mxu0 %v563
        %577 = vmatprep.subr.bf16.mxu0 0
        %578 = vmatpush1.bf16.msra.mxu0 %v564
        %579 = vmatprep.subr.bf16.mxu0 0
        %580 = vmatpush1.bf16.msra.mxu0 %v565
        %581 = vmatprep.subr.bf16.mxu0 0
        %582 = vmatpush1.bf16.msra.mxu0 0
        %583 = vmatprep.subr.bf16.mxu0 0
        %584 = vmatpush1.bf16.msra.mxu0 0
        %585 = vmatprep.subr.bf16.mxu0 0
        %586 = vmatpush1.bf16.msra.mxu0 0
        %587 = vmatprep.subr.bf16.mxu0 0
        %588 = vmatpush1.bf16.msra.mxu0 0
        %589 = vmatprep.subr.bf16.mxu0 0
        %590 = vmatpush1.bf16.msra.mxu0 0
        %591 = vmatprep.subr.bf16.mxu0 0
        %592 = vmatpush1.bf16.msra.mxu0 0
        %593 = vmatprep.subr.bf16.mxu0 0
        %594 = vmatpush1.bf16.msra.mxu0 0
        %595 = vmatprep.subr.bf16.mxu0 0
        %596 = vmatpush1.bf16.msra.mxu0 0
        %597 = vmatprep.subr.bf16.mxu0 0
        %598 = vmatpush1.bf16.msra.mxu0 0
        %599 = vmatprep.subr.bf16.mxu0 0
        %600 = vmatpush1.bf16.msra.mxu0 0
        %601 = vmatprep.subr.bf16.mxu0 0
        %602 = vmatpush1.bf16.msra.mxu0 0
        %603 = vmatprep.subr.bf16.mxu0 0
        %604 = vmatpush1.bf16.msra.mxu0 0
        %605 = vmatprep.mubr.bf16.mxu0 0
        %606 = vmatmul.mubr.bf16.gmra.mrb[0].mxu0 %v571
        %v607 = vpop.f32.mrb[0].mxu0
        %v608 = vadd.f32 0.0, %v607
        %v609 = vpop.f32.mrb[0].mxu0
        %v610 = vpop.f32.mrb[0].mxu0
        %v611 = vpop.f32.mrb[0].mxu0
        %612 = vdwg.mxu0
        %v613 = vadd.f32 %v533, %v608
        %v614 = vpack.c.bf16 %v613, %v613
        %v615 = vld [vmem:[%s4] sm:$0xff]
        %v616 = vld [vmem:[%s4 + $0x8] sm:$0xff]
        %v617 = vld [vmem:[%s4 + $0x10] sm:$0xff]
        %v618 = vld [vmem:[%s4 + $0x18] sm:$0xff]
        %v619 = vld [vmem:[%s4 + $0x20] sm:$0xff]
        %v620 = vld [vmem:[%s4 + $0x28] sm:$0xff]
        %v621 = vld [vmem:[%s4 + $0x30] sm:$0xff]
        %v622 = vld [vmem:[%s4 + $0x38] sm:$0xff]
        %v623 = vld [vmem:[%s4 + $0x40] sm:$0xff]
        %v624 = vld [vmem:[%s4 + $0x48] sm:$0xff]
        %v625 = vld [vmem:[%s4 + $0x50] sm:$0xff]
        %v626 = vld [vmem:[%s4 + $0x58] sm:$0xff]
        %v627 = vld [vmem:[%s4 + $0x60] sm:$0xff]
        %v628 = vld [vmem:[%s4 + $0x68] sm:$0xff]
        %v629 = vld [vmem:[%s4 + $0x70] sm:$0xff]
        %v630 = vld [vmem:[%s4 + $0x78] sm:$0xff]
        %v631 = vld [vmem:[%s5] sm:$0xff]
        %v632 = vld [vmem:[%s5 + $0x8] sm:$0xff]
        %v633 = vld [vmem:[%s5 + $0x10] sm:$0xff]
        %v634 = vld [vmem:[%s5 + $0x18] sm:$0xff]
        %v635 = vld [vmem:[%s5 + $0x20] sm:$0xff]
        %v636 = vld [vmem:[%s5 + $0x28] sm:$0xff]
        %v637 = vld [vmem:[%s5 + $0x30] sm:$0xff]
        %v638 = vld [vmem:[%s5 + $0x38] sm:$0xff]
        %v639 = vld [vmem:[%s5 + $0x40] sm:$0xff]
        %v640 = vld [vmem:[%s5 + $0x48] sm:$0xff]
        %v641 = vld [vmem:[%s5 + $0x50] sm:$0xff]
        %v642 = vld [vmem:[%s5 + $0x58] sm:$0xff]
        %v643 = vld [vmem:[%s5 + $0x60] sm:$0xff]
        %v644 = vld [vmem:[%s5 + $0x68] sm:$0xff]
        %v645 = vld [vmem:[%s5 + $0x70] sm:$0xff]
        %v646 = vld [vmem:[%s5 + $0x78] sm:$0xff]
        %v647 = vld [vmem:[%s5 + $0x80] sm:$0xff]
        %v648 = vld [vmem:[%s5 + $0x88] sm:$0xff]
        %v649 = vld [vmem:[%s5 + $0x90] sm:$0xff]
        %v650 = vld [vmem:[%s5 + $0x98] sm:$0xff]
        %v651 = vld [vmem:[%s5 + $0xa0] sm:$0xff]
        %v652 = vld [vmem:[%s5 + $0xa8] sm:$0xff]
        %v653 = vld [vmem:[%s5 + $0xb0] sm:$0xff]
        %v654 = vld [vmem:[%s5 + $0xb8] sm:$0xff]
        %v655 = vld [vmem:[%s5 + $0xc0] sm:$0xff]
        %v656 = vld [vmem:[%s5 + $0xc8] sm:$0xff]
        %v657 = vld [vmem:[%s5 + $0xd0] sm:$0xff]
        %v658 = vld [vmem:[%s5 + $0xd8] sm:$0xff]
        %v659 = vld [vmem:[%s5 + $0xe0] sm:$0xff]
        %v660 = vld [vmem:[%s5 + $0xe8] sm:$0xff]
        %v661 = vld [vmem:[%s5 + $0xf0] sm:$0xff]
        %v662 = vld [vmem:[%s5 + $0xf8] sm:$0xff]
        %v663 = vld [vmem:[%s5 + $0x100] sm:$0xff]
        %v664 = vld [vmem:[%s5 + $0x108] sm:$0xff]
        %v665 = vld [vmem:[%s5 + $0x110] sm:$0xff]
        %v666 = vld [vmem:[%s5 + $0x118] sm:$0xff]
        %v667 = vld [vmem:[%s5 + $0x120] sm:$0xff]
        %v668 = vld [vmem:[%s5 + $0x128] sm:$0xff]
        %v669 = vld [vmem:[%s5 + $0x130] sm:$0xff]
        %v670 = vld [vmem:[%s5 + $0x138] sm:$0xff]
        %v671 = vld [vmem:[%s5 + $0x140] sm:$0xff]
        %v672 = vld [vmem:[%s5 + $0x148] sm:$0xff]
        %v673 = vld [vmem:[%s5 + $0x150] sm:$0xff]
        %v674 = vld [vmem:[%s5 + $0x158] sm:$0xff]
        %v675 = vld [vmem:[%s5 + $0x160] sm:$0xff]
        %v676 = vld [vmem:[%s5 + $0x168] sm:$0xff]
        %v677 = vld [vmem:[%s5 + $0x170] sm:$0xff]
        %v678 = vld [vmem:[%s5 + $0x178] sm:$0xff]
        %v679 = vcombine.high %v367, %v367
        %v681 = vunpack.c.l.s4 1966171168
        %v682 = vunpack.c.0.s8 %v681
        %v683 = vlaneseq
        %v684 = vshrl.u32 %v683, 7
        %v685 = vsub.s32 %v682, %v684
        %v686 = vrot.slane %v679, %v685
        %687 = vrot.lane.b32.xlu0 %v374, 64
        %v688 = vpop.permute.xlu0 %687
        %689 = vrot.lane.b32.xlu0 %v686, 64
        %v690 = vpop.permute.xlu0 %689
        %vm691 = vcmask 523264
        %v692 = vsel %vm691, %v688, %v690
        %v742 = vunpack.c.l.b16 %v631
        %v743 = vunpack.c.h.b16 %v631
        %v744 = vunpack.c.l.b16 %v632
        %v745 = vunpack.c.h.b16 %v632
        %v746 = vunpack.c.l.b16 %v633
        %v747 = vunpack.c.h.b16 %v633
        %v748 = vunpack.c.l.b16 %v634
        %v749 = vunpack.c.h.b16 %v634
        %v750 = vunpack.c.l.b16 %v635
        %v751 = vunpack.c.h.b16 %v635
        %v752 = vunpack.c.l.b16 %v636
        %v753 = vunpack.c.h.b16 %v636
        %v754 = vunpack.c.l.b16 %v637
        %v755 = vunpack.c.h.b16 %v637
        %v756 = vunpack.c.l.b16 %v638
        %v757 = vunpack.c.h.b16 %v638
        %v758 = vunpack.c.l.b16 %v639
        %v759 = vunpack.c.h.b16 %v639
        %v760 = vunpack.c.l.b16 %v640
        %v761 = vunpack.c.h.b16 %v640
        %v762 = vunpack.c.l.b16 %v641
        %v763 = vunpack.c.h.b16 %v641
        %v764 = vunpack.c.l.b16 %v642
        %v765 = vunpack.c.h.b16 %v642
        %v766 = vunpack.c.l.b16 %v643
        %v767 = vunpack.c.h.b16 %v643
        %v768 = vunpack.c.l.b16 %v644
        %v769 = vunpack.c.h.b16 %v644
        %v770 = vunpack.c.l.b16 %v645
        %v771 = vunpack.c.h.b16 %v645
        %v772 = vunpack.c.l.b16 %v646
        %v773 = vunpack.c.h.b16 %v646
        %v774 = vunpack.c.l.b16 %v647
        %v775 = vunpack.c.h.b16 %v647
        %v776 = vunpack.c.l.b16 %v648
        %v777 = vunpack.c.h.b16 %v648
        %v778 = vunpack.c.l.b16 %v649
        %v779 = vunpack.c.h.b16 %v649
        %v780 = vunpack.c.l.b16 %v650
        %v781 = vunpack.c.h.b16 %v650
        %v782 = vunpack.c.l.b16 %v651
        %v783 = vunpack.c.h.b16 %v651
        %v784 = vunpack.c.l.b16 %v652
        %v785 = vunpack.c.h.b16 %v652
        %v786 = vunpack.c.l.b16 %v653
        %v787 = vunpack.c.h.b16 %v653
        %v788 = vunpack.c.l.b16 %v654
        %v789 = vunpack.c.h.b16 %v654
        %v790 = vunpack.c.l.b16 %v655
        %v791 = vunpack.c.h.b16 %v655
        %v792 = vunpack.c.l.b16 %v656
        %v793 = vunpack.c.h.b16 %v656
        %v794 = vunpack.c.l.b16 %v657
        %v795 = vunpack.c.h.b16 %v657
        %v796 = vunpack.c.l.b16 %v658
        %v797 = vunpack.c.h.b16 %v658
        %v798 = vunpack.c.l.b16 %v659
        %v799 = vunpack.c.h.b16 %v659
        %v800 = vunpack.c.l.b16 %v660
        %v801 = vunpack.c.h.b16 %v660
        %v802 = vunpack.c.l.b16 %v661
        %v803 = vunpack.c.h.b16 %v661
        %v804 = vunpack.c.l.b16 %v662
        %v805 = vunpack.c.h.b16 %v662
        %v806 = vunpack.c.l.b16 %v663
        %v807 = vunpack.c.h.b16 %v663
        %v808 = vunpack.c.l.b16 %v664
        %v809 = vunpack.c.h.b16 %v664
        %v810 = vunpack.c.l.b16 %v665
        %v811 = vunpack.c.h.b16 %v665
        %v812 = vunpack.c.l.b16 %v666
        %v813 = vunpack.c.h.b16 %v666
        %v814 = vunpack.c.l.b16 %v667
        %v815 = vunpack.c.h.b16 %v667
        %v816 = vunpack.c.l.b16 %v668
        %v817 = vunpack.c.h.b16 %v668
        %v818 = vunpack.c.l.b16 %v669
        %v819 = vunpack.c.h.b16 %v669
        %v820 = vunpack.c.l.b16 %v670
        %v821 = vunpack.c.h.b16 %v670
        %v822 = vunpack.c.l.b16 %v671
        %v823 = vunpack.c.h.b16 %v671
        %v824 = vunpack.c.l.b16 %v672
        %v825 = vunpack.c.h.b16 %v672
        %v826 = vunpack.c.l.b16 %v673
        %v827 = vunpack.c.h.b16 %v673
        %v828 = vunpack.c.l.b16 %v674
        %v829 = vunpack.c.h.b16 %v674
        %v830 = vunpack.c.l.b16 %v675
        %v831 = vunpack.c.h.b16 %v675
        %v832 = vunpack.c.l.b16 %v676
        %v833 = vunpack.c.h.b16 %v676
        %v834 = vunpack.c.l.b16 %v677
        %v835 = vunpack.c.h.b16 %v677
        %v836 = vunpack.c.l.b16 %v678
        %v837 = vunpack.c.h.b16 %v678
        %v838 = vpack.c.b16 %v746, %v742
        %v839 = vpack.c.b16 %v747, %v743
        %v840 = vpack.c.b16 %v748, %v744
        %v841 = vpack.c.b16 %v749, %v745
        %v842 = vpack.c.b16 %v754, %v750
        %v843 = vpack.c.b16 %v755, %v751
        %v844 = vpack.c.b16 %v756, %v752
        %v845 = vpack.c.b16 %v757, %v753
        %v846 = vpack.c.b16 %v762, %v758
        %v847 = vpack.c.b16 %v763, %v759
        %v848 = vpack.c.b16 %v764, %v760
        %v849 = vpack.c.b16 %v765, %v761
        %v850 = vpack.c.b16 %v770, %v766
        %v851 = vpack.c.b16 %v771, %v767
        %v852 = vpack.c.b16 %v772, %v768
        %v853 = vpack.c.b16 %v773, %v769
        %v854 = vpack.c.b16 %v778, %v774
        %v855 = vpack.c.b16 %v779, %v775
        %v856 = vpack.c.b16 %v780, %v776
        %v857 = vpack.c.b16 %v781, %v777
        %v858 = vpack.c.b16 %v786, %v782
        %v859 = vpack.c.b16 %v787, %v783
        %v860 = vpack.c.b16 %v788, %v784
        %v861 = vpack.c.b16 %v789, %v785
        %v862 = vpack.c.b16 %v794, %v790
        %v863 = vpack.c.b16 %v795, %v791
        %v864 = vpack.c.b16 %v796, %v792
        %v865 = vpack.c.b16 %v797, %v793
        %v866 = vpack.c.b16 %v802, %v798
        %v867 = vpack.c.b16 %v803, %v799
        %v868 = vpack.c.b16 %v804, %v800
        %v869 = vpack.c.b16 %v805, %v801
        %v870 = vpack.c.b16 %v810, %v806
        %v871 = vpack.c.b16 %v811, %v807
        %v872 = vpack.c.b16 %v812, %v808
        %v873 = vpack.c.b16 %v813, %v809
        %v874 = vpack.c.b16 %v818, %v814
        %v875 = vpack.c.b16 %v819, %v815
        %v876 = vpack.c.b16 %v820, %v816
        %v877 = vpack.c.b16 %v821, %v817
        %v878 = vpack.c.b16 %v826, %v822
        %v879 = vpack.c.b16 %v827, %v823
        %v880 = vpack.c.b16 %v828, %v824
        %v881 = vpack.c.b16 %v829, %v825
        %v882 = vpack.c.b16 %v834, %v830
        %v883 = vpack.c.b16 %v835, %v831
        %v884 = vpack.c.b16 %v836, %v832
        %v885 = vpack.c.b16 %v837, %v833
        %v935 = vsel %vm427, %v690, 0
        %937 = vmatprep.subr.bf16.mxu0 %v839
        %938 = vmatpush1.bf16.msra.mxu0 %v838
        %939 = vmatprep.subr.bf16.mxu0 %v843
        %940 = vmatpush1.bf16.msra.mxu0 %v842
        %941 = vmatprep.subr.bf16.mxu0 %v847
        %942 = vmatpush1.bf16.msra.mxu0 %v846
        %943 = vmatprep.subr.bf16.mxu0 %v851
        %944 = vmatpush1.bf16.msra.mxu0 %v850
        %945 = vmatprep.subr.bf16.mxu0 %v855
        %946 = vmatpush1.bf16.msra.mxu0 %v854
        %947 = vmatprep.subr.bf16.mxu0 %v859
        %948 = vmatpush1.bf16.msra.mxu0 %v858
        %949 = vmatprep.subr.bf16.mxu0 %v863
        %950 = vmatpush1.bf16.msra.mxu0 %v862
        %951 = vmatprep.subr.bf16.mxu0 %v867
        %952 = vmatpush1.bf16.msra.mxu0 %v866
        %953 = vmatprep.subr.bf16.mxu0 %v871
        %954 = vmatpush1.bf16.msra.mxu0 %v870
        %955 = vmatprep.subr.bf16.mxu0 %v875
        %956 = vmatpush1.bf16.msra.mxu0 %v874
        %957 = vmatprep.subr.bf16.mxu0 %v879
        %958 = vmatpush1.bf16.msra.mxu0 %v878
        %959 = vmatprep.subr.bf16.mxu0 %v883
        %960 = vmatpush1.bf16.msra.mxu0 %v882
        %961 = vmatprep.subr.bf16.mxu0 0
        %962 = vmatpush1.bf16.msra.mxu0 0
        %963 = vmatprep.subr.bf16.mxu0 0
        %964 = vmatpush1.bf16.msra.mxu0 0
        %965 = vmatprep.subr.bf16.mxu0 0
        %966 = vmatpush1.bf16.msra.mxu0 0
        %967 = vmatprep.subr.bf16.mxu0 0
        %968 = vmatpush1.bf16.msra.mxu0 0
        %969 = vmatprep.mubr.bf16.mxu0 %v935
        %970 = vmatmul.mubr.bf16.gmra.mrb[0].mxu0 %v692
        %v971 = vpop.f32.mrb[0].mxu0
        %v972 = vadd.f32 0.0, %v971
        %v973 = vpop.f32.mrb[0].mxu0
        %v974 = vadd.f32 0.0, %v973
        %v975 = vpop.f32.mrb[0].mxu0
        %v976 = vpop.f32.mrb[0].mxu0
        %977 = vdwg.mxu0
        %978 = vmatprep.subr.bf16.mxu0 %v841
        %979 = vmatpush1.bf16.msra.mxu0 %v840
        %980 = vmatprep.subr.bf16.mxu0 %v845
        %981 = vmatpush1.bf16.msra.mxu0 %v844
        %982 = vmatprep.subr.bf16.mxu0 %v849
        %983 = vmatpush1.bf16.msra.mxu0 %v848
        %984 = vmatprep.subr.bf16.mxu0 %v853
        %985 = vmatpush1.bf16.msra.mxu0 %v852
        %986 = vmatprep.subr.bf16.mxu0 %v857
        %987 = vmatpush1.bf16.msra.mxu0 %v856
        %988 = vmatprep.subr.bf16.mxu0 %v861
        %989 = vmatpush1.bf16.msra.mxu0 %v860
        %990 = vmatprep.subr.bf16.mxu0 %v865
        %991 = vmatpush1.bf16.msra.mxu0 %v864
        %992 = vmatprep.subr.bf16.mxu0 %v869
        %993 = vmatpush1.bf16.msra.mxu0 %v868
        %994 = vmatprep.subr.bf16.mxu0 %v873
        %995 = vmatpush1.bf16.msra.mxu0 %v872
        %996 = vmatprep.subr.bf16.mxu0 %v877
        %997 = vmatpush1.bf16.msra.mxu0 %v876
        %998 = vmatprep.subr.bf16.mxu0 %v881
        %999 = vmatpush1.bf16.msra.mxu0 %v880
        %1000 = vmatprep.subr.bf16.mxu0 %v885
        %1001 = vmatpush1.bf16.msra.mxu0 %v884
        %1002 = vmatprep.subr.bf16.mxu0 0
        %1003 = vmatpush1.bf16.msra.mxu0 0
        %1004 = vmatprep.subr.bf16.mxu0 0
        %1005 = vmatpush1.bf16.msra.mxu0 0
        %1006 = vmatprep.subr.bf16.mxu0 0
        %1007 = vmatpush1.bf16.msra.mxu0 0
        %1008 = vmatprep.subr.bf16.mxu0 0
        %1009 = vmatpush1.bf16.msra.mxu0 0
        %1010 = vmatprep.mubr.bf16.mxu0 %v935
        %1011 = vmatmul.mubr.bf16.gmra.mrb[0].mxu0 %v692
        %v1012 = vpop.f32.mrb[0].mxu0
        %v1013 = vadd.f32 0.0, %v1012
        %v1014 = vpop.f32.mrb[0].mxu0
        %v1015 = vadd.f32 0.0, %v1014
        %v1016 = vpop.f32.mrb[0].mxu0
        %v1017 = vpop.f32.mrb[0].mxu0
        %1018 = vdwg.mxu0
        %v1035 = vunpack.c.l.b16 %v615
        %v1036 = vunpack.c.h.b16 %v615
        %v1037 = vunpack.c.l.b16 %v616
        %v1038 = vunpack.c.h.b16 %v616
        %v1039 = vunpack.c.l.b16 %v617
        %v1040 = vunpack.c.h.b16 %v617
        %v1041 = vunpack.c.l.b16 %v618
        %v1042 = vunpack.c.h.b16 %v618
        %v1043 = vunpack.c.l.b16 %v619
        %v1044 = vunpack.c.h.b16 %v619
        %v1045 = vunpack.c.l.b16 %v620
        %v1046 = vunpack.c.h.b16 %v620
        %v1047 = vunpack.c.l.b16 %v621
        %v1048 = vunpack.c.h.b16 %v621
        %v1049 = vunpack.c.l.b16 %v622
        %v1050 = vunpack.c.h.b16 %v622
        %v1051 = vunpack.c.l.b16 %v623
        %v1052 = vunpack.c.h.b16 %v623
        %v1053 = vunpack.c.l.b16 %v624
        %v1054 = vunpack.c.h.b16 %v624
        %v1055 = vunpack.c.l.b16 %v625
        %v1056 = vunpack.c.h.b16 %v625
        %v1057 = vunpack.c.l.b16 %v626
        %v1058 = vunpack.c.h.b16 %v626
        %v1059 = vunpack.c.l.b16 %v627
        %v1060 = vunpack.c.h.b16 %v627
        %v1061 = vunpack.c.l.b16 %v628
        %v1062 = vunpack.c.h.b16 %v628
        %v1063 = vunpack.c.l.b16 %v629
        %v1064 = vunpack.c.h.b16 %v629
        %v1065 = vunpack.c.l.b16 %v630
        %v1066 = vunpack.c.h.b16 %v630
        %v1067 = vpack.c.b16 %v1039, %v1035
        %v1068 = vpack.c.b16 %v1040, %v1036
        %v1069 = vpack.c.b16 %v1041, %v1037
        %v1070 = vpack.c.b16 %v1042, %v1038
        %v1071 = vpack.c.b16 %v1047, %v1043
        %v1072 = vpack.c.b16 %v1048, %v1044
        %v1073 = vpack.c.b16 %v1049, %v1045
        %v1074 = vpack.c.b16 %v1050, %v1046
        %v1075 = vpack.c.b16 %v1055, %v1051
        %v1076 = vpack.c.b16 %v1056, %v1052
        %v1077 = vpack.c.b16 %v1057, %v1053
        %v1078 = vpack.c.b16 %v1058, %v1054
        %v1079 = vpack.c.b16 %v1063, %v1059
        %v1080 = vpack.c.b16 %v1064, %v1060
        %v1081 = vpack.c.b16 %v1065, %v1061
        %v1082 = vpack.c.b16 %v1066, %v1062
        %v1100 = vsel %vm427, %v614, 0
        %1102 = vmatprep.subr.bf16.mxu0 %v1068
        %1103 = vmatpush1.bf16.msra.mxu0 %v1067
        %1104 = vmatprep.subr.bf16.mxu0 %v1072
        %1105 = vmatpush1.bf16.msra.mxu0 %v1071
        %1106 = vmatprep.subr.bf16.mxu0 %v1076
        %1107 = vmatpush1.bf16.msra.mxu0 %v1075
        %1108 = vmatprep.subr.bf16.mxu0 %v1080
        %1109 = vmatpush1.bf16.msra.mxu0 %v1079
        %1110 = vmatprep.subr.bf16.mxu0 0
        %1111 = vmatpush1.bf16.msra.mxu0 0
        %1112 = vmatprep.subr.bf16.mxu0 0
        %1113 = vmatpush1.bf16.msra.mxu0 0
        %1114 = vmatprep.subr.bf16.mxu0 0
        %1115 = vmatpush1.bf16.msra.mxu0 0
        %1116 = vmatprep.subr.bf16.mxu0 0
        %1117 = vmatpush1.bf16.msra.mxu0 0
        %1118 = vmatprep.subr.bf16.mxu0 0
        %1119 = vmatpush1.bf16.msra.mxu0 0
        %1120 = vmatprep.subr.bf16.mxu0 0
        %1121 = vmatpush1.bf16.msra.mxu0 0
        %1122 = vmatprep.subr.bf16.mxu0 0
        %1123 = vmatpush1.bf16.msra.mxu0 0
        %1124 = vmatprep.subr.bf16.mxu0 0
        %1125 = vmatpush1.bf16.msra.mxu0 0
        %1126 = vmatprep.subr.bf16.mxu0 0
        %1127 = vmatpush1.bf16.msra.mxu0 0
        %1128 = vmatprep.subr.bf16.mxu0 0
        %1129 = vmatpush1.bf16.msra.mxu0 0
        %1130 = vmatprep.subr.bf16.mxu0 0
        %1131 = vmatpush1.bf16.msra.mxu0 0
        %1132 = vmatprep.subr.bf16.mxu0 0
        %1133 = vmatpush1.bf16.msra.mxu0 0
        %1134 = vmatprep.mubr.bf16.mxu0 0
        %1135 = vmatmul.mubr.bf16.gmra.mrb[0].mxu0 %v1100
        %v1136 = vpop.f32.mrb[0].mxu0
        %v1137 = vadd.f32 %v972, %v1136
        %v1138 = vpop.f32.mrb[0].mxu0
        %v1139 = vadd.f32 %v974, %v1138
        %v1140 = vpop.f32.mrb[0].mxu0
        %v1141 = vpop.f32.mrb[0].mxu0
        %1142 = vdwg.mxu0
        %1143 = vmatprep.subr.bf16.mxu0 %v1070
        %1144 = vmatpush1.bf16.msra.mxu0 %v1069
        %1145 = vmatprep.subr.bf16.mxu0 %v1074
        %1146 = vmatpush1.bf16.msra.mxu0 %v1073
        %1147 = vmatprep.subr.bf16.mxu0 %v1078
        %1148 = vmatpush1.bf16.msra.mxu0 %v1077
        %1149 = vmatprep.subr.bf16.mxu0 %v1082
        %1150 = vmatpush1.bf16.msra.mxu0 %v1081
        %1151 = vmatprep.subr.bf16.mxu0 0
        %1152 = vmatpush1.bf16.msra.mxu0 0
        %1153 = vmatprep.subr.bf16.mxu0 0
        %1154 = vmatpush1.bf16.msra.mxu0 0
        %1155 = vmatprep.subr.bf16.mxu0 0
        %1156 = vmatpush1.bf16.msra.mxu0 0
        %1157 = vmatprep.subr.bf16.mxu0 0
        %1158 = vmatpush1.bf16.msra.mxu0 0
        %1159 = vmatprep.subr.bf16.mxu0 0
        %1160 = vmatpush1.bf16.msra.mxu0 0
        %1161 = vmatprep.subr.bf16.mxu0 0
        %1162 = vmatpush1.bf16.msra.mxu0 0
        %1163 = vmatprep.subr.bf16.mxu0 0
        %1164 = vmatpush1.bf16.msra.mxu0 0
        %1165 = vmatprep.subr.bf16.mxu0 0
        %1166 = vmatpush1.bf16.msra.mxu0 0
        %1167 = vmatprep.subr.bf16.mxu0 0
        %1168 = vmatpush1.bf16.msra.mxu0 0
        %1169 = vmatprep.subr.bf16.mxu0 0
        %1170 = vmatpush1.bf16.msra.mxu0 0
        %1171 = vmatprep.subr.bf16.mxu0 0
        %1172 = vmatpush1.bf16.msra.mxu0 0
        %1173 = vmatprep.subr.bf16.mxu0 0
        %1174 = vmatpush1.bf16.msra.mxu0 0
        %1175 = vmatprep.mubr.bf16.mxu0 0
        %1176 = vmatmul.mubr.bf16.gmra.mrb[0].mxu0 %v1100
        %v1177 = vpop.f32.mrb[0].mxu0
        %v1178 = vadd.f32 %v1013, %v1177
        %v1179 = vpop.f32.mrb[0].mxu0
        %v1180 = vadd.f32 %v1015, %v1179
        %v1181 = vpop.f32.mrb[0].mxu0
        %v1182 = vpop.f32.mrb[0].mxu0
        %1183 = vdwg.mxu0
        %v1184 = vld [vmem:[#allocation7] sm:$0xf]
        %v1186 = vlaneseq
        %v1187 = vshrl.u32 %v1186, 7
        %v1188 = vsub.s32 0, %v1187
        %v1189 = vrot.slane %v1184, %v1188
        %v1190 = vlaneseq
        %v1191 = vshrl.u32 %v1190, 7
        %v1192 = vsub.s32 1, %v1191
        %v1193 = vrot.slane %v1184, %v1192
        %v1194 = vlaneseq
        %v1195 = vshrl.u32 %v1194, 7
        %v1196 = vsub.s32 2, %v1195
        %v1197 = vrot.slane %v1184, %v1196
        %v1198 = vlaneseq
        %v1199 = vshrl.u32 %v1198, 7
        %v1200 = vsub.s32 3, %v1199
        %v1201 = vrot.slane %v1184, %v1200
        %v1206 = vadd.f32 %v1137, %v1189
        %v1207 = vadd.f32 %v1139, %v1193
        %v1208 = vadd.f32 %v1178, %v1197
        %v1209 = vadd.f32 %v1180, %v1201
        %v1210 = vmax.f32 %v1206, 0.0
        %v1211 = vmax.f32 %v1207, 0.0
        %v1212 = vmax.f32 %v1208, 0.0
        %v1213 = vmax.f32 %v1209, 0.0
        %v1214 = vpack.c.bf16 %v1210, %v1210
        %v1215 = vpack.c.bf16 %v1211, %v1211
        %v1216 = vpack.c.bf16 %v1212, %v1212
        %v1217 = vpack.c.bf16 %v1213, %v1213
        %v1218 = vld [vmem:[%s7] sm:$0xff]
        %v1219 = vld [vmem:[%s7 + $0x8] sm:$0xff]
        %v1220 = vld [vmem:[%s7 + $0x10] sm:$0xff]
        %v1221 = vld [vmem:[%s7 + $0x18] sm:$0xff]
        %v1222 = vld [vmem:[%s7 + $0x20] sm:$0xff]
        %v1223 = vld [vmem:[%s7 + $0x28] sm:$0xff]
        %v1224 = vld [vmem:[%s7 + $0x30] sm:$0xff]
        %v1225 = vld [vmem:[%s7 + $0x38] sm:$0xff]
        %v1226 = vld [vmem:[%s7 + $0x40] sm:$0xff]
        %v1227 = vld [vmem:[%s7 + $0x48] sm:$0xff]
        %v1228 = vld [vmem:[%s7 + $0x50] sm:$0xff]
        %v1229 = vld [vmem:[%s7 + $0x58] sm:$0xff]
        %v1230 = vld [vmem:[%s7 + $0x60] sm:$0xff]
        %v1231 = vld [vmem:[%s7 + $0x68] sm:$0xff]
        %v1232 = vld [vmem:[%s7 + $0x70] sm:$0xff]
        %v1233 = vld [vmem:[%s7 + $0x78] sm:$0xff]
        %v1234 = vld [vmem:[%s7 + $0x80] sm:$0xff]
        %v1235 = vld [vmem:[%s7 + $0x88] sm:$0xff]
        %v1236 = vld [vmem:[%s7 + $0x90] sm:$0xff]
        %v1237 = vld [vmem:[%s7 + $0x98] sm:$0xff]
        %v1238 = vld [vmem:[%s7 + $0xa0] sm:$0xff]
        %v1239 = vld [vmem:[%s7 + $0xa8] sm:$0xff]
        %v1240 = vld [vmem:[%s7 + $0xb0] sm:$0xff]
        %v1241 = vld [vmem:[%s7 + $0xb8] sm:$0xff]
        %v1242 = vld [vmem:[%s7 + $0xc0] sm:$0xff]
        %v1243 = vld [vmem:[%s7 + $0xc8] sm:$0xff]
        %v1244 = vld [vmem:[%s7 + $0xd0] sm:$0xff]
        %v1245 = vld [vmem:[%s7 + $0xd8] sm:$0xff]
        %v1246 = vld [vmem:[%s7 + $0xe0] sm:$0xff]
        %v1247 = vld [vmem:[%s7 + $0xe8] sm:$0xff]
        %v1248 = vld [vmem:[%s7 + $0xf0] sm:$0xff]
        %v1249 = vld [vmem:[%s7 + $0xf8] sm:$0xff]
        %v1250 = vld [vmem:[%s7 + $0x100] sm:$0xff]
        %v1251 = vld [vmem:[%s7 + $0x108] sm:$0xff]
        %v1252 = vld [vmem:[%s7 + $0x110] sm:$0xff]
        %v1253 = vld [vmem:[%s7 + $0x118] sm:$0xff]
        %v1254 = vld [vmem:[%s7 + $0x120] sm:$0xff]
        %v1255 = vld [vmem:[%s7 + $0x128] sm:$0xff]
        %v1256 = vld [vmem:[%s7 + $0x130] sm:$0xff]
        %v1257 = vld [vmem:[%s7 + $0x138] sm:$0xff]
        %v1258 = vld [vmem:[%s7 + $0x140] sm:$0xff]
        %v1259 = vld [vmem:[%s7 + $0x148] sm:$0xff]
        %v1260 = vld [vmem:[%s7 + $0x150] sm:$0xff]
        %v1261 = vld [vmem:[%s7 + $0x158] sm:$0xff]
        %v1262 = vld [vmem:[%s7 + $0x160] sm:$0xff]
        %v1263 = vld [vmem:[%s7 + $0x168] sm:$0xff]
        %v1264 = vld [vmem:[%s7 + $0x170] sm:$0xff]
        %v1265 = vld [vmem:[%s7 + $0x178] sm:$0xff]
        %v1266 = vld [vmem:[%s7 + $0x180] sm:$0xff]
        %v1267 = vld [vmem:[%s7 + $0x188] sm:$0xff]
        %v1268 = vld [vmem:[%s7 + $0x190] sm:$0xff]
        %v1269 = vld [vmem:[%s7 + $0x198] sm:$0xff]
        %v1270 = vld [vmem:[%s7 + $0x1a0] sm:$0xff]
        %v1271 = vld [vmem:[%s7 + $0x1a8] sm:$0xff]
        %v1272 = vld [vmem:[%s7 + $0x1b0] sm:$0xff]
        %v1273 = vld [vmem:[%s7 + $0x1b8] sm:$0xff]
        %v1274 = vld [vmem:[%s7 + $0x1c0] sm:$0xff]
        %v1275 = vld [vmem:[%s7 + $0x1c8] sm:$0xff]
        %v1276 = vld [vmem:[%s7 + $0x1d0] sm:$0xff]
        %v1277 = vld [vmem:[%s7 + $0x1d8] sm:$0xff]
        %v1278 = vld [vmem:[%s7 + $0x1e0] sm:$0xff]
        %v1279 = vld [vmem:[%s7 + $0x1e8] sm:$0xff]
        %v1280 = vld [vmem:[%s7 + $0x1f0] sm:$0xff]
        %v1281 = vld [vmem:[%s7 + $0x1f8] sm:$0xff]
        %v1346 = vunpack.c.l.b16 %v1218
        %v1347 = vunpack.c.h.b16 %v1218
        %v1348 = vunpack.c.l.b16 %v1219
        %v1349 = vunpack.c.h.b16 %v1219
        %v1350 = vunpack.c.l.b16 %v1220
        %v1351 = vunpack.c.h.b16 %v1220
        %v1352 = vunpack.c.l.b16 %v1221
        %v1353 = vunpack.c.h.b16 %v1221
        %v1354 = vunpack.c.l.b16 %v1222
        %v1355 = vunpack.c.h.b16 %v1222
        %v1356 = vunpack.c.l.b16 %v1223
        %v1357 = vunpack.c.h.b16 %v1223
        %v1358 = vunpack.c.l.b16 %v1224
        %v1359 = vunpack.c.h.b16 %v1224
        %v1360 = vunpack.c.l.b16 %v1225
        %v1361 = vunpack.c.h.b16 %v1225
        %v1362 = vunpack.c.l.b16 %v1226
        %v1363 = vunpack.c.h.b16 %v1226
        %v1364 = vunpack.c.l.b16 %v1227
        %v1365 = vunpack.c.h.b16 %v1227
        %v1366 = vunpack.c.l.b16 %v1228
        %v1367 = vunpack.c.h.b16 %v1228
        %v1368 = vunpack.c.l.b16 %v1229
        %v1369 = vunpack.c.h.b16 %v1229
        %v1370 = vunpack.c.l.b16 %v1230
        %v1371 = vunpack.c.h.b16 %v1230
        %v1372 = vunpack.c.l.b16 %v1231
        %v1373 = vunpack.c.h.b16 %v1231
        %v1374 = vunpack.c.l.b16 %v1232
        %v1375 = vunpack.c.h.b16 %v1232
        %v1376 = vunpack.c.l.b16 %v1233
        %v1377 = vunpack.c.h.b16 %v1233
        %v1378 = vunpack.c.l.b16 %v1234
        %v1379 = vunpack.c.h.b16 %v1234
        %v1380 = vunpack.c.l.b16 %v1235
        %v1381 = vunpack.c.h.b16 %v1235
        %v1382 = vunpack.c.l.b16 %v1236
        %v1383 = vunpack.c.h.b16 %v1236
        %v1384 = vunpack.c.l.b16 %v1237
        %v1385 = vunpack.c.h.b16 %v1237
        %v1386 = vunpack.c.l.b16 %v1238
        %v1387 = vunpack.c.h.b16 %v1238
        %v1388 = vunpack.c.l.b16 %v1239
        %v1389 = vunpack.c.h.b16 %v1239
        %v1390 = vunpack.c.l.b16 %v1240
        %v1391 = vunpack.c.h.b16 %v1240
        %v1392 = vunpack.c.l.b16 %v1241
        %v1393 = vunpack.c.h.b16 %v1241
        %v1394 = vunpack.c.l.b16 %v1242
        %v1395 = vunpack.c.h.b16 %v1242
        %v1396 = vunpack.c.l.b16 %v1243
        %v1397 = vunpack.c.h.b16 %v1243
        %v1398 = vunpack.c.l.b16 %v1244
        %v1399 = vunpack.c.h.b16 %v1244
        %v1400 = vunpack.c.l.b16 %v1245
        %v1401 = vunpack.c.h.b16 %v1245
        %v1402 = vunpack.c.l.b16 %v1246
        %v1403 = vunpack.c.h.b16 %v1246
        %v1404 = vunpack.c.l.b16 %v1247
        %v1405 = vunpack.c.h.b16 %v1247
        %v1406 = vunpack.c.l.b16 %v1248
        %v1407 = vunpack.c.h.b16 %v1248
        %v1408 = vunpack.c.l.b16 %v1249
        %v1409 = vunpack.c.h.b16 %v1249
        %v1410 = vunpack.c.l.b16 %v1250
        %v1411 = vunpack.c.h.b16 %v1250
        %v1412 = vunpack.c.l.b16 %v1251
        %v1413 = vunpack.c.h.b16 %v1251
        %v1414 = vunpack.c.l.b16 %v1252
        %v1415 = vunpack.c.h.b16 %v1252
        %v1416 = vunpack.c.l.b16 %v1253
        %v1417 = vunpack.c.h.b16 %v1253
        %v1418 = vunpack.c.l.b16 %v1254
        %v1419 = vunpack.c.h.b16 %v1254
        %v1420 = vunpack.c.l.b16 %v1255
        %v1421 = vunpack.c.h.b16 %v1255
        %v1422 = vunpack.c.l.b16 %v1256
        %v1423 = vunpack.c.h.b16 %v1256
        %v1424 = vunpack.c.l.b16 %v1257
        %v1425 = vunpack.c.h.b16 %v1257
        %v1426 = vunpack.c.l.b16 %v1258
        %v1427 = vunpack.c.h.b16 %v1258
        %v1428 = vunpack.c.l.b16 %v1259
        %v1429 = vunpack.c.h.b16 %v1259
        %v1430 = vunpack.c.l.b16 %v1260
        %v1431 = vunpack.c.h.b16 %v1260
        %v1432 = vunpack.c.l.b16 %v1261
        %v1433 = vunpack.c.h.b16 %v1261
        %v1434 = vunpack.c.l.b16 %v1262
        %v1435 = vunpack.c.h.b16 %v1262
        %v1436 = vunpack.c.l.b16 %v1263
        %v1437 = vunpack.c.h.b16 %v1263
        %v1438 = vunpack.c.l.b16 %v1264
        %v1439 = vunpack.c.h.b16 %v1264
        %v1440 = vunpack.c.l.b16 %v1265
        %v1441 = vunpack.c.h.b16 %v1265
        %v1442 = vunpack.c.l.b16 %v1266
        %v1443 = vunpack.c.h.b16 %v1266
        %v1444 = vunpack.c.l.b16 %v1267
        %v1445 = vunpack.c.h.b16 %v1267
        %v1446 = vunpack.c.l.b16 %v1268
        %v1447 = vunpack.c.h.b16 %v1268
        %v1448 = vunpack.c.l.b16 %v1269
        %v1449 = vunpack.c.h.b16 %v1269
        %v1450 = vunpack.c.l.b16 %v1270
        %v1451 = vunpack.c.h.b16 %v1270
        %v1452 = vunpack.c.l.b16 %v1271
        %v1453 = vunpack.c.h.b16 %v1271
        %v1454 = vunpack.c.l.b16 %v1272
        %v1455 = vunpack.c.h.b16 %v1272
        %v1456 = vunpack.c.l.b16 %v1273
        %v1457 = vunpack.c.h.b16 %v1273
        %v1458 = vunpack.c.l.b16 %v1274
        %v1459 = vunpack.c.h.b16 %v1274
        %v1460 = vunpack.c.l.b16 %v1275
        %v1461 = vunpack.c.h.b16 %v1275
        %v1462 = vunpack.c.l.b16 %v1276
        %v1463 = vunpack.c.h.b16 %v1276
        %v1464 = vunpack.c.l.b16 %v1277
        %v1465 = vunpack.c.h.b16 %v1277
        %v1466 = vunpack.c.l.b16 %v1278
        %v1467 = vunpack.c.h.b16 %v1278
        %v1468 = vunpack.c.l.b16 %v1279
        %v1469 = vunpack.c.h.b16 %v1279
        %v1470 = vunpack.c.l.b16 %v1280
        %v1471 = vunpack.c.h.b16 %v1280
        %v1472 = vunpack.c.l.b16 %v1281
        %v1473 = vunpack.c.h.b16 %v1281
        %v1474 = vpack.c.b16 %v1348, %v1346
        %v1475 = vpack.c.b16 %v1349, %v1347
        %v1476 = vpack.c.b16 %v1352, %v1350
        %v1477 = vpack.c.b16 %v1353, %v1351
        %v1478 = vpack.c.b16 %v1356, %v1354
        %v1479 = vpack.c.b16 %v1357, %v1355
        %v1480 = vpack.c.b16 %v1360, %v1358
        %v1481 = vpack.c.b16 %v1361, %v1359
        %v1482 = vpack.c.b16 %v1364, %v1362
        %v1483 = vpack.c.b16 %v1365, %v1363
        %v1484 = vpack.c.b16 %v1368, %v1366
        %v1485 = vpack.c.b16 %v1369, %v1367
        %v1486 = vpack.c.b16 %v1372, %v1370
        %v1487 = vpack.c.b16 %v1373, %v1371
        %v1488 = vpack.c.b16 %v1376, %v1374
        %v1489 = vpack.c.b16 %v1377, %v1375
        %v1490 = vpack.c.b16 %v1380, %v1378
        %v1491 = vpack.c.b16 %v1381, %v1379
        %v1492 = vpack.c.b16 %v1384, %v1382
        %v1493 = vpack.c.b16 %v1385, %v1383
        %v1494 = vpack.c.b16 %v1388, %v1386
        %v1495 = vpack.c.b16 %v1389, %v1387
        %v1496 = vpack.c.b16 %v1392, %v1390
        %v1497 = vpack.c.b16 %v1393, %v1391
        %v1498 = vpack.c.b16 %v1396, %v1394
        %v1499 = vpack.c.b16 %v1397, %v1395
        %v1500 = vpack.c.b16 %v1400, %v1398
        %v1501 = vpack.c.b16 %v1401, %v1399
        %v1502 = vpack.c.b16 %v1404, %v1402
        %v1503 = vpack.c.b16 %v1405, %v1403
        %v1504 = vpack.c.b16 %v1408, %v1406
        %v1505 = vpack.c.b16 %v1409, %v1407
        %v1506 = vpack.c.b16 %v1412, %v1410
        %v1507 = vpack.c.b16 %v1413, %v1411
        %v1508 = vpack.c.b16 %v1416, %v1414
        %v1509 = vpack.c.b16 %v1417, %v1415
        %v1510 = vpack.c.b16 %v1420, %v1418
        %v1511 = vpack.c.b16 %v1421, %v1419
        %v1512 = vpack.c.b16 %v1424, %v1422
        %v1513 = vpack.c.b16 %v1425, %v1423
        %v1514 = vpack.c.b16 %v1428, %v1426
        %v1515 = vpack.c.b16 %v1429, %v1427
        %v1516 = vpack.c.b16 %v1432, %v1430
        %v1517 = vpack.c.b16 %v1433, %v1431
        %v1518 = vpack.c.b16 %v1436, %v1434
        %v1519 = vpack.c.b16 %v1437, %v1435
        %v1520 = vpack.c.b16 %v1440, %v1438
        %v1521 = vpack.c.b16 %v1441, %v1439
        %v1522 = vpack.c.b16 %v1444, %v1442
        %v1523 = vpack.c.b16 %v1445, %v1443
        %v1524 = vpack.c.b16 %v1448, %v1446
        %v1525 = vpack.c.b16 %v1449, %v1447
        %v1526 = vpack.c.b16 %v1452, %v1450
        %v1527 = vpack.c.b16 %v1453, %v1451
        %v1528 = vpack.c.b16 %v1456, %v1454
        %v1529 = vpack.c.b16 %v1457, %v1455
        %v1530 = vpack.c.b16 %v1460, %v1458
        %v1531 = vpack.c.b16 %v1461, %v1459
        %v1532 = vpack.c.b16 %v1464, %v1462
        %v1533 = vpack.c.b16 %v1465, %v1463
        %v1534 = vpack.c.b16 %v1468, %v1466
        %v1535 = vpack.c.b16 %v1469, %v1467
        %v1536 = vpack.c.b16 %v1472, %v1470
        %v1537 = vpack.c.b16 %v1473, %v1471
        %1602 = vmatprep.subr.bf16.mxu0 %v1475
        %1603 = vmatpush1.bf16.msra.mxu0 %v1474
        %1604 = vmatprep.subr.bf16.mxu0 %v1477
        %1605 = vmatpush1.bf16.msra.mxu0 %v1476
        %1606 = vmatprep.subr.bf16.mxu0 %v1479
        %1607 = vmatpush1.bf16.msra.mxu0 %v1478
        %1608 = vmatprep.subr.bf16.mxu0 %v1481
        %1609 = vmatpush1.bf16.msra.mxu0 %v1480
        %1610 = vmatprep.subr.bf16.mxu0 %v1483
        %1611 = vmatpush1.bf16.msra.mxu0 %v1482
        %1612 = vmatprep.subr.bf16.mxu0 %v1485
        %1613 = vmatpush1.bf16.msra.mxu0 %v1484
        %1614 = vmatprep.subr.bf16.mxu0 %v1487
        %1615 = vmatpush1.bf16.msra.mxu0 %v1486
        %1616 = vmatprep.subr.bf16.mxu0 %v1489
        %1617 = vmatpush1.bf16.msra.mxu0 %v1488
        %1618 = vmatprep.subr.bf16.mxu0 %v1491
        %1619 = vmatpush1.bf16.msra.mxu0 %v1490
        %1620 = vmatprep.subr.bf16.mxu0 %v1493
        %1621 = vmatpush1.bf16.msra.mxu0 %v1492
        %1622 = vmatprep.subr.bf16.mxu0 %v1495
        %1623 = vmatpush1.bf16.msra.mxu0 %v1494
        %1624 = vmatprep.subr.bf16.mxu0 %v1497
        %1625 = vmatpush1.bf16.msra.mxu0 %v1496
        %1626 = vmatprep.subr.bf16.mxu0 %v1499
        %1627 = vmatpush1.bf16.msra.mxu0 %v1498
        %1628 = vmatprep.subr.bf16.mxu0 %v1501
        %1629 = vmatpush1.bf16.msra.mxu0 %v1500
        %1630 = vmatprep.subr.bf16.mxu0 %v1503
        %1631 = vmatpush1.bf16.msra.mxu0 %v1502
        %1632 = vmatprep.subr.bf16.mxu0 %v1505
        %1633 = vmatpush1.bf16.msra.mxu0 %v1504
        %1634 = vmatprep.mubr.bf16.mxu0 %v1215
        %1635 = vmatmul.mubr.bf16.gmra.mrb[0].mxu0 %v1214
        %v1636 = vpop.f32.mrb[0].mxu0
        %v1637 = vadd.f32 0.0, %v1636
        %v1638 = vpop.f32.mrb[0].mxu0
        %v1639 = vadd.f32 0.0, %v1638
        %v1640 = vpop.f32.mrb[0].mxu0
        %v1641 = vpop.f32.mrb[0].mxu0
        %1642 = vdwg.mxu0
        %1643 = vmatprep.subr.bf16.mxu0 %v1507
        %1644 = vmatpush1.bf16.msra.mxu0 %v1506
        %1645 = vmatprep.subr.bf16.mxu0 %v1509
        %1646 = vmatpush1.bf16.msra.mxu0 %v1508
        %1647 = vmatprep.subr.bf16.mxu0 %v1511
        %1648 = vmatpush1.bf16.msra.mxu0 %v1510
        %1649 = vmatprep.subr.bf16.mxu0 %v1513
        %1650 = vmatpush1.bf16.msra.mxu0 %v1512
        %1651 = vmatprep.subr.bf16.mxu0 %v1515
        %1652 = vmatpush1.bf16.msra.mxu0 %v1514
        %1653 = vmatprep.subr.bf16.mxu0 %v1517
        %1654 = vmatpush1.bf16.msra.mxu0 %v1516
        %1655 = vmatprep.subr.bf16.mxu0 %v1519
        %1656 = vmatpush1.bf16.msra.mxu0 %v1518
        %1657 = vmatprep.subr.bf16.mxu0 %v1521
        %1658 = vmatpush1.bf16.msra.mxu0 %v1520
        %1659 = vmatprep.subr.bf16.mxu0 %v1523
        %1660 = vmatpush1.bf16.msra.mxu0 %v1522
        %1661 = vmatprep.subr.bf16.mxu0 %v1525
        %1662 = vmatpush1.bf16.msra.mxu0 %v1524
        %1663 = vmatprep.subr.bf16.mxu0 %v1527
        %1664 = vmatpush1.bf16.msra.mxu0 %v1526
        %1665 = vmatprep.subr.bf16.mxu0 %v1529
        %1666 = vmatpush1.bf16.msra.mxu0 %v1528
        %1667 = vmatprep.subr.bf16.mxu0 %v1531
        %1668 = vmatpush1.bf16.msra.mxu0 %v1530
        %1669 = vmatprep.subr.bf16.mxu0 %v1533
        %1670 = vmatpush1.bf16.msra.mxu0 %v1532
        %1671 = vmatprep.subr.bf16.mxu0 %v1535
        %1672 = vmatpush1.bf16.msra.mxu0 %v1534
        %1673 = vmatprep.subr.bf16.mxu0 %v1537
        %1674 = vmatpush1.bf16.msra.mxu0 %v1536
        %1675 = vmatprep.mubr.bf16.mxu0 %v1217
        %1676 = vmatmul.mubr.bf16.gmra.mrb[0].mxu0 %v1216
        %v1677 = vpop.f32.mrb[0].mxu0
        %v1678 = vadd.f32 %v1637, %v1677
        %v1679 = vpop.f32.mrb[0].mxu0
        %v1680 = vadd.f32 %v1639, %v1679
        %v1681 = vpop.f32.mrb[0].mxu0
        %v1682 = vpop.f32.mrb[0].mxu0
        %1683 = vdwg.mxu0
        %v1684 = vpack.c.bf16 %v1678, %v1678
        %v1685 = vpack.c.bf16 %v1680, %v1680
        %v1688 = vadd.bf16 %v1684, %v374
        %v1689 = vadd.bf16 %v1685, %v686
        %v1692 = vcombine.low %v1688, %v1689
        %v1694 = vunpack.c.l.s4 1966171168
        %v1695 = vunpack.c.0.s8 %v1694
        %v1696 = vlaneseq
        %v1697 = vshrl.u32 %v1696, 7
        %v1698 = vsub.s32 %v1695, %v1697
        %v1699 = vrot.slane %v1692, %v1698
        %v1701 = vunpack.c.l.s4 1966171168
        %v1702 = vunpack.c.0.s8 %v1701
        %v1703 = vlaneseq
        %v1704 = vshrl.u32 %v1703, 7
        %v1705 = vsub.s32 %v1702, %v1704
        %v1706 = vrot.slane %v1699, %v1705
        %1708 = vst [vmem:[%s357] sm:$0x3] %v1706
        %p1709 = scmp.lt.s32.totalorder %s22, 1
        %s1710 = scalar_select %p1709, %s22, 1
        %s1711 = smul.addr %s1710, 2
        %s1712 = scalar_lea.vmem %s8, %s1711
        // Predicated region
        $region69: #{fasternet_forward.16} parent=51 // pred_check
          %p1713 = pneg %p213
        $region70: #{fasternet_forward.16} parent=51 // pred_check_branch
          %1715 = sbr.rel (%p1713) target = $region72
        $region71: #{fasternet_forward.16} parent=51 // pred_region
          _
        $region72: #{fasternet_forward.16} parent=51 // pred_fallthru
          _
      $region52: #{fasternet_forward.16} parent=5 // pred_fallthru
        _
      %p1716 = scmp.le.s32.totalorder 2, %s17
      // Predicated region
      $region73: #{fasternet_forward.16} parent=5 // pred_check
        %p1717 = pneg %p1716
      $region74: #{fasternet_forward.16} parent=5 // pred_check_branch
        %1719 = sbr.rel (%p1717) target = $region76
      $region75: #{fasternet_forward.16} parent=5 // pred_region
        %s1720 = ssub.s32 %s17, 2
        // Predicated region
        $region77: #{fasternet_forward.16} parent=75 // pred_check
          %p1721 = pneg %p219
        $region78: #{fasternet_forward.16} parent=75 // pred_check_branch
          %1723 = sbr.rel (%p1721) target = $region80
        $region79: #{fasternet_forward.16} parent=75 // pred_region
          %p1724 = scmp.lt.s32.totalorder %s23, 1
          %s1725 = scalar_select %p1724, %s23, 1
          %s1726 = smul.addr %s1725, 2
          %s1727 = scalar_lea.vmem %s8, %s1726
        $region80: #{fasternet_forward.16} parent=75 // pred_fallthru
          _
      $region76: #{fasternet_forward.16} parent=5 // pred_fallthru
        _
    $region6: #{fasternet_forward.16} parent=1 // loop_footer
      %s21 = sadd.s32 1, %s17
    $region7: #{fasternet_forward.16} parent=1 // loop_footer_branch
      %16 = sbr.rel target = $region3
    $region8: #{fasternet_forward.16} parent=1 // loop_exit
      _
    %1728 = vsyncpa [#allocation3], 1
    %s1729 = scalar_lea.sflag [#allocation3], 1
    %1730 = vsyncpa %s1729, 1
    %1731 = vsyncpa [#allocation5], 1
    %1732 = vsyncpa [#allocation8], 1

// kernel: fasternet_forward.17
$region0: #{fasternet_forward.17}
  #allocation0 [shape = 'u32[]', space=smem, size = 0x4, offset = 0x4, fixed_abs, tag = 'smem constant byte address 0x4 - core index']
  #allocation1 [shape = 'u32[144,128]{1,0:T(1,128)}', space=vmem, size = 0x12000, scoped, tag = 'internal scratch']
  #allocation2 [shape = 'f32[2,256]{1,0:T(2,128)}', space=vmem, size = 0x800, scoped, tag = 'scratch operand']
  %s0 = inlined_call_operand.vmem [shape: bf16[2,2,256], index: 0, kind: input, shape index: {}]
  %s1 = inlined_call_operand.vmem [shape: bf16[256,128], index: 1, kind: input, shape index: {}]
  %s2 = inlined_call_operand.vmem [shape: bf16[128,10], index: 2, kind: input, shape index: {}]
  %s3 = inlined_call_operand.vmem [shape: f32[1,10], index: 3, kind: input, shape index: {}]
  %s4 = inlined_call_operand.hbm [shape: f32[2,10], index: 4, kind: output, shape index: {}]
  %s5 = sld [smem:[#allocation0]]
  $region34: #{fasternet_forward.17} parent=0
    _
  %s7 = ssub.s32 1, %s5
  %s8 = scalar_select 0, %s7, %s5
  $region1: #{fasternet_forward.17} parent=0
    #allocation3 [shape = 'u8[1024]{0}', space=vmem, size = 0x400, scoped, tag = 'output window, operand 0, single buffered']
    #allocation4 [shape = 's32[1]{0}', space=sflag, size = 0x4, scoped, tag = 'scoped memory for fasternet_forward.17']
    %9 = vsyncpa [#allocation4], 0
    // Predicated region
    $region2: #{fasternet_forward.17} parent=1 // pred_check
      _
    $region3: #{fasternet_forward.17} parent=1 // pred_check_branch
      %11 = sbr.rel (0) target = $region5
    $region4: #{fasternet_forward.17} parent=1 // pred_region
      _
    $region5: #{fasternet_forward.17} parent=1 // pred_fallthru
      _
    // Predicated region
    $region6: #{fasternet_forward.17} parent=1 // pred_check
      _
    $region7: #{fasternet_forward.17} parent=1 // pred_check_branch
      %13 = sbr.rel (0) target = $region9
    $region8: #{fasternet_forward.17} parent=1 // pred_region
      _
    $region9: #{fasternet_forward.17} parent=1 // pred_fallthru
      _
    // Predicated region
    $region10: #{fasternet_forward.17} parent=1 // pred_check
      _
    $region11: #{fasternet_forward.17} parent=1 // pred_check_branch
      %15 = sbr.rel (0) target = $region13
    $region12: #{fasternet_forward.17} parent=1 // pred_region
      _
    $region13: #{fasternet_forward.17} parent=1 // pred_fallthru
      _
    // Predicated region
    $region14: #{fasternet_forward.17} parent=1 // pred_check
      _
    $region15: #{fasternet_forward.17} parent=1 // pred_check_branch
      %17 = sbr.rel (0) target = $region17
    $region16: #{fasternet_forward.17} parent=1 // pred_region
      _
    $region17: #{fasternet_forward.17} parent=1 // pred_fallthru
      _
    %p19 = scmp.eq.s32.totalorder 0, 0
    // Predicated region
    $region18: #{fasternet_forward.17} parent=1 // pred_check
      %p20 = pneg %p19
    $region19: #{fasternet_forward.17} parent=1 // pred_check_branch
      %22 = sbr.rel (%p20) target = $region21
    $region20: #{fasternet_forward.17} parent=1 // pred_region
      %23 = vst [vmem:[#allocation2] sm:$0xf] 0.0
    $region21: #{fasternet_forward.17} parent=1 // pred_fallthru
      _
    %v24 = vld [vmem:[#allocation2] sm:$0xf]
    %v25 = vld [vmem:[%s0] sm:$0x3]
    %v26 = vld [vmem:[%s0 + $0x2] sm:$0x3]
    %v27 = vunpack.c.l.bf16 %v25
    %v28 = vunpack.c.l.bf16 %v26
    %v32 = vunpack.c.l.s4 1983009808
    %v33 = vunpack.c.0.s8 %v32
    %v34 = vlaneseq
    %v35 = vshrl.u32 %v34, 7
    %v36 = vsub.s32 %v33, %v35
    %v37 = vrot.slane %v27, %v36
    %v38 = vcombine.high %v37, %v37
    %v40 = vunpack.c.l.s4 1983009808
    %v41 = vunpack.c.0.s8 %v40
    %v42 = vlaneseq
    %v43 = vshrl.u32 %v42, 7
    %v44 = vsub.s32 %v41, %v43
    %v45 = vrot.slane %v28, %v44
    %v46 = vcombine.high %v45, %v45
    %vm51 = vcmask 1041408
    %v52 = vsel %vm51, %v37, 0.0
    %v53 = vrot.slane %v52, 4
    %v54 = vadd.f32 %v52, %v53
    %v55 = vrot.slane %v54, 2
    %v56 = vadd.f32 %v54, %v55
    %v57 = vrot.slane %v56, 1
    %v58 = vadd.f32 %v56, %v57
    %v59 = vsel %vm51, %v38, 0.0
    %v60 = vrot.slane %v59, 4
    %v61 = vadd.f32 %v59, %v60
    %v62 = vrot.slane %v61, 2
    %v63 = vadd.f32 %v61, %v62
    %v64 = vrot.slane %v63, 1
    %v65 = vadd.f32 %v63, %v64
    %v66 = vsel %vm51, %v45, 0.0
    %v67 = vrot.slane %v66, 4
    %v68 = vadd.f32 %v66, %v67
    %v69 = vrot.slane %v68, 2
    %v70 = vadd.f32 %v68, %v69
    %v71 = vrot.slane %v70, 1
    %v72 = vadd.f32 %v70, %v71
    %v73 = vsel %vm51, %v46, 0.0
    %v74 = vrot.slane %v73, 4
    %v75 = vadd.f32 %v73, %v74
    %v76 = vrot.slane %v75, 2
    %v77 = vadd.f32 %v75, %v76
    %v78 = vrot.slane %v77, 1
    %v79 = vadd.f32 %v77, %v78
    %v84 = vcombine.low %v58, %v65
    %v86 = vunpack.c.l.s4 1983009808
    %v87 = vunpack.c.0.s8 %v86
    %v88 = vlaneseq
    %v89 = vshrl.u32 %v88, 7
    %v90 = vsub.s32 %v87, %v89
    %v91 = vrot.slane %v84, %v90
    %v92 = vcombine.low %v72, %v79
    %v94 = vunpack.c.l.s4 1983009808
    %v95 = vunpack.c.0.s8 %v94
    %v96 = vlaneseq
    %v97 = vshrl.u32 %v96, 7
    %v98 = vsub.s32 %v95, %v97
    %v99 = vrot.slane %v92, %v98
    %vm100 = vcmask 1044484
    %v101 = vsel %vm100, %v91, %v91
    %vm102 = vcmask 1046534
    %v103 = vsel %vm102, %v91, %v101
    %v104 = vrot.slane %v99, 7
    %vm105 = vcmask 1041409
    %v106 = vsel %vm105, %v104, %v103
    %vm107 = vcmask 1043459
    %v108 = vsel %vm107, %v104, %v106
    %vm109 = vcmask 1045509
    %v110 = vsel %vm109, %v104, %v108
    %vm111 = vcmask 1047559
    %v112 = vsel %vm111, %v104, %v110
    %v114 = vadd.f32 %v24, %v112
    %115 = vst [vmem:[#allocation2] sm:$0xf] %v114
    // Predicated region
    $region22: #{fasternet_forward.17} parent=1 // pred_check
      %p116 = pneg %p19
    $region23: #{fasternet_forward.17} parent=1 // pred_check_branch
      %118 = sbr.rel (%p116) target = $region25
    $region24: #{fasternet_forward.17} parent=1 // pred_region
      %v119 = vld [vmem:[#allocation2] sm:$0xf]
      %v120 = vmul.f32 %v119, 0.5
      %v123 = vunpack.c.l.s4 1983009808
      %v124 = vunpack.c.0.s8 %v123
      %v125 = vlaneseq
      %v126 = vshrl.u32 %v125, 7
      %v127 = vsub.s32 %v124, %v126
      %v128 = vrot.slane %v120, %v127
      %v129 = vcombine.high %v128, %v128
      %v132 = vpack.c.bf16 %v128, %v128
      %v133 = vpack.c.bf16 %v129, %v129
      %v134 = vld [vmem:[%s1] sm:$0xf]
      %v135 = vld [vmem:[%s1 + $0x4] sm:$0xf]
      %v136 = vld [vmem:[%s1 + $0x8] sm:$0xf]
      %v137 = vld [vmem:[%s1 + $0xc] sm:$0xf]
      %v138 = vld [vmem:[%s1 + $0x10] sm:$0xf]
      %v139 = vld [vmem:[%s1 + $0x14] sm:$0xf]
      %v140 = vld [vmem:[%s1 + $0x18] sm:$0xf]
      %v141 = vld [vmem:[%s1 + $0x1c] sm:$0xf]
      %v142 = vld [vmem:[%s1 + $0x20] sm:$0xf]
      %v143 = vld [vmem:[%s1 + $0x24] sm:$0xf]
      %v144 = vld [vmem:[%s1 + $0x28] sm:$0xf]
      %v145 = vld [vmem:[%s1 + $0x2c] sm:$0xf]
      %v146 = vld [vmem:[%s1 + $0x30] sm:$0xf]
      %v147 = vld [vmem:[%s1 + $0x34] sm:$0xf]
      %v148 = vld [vmem:[%s1 + $0x38] sm:$0xf]
      %v149 = vld [vmem:[%s1 + $0x3c] sm:$0xf]
      %v150 = vld [vmem:[%s1 + $0x40] sm:$0xf]
      %v151 = vld [vmem:[%s1 + $0x44] sm:$0xf]
      %v152 = vld [vmem:[%s1 + $0x48] sm:$0xf]
      %v153 = vld [vmem:[%s1 + $0x4c] sm:$0xf]
      %v154 = vld [vmem:[%s1 + $0x50] sm:$0xf]
      %v155 = vld [vmem:[%s1 + $0x54] sm:$0xf]
      %v156 = vld [vmem:[%s1 + $0x58] sm:$0xf]
      %v157 = vld [vmem:[%s1 + $0x5c] sm:$0xf]
      %v158 = vld [vmem:[%s1 + $0x60] sm:$0xf]
      %v159 = vld [vmem:[%s1 + $0x64] sm:$0xf]
      %v160 = vld [vmem:[%s1 + $0x68] sm:$0xf]
      %v161 = vld [vmem:[%s1 + $0x6c] sm:$0xf]
      %v162 = vld [vmem:[%s1 + $0x70] sm:$0xf]
      %v163 = vld [vmem:[%s1 + $0x74] sm:$0xf]
      %v164 = vld [vmem:[%s1 + $0x78] sm:$0xf]
      %v165 = vld [vmem:[%s1 + $0x7c] sm:$0xf]
      %v198 = vunpack.c.l.b16 %v134
      %v199 = vunpack.c.l.b16 %v135
      %v200 = vunpack.c.l.b16 %v136
      %v201 = vunpack.c.l.b16 %v137
      %v202 = vunpack.c.l.b16 %v138
      %v203 = vunpack.c.l.b16 %v139
      %v204 = vunpack.c.l.b16 %v140
      %v205 = vunpack.c.l.b16 %v141
      %v206 = vunpack.c.l.b16 %v142
      %v207 = vunpack.c.l.b16 %v143
      %v208 = vunpack.c.l.b16 %v144
      %v209 = vunpack.c.l.b16 %v145
      %v210 = vunpack.c.l.b16 %v146
      %v211 = vunpack.c.l.b16 %v147
      %v212 = vunpack.c.l.b16 %v148
      %v213 = vunpack.c.l.b16 %v149
      %v214 = vunpack.c.l.b16 %v150
      %v215 = vunpack.c.l.b16 %v151
      %v216 = vunpack.c.l.b16 %v152
      %v217 = vunpack.c.l.b16 %v153
      %v218 = vunpack.c.l.b16 %v154
      %v219 = vunpack.c.l.b16 %v155
      %v220 = vunpack.c.l.b16 %v156
      %v221 = vunpack.c.l.b16 %v157
      %v222 = vunpack.c.l.b16 %v158
      %v223 = vunpack.c.l.b16 %v159
      %v224 = vunpack.c.l.b16 %v160
      %v225 = vunpack.c.l.b16 %v161
      %v226 = vunpack.c.l.b16 %v162
      %v227 = vunpack.c.l.b16 %v163
      %v228 = vunpack.c.l.b16 %v164
      %v229 = vunpack.c.l.b16 %v165
      %v230 = vpack.c.b16 %v199, %v198
      %v231 = vpack.c.b16 %v201, %v200
      %v232 = vpack.c.b16 %v203, %v202
      %v233 = vpack.c.b16 %v205, %v204
      %v234 = vpack.c.b16 %v207, %v206
      %v235 = vpack.c.b16 %v209, %v208
      %v236 = vpack.c.b16 %v211, %v210
      %v237 = vpack.c.b16 %v213, %v212
      %v238 = vpack.c.b16 %v215, %v214
      %v239 = vpack.c.b16 %v217, %v216
      %v240 = vpack.c.b16 %v219, %v218
      %v241 = vpack.c.b16 %v221, %v220
      %v242 = vpack.c.b16 %v223, %v222
      %v243 = vpack.c.b16 %v225, %v224
      %v244 = vpack.c.b16 %v227, %v226
      %v245 = vpack.c.b16 %v229, %v228
      %262 = vmatprep.subr.bf16.mxu0 0
      %263 = vmatpush1.bf16.msra.mxu0 %v230
      %264 = vmatprep.subr.bf16.mxu0 0
      %265 = vmatpush1.bf16.msra.mxu0 %v231
      %266 = vmatprep.subr.bf16.mxu0 0
      %267 = vmatpush1.bf16.msra.mxu0 %v232
      %268 = vmatprep.subr.bf16.mxu0 0
      %269 = vmatpush1.bf16.msra.mxu0 %v233
      %270 = vmatprep.subr.bf16.mxu0 0
      %271 = vmatpush1.bf16.msra.mxu0 %v234
      %272 = vmatprep.subr.bf16.mxu0 0
      %273 = vmatpush1.bf16.msra.mxu0 %v235
      %274 = vmatprep.subr.bf16.mxu0 0
      %275 = vmatpush1.bf16.msra.mxu0 %v236
      %276 = vmatprep.subr.bf16.mxu0 0
      %277 = vmatpush1.bf16.msra.mxu0 %v237
      %278 = vmatprep.subr.bf16.mxu0 0
      %279 = vmatpush1.bf16.msra.mxu0 %v238
      %280 = vmatprep.subr.bf16.mxu0 0
      %281 = vmatpush1.bf16.msra.mxu0 %v239
      %282 = vmatprep.subr.bf16.mxu0 0
      %283 = vmatpush1.bf16.msra.mxu0 %v240
      %284 = vmatprep.subr.bf16.mxu0 0
      %285 = vmatpush1.bf16.msra.mxu0 %v241
      %286 = vmatprep.subr.bf16.mxu0 0
      %287 = vmatpush1.bf16.msra.mxu0 %v242
      %288 = vmatprep.subr.bf16.mxu0 0
      %289 = vmatpush1.bf16.msra.mxu0 %v243
      %290 = vmatprep.subr.bf16.mxu0 0
      %291 = vmatpush1.bf16.msra.mxu0 %v244
      %292 = vmatprep.subr.bf16.mxu0 0
      %293 = vmatpush1.bf16.msra.mxu0 %v245
      %294 = vmatprep.mubr.bf16.mxu0 %v133
      %295 = vmatmul.mubr.bf16.gmra.mrb[0].mxu0 %v132
      %v296 = vpop.f32.mrb[0].mxu0
      %v297 = vadd.f32 0.0, %v296
      %v298 = vpop.f32.mrb[0].mxu0
      %v299 = vpop.f32.mrb[0].mxu0
      %v300 = vpop.f32.mrb[0].mxu0
      %301 = vdwg.mxu0
      %v302 = vmax.f32 %v297, 0.0
      %v303 = vpack.c.bf16 %v302, %v302
      %v304 = vld [vmem:[%s2] sm:$0xf]
      %v305 = vld [vmem:[%s2 + $0x4] sm:$0xf]
      %v306 = vld [vmem:[%s2 + $0x8] sm:$0xf]
      %v307 = vld [vmem:[%s2 + $0xc] sm:$0xf]
      %v308 = vld [vmem:[%s2 + $0x10] sm:$0xf]
      %v309 = vld [vmem:[%s2 + $0x14] sm:$0xf]
      %v310 = vld [vmem:[%s2 + $0x18] sm:$0xf]
      %v311 = vld [vmem:[%s2 + $0x1c] sm:$0xf]
      %v312 = vld [vmem:[%s2 + $0x20] sm:$0xf]
      %v313 = vld [vmem:[%s2 + $0x24] sm:$0xf]
      %v314 = vld [vmem:[%s2 + $0x28] sm:$0xf]
      %v315 = vld [vmem:[%s2 + $0x2c] sm:$0xf]
      %v316 = vld [vmem:[%s2 + $0x30] sm:$0xf]
      %v317 = vld [vmem:[%s2 + $0x34] sm:$0xf]
      %v318 = vld [vmem:[%s2 + $0x38] sm:$0xf]
      %v319 = vld [vmem:[%s2 + $0x3c] sm:$0xf]
      %v320 = vld [vmem:[%s3] sm:$0x1]
      %v322 = vlaneseq
      %v323 = vshrl.u32 %v322, 7
      %v324 = vsub.s32 0, %v323
      %v325 = vrot.slane %v320, %v324
      %v343 = vunpack.c.l.b16 %v304
      %v344 = vunpack.c.l.b16 %v305
      %v345 = vunpack.c.l.b16 %v306
      %v346 = vunpack.c.l.b16 %v307
      %v347 = vunpack.c.l.b16 %v308
      %v348 = vunpack.c.l.b16 %v309
      %v349 = vunpack.c.l.b16 %v310
      %v350 = vunpack.c.l.b16 %v311
      %v351 = vunpack.c.l.b16 %v312
      %v352 = vunpack.c.l.b16 %v313
      %v353 = vunpack.c.l.b16 %v314
      %v354 = vunpack.c.l.b16 %v315
      %v355 = vunpack.c.l.b16 %v316
      %v356 = vunpack.c.l.b16 %v317
      %v357 = vunpack.c.l.b16 %v318
      %v358 = vunpack.c.l.b16 %v319
      %v359 = vpack.c.b16 %v344, %v343
      %v360 = vpack.c.b16 %v346, %v345
      %v361 = vpack.c.b16 %v348, %v347
      %v362 = vpack.c.b16 %v350, %v349
      %v363 = vpack.c.b16 %v352, %v351
      %v364 = vpack.c.b16 %v354, %v353
      %v365 = vpack.c.b16 %v356, %v355
      %v366 = vpack.c.b16 %v358, %v357
      %375 = vmatprep.subr.bf16.mxu0 0
      %376 = vmatpush1.bf16.msra.mxu0 %v359
      %377 = vmatprep.subr.bf16.mxu0 0
      %378 = vmatpush1.bf16.msra.mxu0 %v360
      %379 = vmatprep.subr.bf16.mxu0 0
      %380 = vmatpush1.bf16.msra.mxu0 %v361
      %381 = vmatprep.subr.bf16.mxu0 0
      %382 = vmatpush1.bf16.msra.mxu0 %v362
      %383 = vmatprep.subr.bf16.mxu0 0
      %384 = vmatpush1.bf16.msra.mxu0 %v363
      %385 = vmatprep.subr.bf16.mxu0 0
      %386 = vmatpush1.bf16.msra.mxu0 %v364
      %387 = vmatprep.subr.bf16.mxu0 0
      %388 = vmatpush1.bf16.msra.mxu0 %v365
      %389 = vmatprep.subr.bf16.mxu0 0
      %390 = vmatpush1.bf16.msra.mxu0 %v366
      %391 = vmatprep.subr.bf16.mxu0 0
      %392 = vmatpush1.bf16.msra.mxu0 0
      %393 = vmatprep.subr.bf16.mxu0 0
      %394 = vmatpush1.bf16.msra.mxu0 0
      %395 = vmatprep.subr.bf16.mxu0 0
      %396 = vmatpush1.bf16.msra.mxu0 0
      %397 = vmatprep.subr.bf16.mxu0 0
      %398 = vmatpush1.bf16.msra.mxu0 0
      %399 = vmatprep.subr.bf16.mxu0 0
      %400 = vmatpush1.bf16.msra.mxu0 0
      %401 = vmatprep.subr.bf16.mxu0 0
      %402 = vmatpush1.bf16.msra.mxu0 0
      %403 = vmatprep.subr.bf16.mxu0 0
      %404 = vmatpush1.bf16.msra.mxu0 0
      %405 = vmatprep.subr.bf16.mxu0 0
      %406 = vmatpush1.bf16.msra.mxu0 0
      %407 = vmatprep.mubr.bf16.mxu0 0
      %408 = vmatmul.mubr.bf16.gmra.mrb[0].mxu0 %v303
      %v409 = vpop.f32.mrb[0].mxu0
      %v410 = vadd.f32 %v325, %v409
      %v411 = vpop.f32.mrb[0].mxu0
      %v412 = vpop.f32.mrb[0].mxu0
      %v413 = vpop.f32.mrb[0].mxu0
      %414 = vdwg.mxu0
      %vm415 = vcmask 74752
      %416 = vst.msk [vmem:[#allocation3] sm:$0x3] %vm415, %v410
    $region25: #{fasternet_forward.17} parent=1 // pred_fallthru
      _
    // Predicated region
    $region26: #{fasternet_forward.17} parent=1 // pred_check
      _
    $region27: #{fasternet_forward.17} parent=1 // pred_check_branch
      %418 = sbr.rel (0) target = $region29
    $region28: #{fasternet_forward.17} parent=1 // pred_region
      %s420 = ssub.s32 32, 32
      %421 = vsyncadd [#allocation4], %s420
      %s423 = sshll.u32 [#allocation3], 4
      %s424 = int_to_ptr.vmem [resolvable:$true] %s423
      %426 = dma.vmem_to_hbm [thread:$0]  %s424, 32, %s4, [#allocation4]
    $region29: #{fasternet_forward.17} parent=1 // pred_fallthru
      _
    // Predicated region
    $region30: #{fasternet_forward.17} parent=1 // pred_check
      _
    $region31: #{fasternet_forward.17} parent=1 // pred_check_branch
      %428 = sbr.rel (0) target = $region33
    $region32: #{fasternet_forward.17} parent=1 // pred_region
      %429 = dma.done [#allocation4], 32
    $region33: #{fasternet_forward.17} parent=1 // pred_fallthru
      _
    %430 = vsyncpa [#allocation4], 1

</llo_original>
